<compile_context>
chip_gen: v5e
topology: v5e:2x2
jax: 0.10.0
libtpu: 0.0.40
codegen_flags: <defaults>
</compile_context>

<pallas_src>
import functools

import numpy as np

import jax
import jax.numpy as jnp
from jax import lax
from jax.experimental import pallas as pl
from jax.experimental.pallas import tpu as pltpu  # noqa: F401  (TPU backend)


# ------------------------------ fused kernel ------------------------------- #

def _cnn_fused_kernel(x1_ref, w1p_ref, sh1_ref, b1p_ref,
                      pr1e_ref, pr1o_ref, pc1e_ref, pc1o_ref,
                      w2p_ref, sh2_ref, b2p_ref,
                      pr2e_ref, pr2o_ref, pc2e_ref, pc2o_ref,
                      fs_ref, wf_ref, bfc_ref, out_ref):
    f32 = jnp.float32
    x1 = x1_ref[...]                                        # (B*32, 32) padded img

    # ---- conv1: 5x5, pad 2, 1->16 : sum over kernel rows of
    #      (row-shift @ X) @ banded-weight ;  lanes become (w, cout) ----------
    r1 = None
    for u in range(5):
        xs = jnp.dot(sh1_ref[u], x1, preferred_element_type=f32)      # (B*32, 32)
        part = jnp.dot(xs, w1p_ref[u], preferred_element_type=f32)    # (B*32, 512)
        r1 = part if r1 is None else r1 + part
    a1 = jnp.maximum(r1 + b1p_ref[...], 0.0)                # bias + ReLU

    # ---- pool1 (2x2) + zero-pad for conv2, via even/odd selection matmuls ---
    trow = jnp.maximum(jnp.dot(pr1e_ref[...], a1, preferred_element_type=f32),
                       jnp.dot(pr1o_ref[...], a1, preferred_element_type=f32))
    x2 = jnp.maximum(jnp.dot(trow, pc1e_ref[...], preferred_element_type=f32),
                     jnp.dot(trow, pc1o_ref[...], preferred_element_type=f32))
    # x2: (B*16, 256) = padded conv2 input, rows=(b, hp), lanes=(wp, cin)

    # ---- conv2: 3x3, pad 1, 16->8 -------------------------------------------
    r2 = None
    for u in range(3):
        xs = jnp.dot(sh2_ref[u], x2, preferred_element_type=f32)      # (B*16, 256)
        part = jnp.dot(xs, w2p_ref[u], preferred_element_type=f32)    # (B*16, 112)
        r2 = part if r2 is None else r2 + part
    a2 = jnp.maximum(r2 + b2p_ref[...], 0.0)

    # ---- pool2 (2x2) ---------------------------------------------------------
    t2 = jnp.maximum(jnp.dot(pr2e_ref[...], a2, preferred_element_type=f32),
                     jnp.dot(pr2o_ref[...], a2, preferred_element_type=f32))
    p2 = jnp.maximum(jnp.dot(t2, pc2e_ref[...], preferred_element_type=f32),
                     jnp.dot(t2, pc2o_ref[...], preferred_element_type=f32))
    # p2: (B*7, 56), rows=(b, h), lanes=(w, cout)

    # ---- flatten (NCHW order, folded into packed fc weights) + fc -----------
    acc = jnp.zeros(out_ref.shape, f32)
    for h in range(7):
        prow = jnp.dot(fs_ref[h], p2, preferred_element_type=f32)     # (B, 56)
        acc = acc + jnp.dot(prow, wf_ref[h], preferred_element_type=f32)
    out_ref[...] = (acc + bfc_ref[...]).astype(out_ref.dtype)


# -------------------- static (batch-dependent) selection matrices ----------- #

@functools.lru_cache(maxsize=None)
def _selection_mats(B):
    # conv1 row-shift matrices (5, B*32, B*32): row (b,i) <- row (b,i+u)
    sh1 = np.zeros((5, B * 32, B * 32), np.float32)
    for u in range(5):
        for b in range(B):
            for i in range(32 - u):
                sh1[u, b * 32 + i, b * 32 + i + u] = 1.0
    # pool1 row selectors (B*16, B*32); rows 0 and 15 stay zero = conv2 pad
    pr1e = np.zeros((B * 16, B * 32), np.float32)
    pr1o = np.zeros((B * 16, B * 32), np.float32)
    for b in range(B):
        for hp in range(1, 15):
            pr1e[b * 16 + hp, b * 32 + 2 * (hp - 1)] = 1.0
            pr1o[b * 16 + hp, b * 32 + 2 * (hp - 1) + 1] = 1.0
    # pool1 lane selectors (512, 256); lane blocks 0 and 15 stay zero = pad
    pc1e = np.zeros((32 * 16, 16 * 16), np.float32)
    pc1o = np.zeros((32 * 16, 16 * 16), np.float32)
    for wp in range(1, 15):
        for c in range(16):
            pc1e[(2 * (wp - 1)) * 16 + c, wp * 16 + c] = 1.0
            pc1o[(2 * (wp - 1) + 1) * 16 + c, wp * 16 + c] = 1.0
    # conv2 row-shift matrices (3, B*16, B*16)
    sh2 = np.zeros((3, B * 16, B * 16), np.float32)
    for u in range(3):
        for b in range(B):
            for i in range(16 - u):
                sh2[u, b * 16 + i, b * 16 + i + u] = 1.0
    # pool2 row selectors (B*7, B*16)
    pr2e = np.zeros((B * 7, B * 16), np.float32)
    pr2o = np.zeros((B * 7, B * 16), np.float32)
    for b in range(B):
        for h in range(7):
            pr2e[b * 7 + h, b * 16 + 2 * h] = 1.0
            pr2o[b * 7 + h, b * 16 + 2 * h + 1] = 1.0
    # pool2 lane selectors (112, 56)
    pc2e = np.zeros((14 * 8, 7 * 8), np.float32)
    pc2o = np.zeros((14 * 8, 7 * 8), np.float32)
    for w in range(7):
        for c in range(8):
            pc2e[(2 * w) * 8 + c, w * 8 + c] = 1.0
            pc2o[(2 * w + 1) * 8 + c, w * 8 + c] = 1.0
    # fc row selectors (7, B, B*7): pick pooled row (b, h) for every b
    fs = np.zeros((7, B, B * 7), np.float32)
    for h in range(7):
        for b in range(B):
            fs[h, b, b * 7 + h] = 1.0
    return dict(sh1=sh1, pr1e=pr1e, pr1o=pr1o, pc1e=pc1e, pc1o=pc1o,
                sh2=sh2, pr2e=pr2e, pr2o=pr2o, pc2e=pc2e, pc2o=pc2o, fs=fs)


# --------------------------- parameters & packing --------------------------- #

def init_params(key):
    """PyTorch-layout parameters: conv OIHW, linear (out, in)."""
    k = jax.random.split(key, 6)
    return dict(
        w1=0.1 * jax.random.normal(k[0], (16, 1, 5, 5), jnp.float32),
        b1=0.1 * jax.random.normal(k[1], (16,), jnp.float32),
        w2=0.1 * jax.random.normal(k[2], (8, 16, 3, 3), jnp.float32),
        b2=0.1 * jax.random.normal(k[3], (8,), jnp.float32),
        wfc=0.05 * jax.random.normal(k[4], (10, 8 * 7 * 7), jnp.float32),
        bfc=0.05 * jax.random.normal(k[5], (10,), jnp.float32),
    )


def pack_params(p):
    """One-time repack of torch-layout weights into kernel-friendly matrices."""
    w1 = np.asarray(p["w1"]); b1 = np.asarray(p["b1"])
    w2 = np.asarray(p["w2"]); b2 = np.asarray(p["b2"])
    wfc = np.asarray(p["wfc"]); bfc = np.asarray(p["bfc"])

    # conv1 banded weights: (5, 32, 32*16): [u, wp, j*16+co] = w1[co,0,u,wp-j]
    w1p = np.zeros((5, 32, 32 * 16), np.float32)
    for u in range(5):
        for j in range(28):
            for v in range(5):
                w1p[u, j + v, j * 16:(j + 1) * 16] = w1[:, 0, u, v]
    b1p = np.tile(b1, 32)[None, :]                       # (1, 512)

    # conv2 banded weights: (3, 256, 112): [u, wp*16+ci, j*8+co] = w2[co,ci,u,wp-j]
    w2p = np.zeros((3, 256, 112), np.float32)
    for u in range(3):
        for j in range(14):
            for v in range(3):
                wp = j + v
                for ci in range(16):
                    w2p[u, wp * 16 + ci, j * 8:(j + 1) * 8] = w2[:, ci, u, v]
    b2p = np.tile(b2, 14)[None, :]                       # (1, 112)

    # fc weights regrouped per pooled row h (NCHW flatten order folded in)
    wf = np.zeros((7, 56, 10), np.float32)
    for h in range(7):
        for w in range(7):
            for c in range(8):
                wf[h, w * 8 + c, :] = wfc[:, c * 49 + h * 7 + w]
    return dict(w1p=jnp.asarray(w1p), b1p=jnp.asarray(b1p),
                w2p=jnp.asarray(w2p), b2p=jnp.asarray(b2p),
                wf=jnp.asarray(wf), bfc=jnp.asarray(bfc[None, :]))


# --------------------------------- forward ---------------------------------- #

def cnn_forward(packed, img):
    """img: (B, 1, 28, 28) float32, same convention as the torch module."""
    B = img.shape[0]
    assert img.shape[1:] == (1, 28, 28)
    # Layout plumbing only: zero-pad and present rows=(b, padded row), lanes=w.
    x1 = jnp.pad(img.reshape(B, 28, 28), ((0, 0), (2, 2), (2, 2)))
    x1 = x1.reshape(B * 32, 32).astype(jnp.float32)
    s = _selection_mats(B)
    return pl.pallas_call(
        _cnn_fused_kernel,
        out_shape=jax.ShapeDtypeStruct((B, 10), jnp.float32),
    )(x1,
      packed["w1p"], s["sh1"], packed["b1p"],
      s["pr1e"], s["pr1o"], s["pc1e"], s["pc1o"],
      packed["w2p"], s["sh2"], packed["b2p"],
      s["pr2e"], s["pr2o"], s["pc2e"], s["pc2o"],
      s["fs"], packed["wf"], packed["bfc"])


# ------------------------- pure-JAX reference (check) ----------------------- #

def _reference_forward(p, img):
    x = lax.conv_general_dilated(img, p["w1"], (1, 1), ((2, 2), (2, 2)),
                                 dimension_numbers=("NCHW", "OIHW", "NCHW"))
    x = jnp.maximum(x + p["b1"][None, :, None, None], 0.0)
    B, C, H, W = x.shape
    x = x.reshape(B, C, H // 2, 2, W // 2, 2).max(axis=(3, 5))
    x = lax.conv_general_dilated(x, p["w2"], (1, 1), ((1, 1), (1, 1)),
                                 dimension_numbers=("NCHW", "OIHW", "NCHW"))
    x = jnp.maximum(x + p["b2"][None, :, None, None], 0.0)
    B, C, H, W = x.shape
    x = x.reshape(B, C, H // 2, 2, W // 2, 2).max(axis=(3, 5))
    x = x.reshape(B, -1)
    return x @ p["wfc"].T + p["bfc"]


if __name__ == "__main__":
    key = jax.random.PRNGKey(0)
    pkey, xkey = jax.random.split(key)
    params = init_params(pkey)
    packed = pack_params(params)
    img = jax.random.normal(xkey, (2, 1, 28, 28), jnp.float32)

    out = jax.jit(cnn_forward)(packed, img)
    jax.block_until_ready(out)
    assert out.shape == (2, 10) and out.dtype == jnp.float32

    ref = _reference_forward(params, img)
    max_err = float(jnp.max(jnp.abs(out - ref)))
    assert max_err < 3e-2, f"mismatch vs reference: max|err|={max_err}"
    print("KERNEL_OK")
</pallas_src>

<mosaic_0001>
module attributes {stable_mosaic.version = 11 : i64} {
  func.func @_cnn_fused_kernel(%arg0: memref<64x32xf32, #tpu.memory_space<vmem>>, %arg1: memref<5x32x512xf32, #tpu.memory_space<vmem>>, %arg2: memref<5x64x64xf32, #tpu.memory_space<vmem>>, %arg3: memref<1x512xf32, #tpu.memory_space<vmem>>, %arg4: memref<32x64xf32, #tpu.memory_space<vmem>>, %arg5: memref<32x64xf32, #tpu.memory_space<vmem>>, %arg6: memref<512x256xf32, #tpu.memory_space<vmem>>, %arg7: memref<512x256xf32, #tpu.memory_space<vmem>>, %arg8: memref<3x256x112xf32, #tpu.memory_space<vmem>>, %arg9: memref<3x32x32xf32, #tpu.memory_space<vmem>>, %arg10: memref<1x112xf32, #tpu.memory_space<vmem>>, %arg11: memref<14x32xf32, #tpu.memory_space<vmem>>, %arg12: memref<14x32xf32, #tpu.memory_space<vmem>>, %arg13: memref<112x56xf32, #tpu.memory_space<vmem>>, %arg14: memref<112x56xf32, #tpu.memory_space<vmem>>, %arg15: memref<7x2x14xf32, #tpu.memory_space<vmem>>, %arg16: memref<7x56x10xf32, #tpu.memory_space<vmem>>, %arg17: memref<1x10xf32, #tpu.memory_space<vmem>>, %arg18: memref<2x10xf32, #tpu.memory_space<vmem>>) attributes {dimension_semantics = [], scalar_prefetch = 0 : i64, scratch_operands = 0 : i64, tpu.core_type = #tpu.core_type<tc>} {
    %c0 = arith.constant 0 : index
    %c0_0 = arith.constant 0 : index
    %0 = vector.load %arg0[%c0, %c0_0] : memref<64x32xf32, #tpu.memory_space<vmem>>, vector<64x32xf32>
    %c0_1 = arith.constant 0 : index
    %c0_2 = arith.constant 0 : index
    %c0_3 = arith.constant 0 : index
    %1 = vector.load %arg2[%c0_1, %c0_2, %c0_3] : memref<5x64x64xf32, #tpu.memory_space<vmem>>, vector<1x64x64xf32>
    %2 = vector.shape_cast %1 : vector<1x64x64xf32> to vector<64x64xf32>
    %cst = arith.constant dense<0.000000e+00> : vector<64x32xf32>
    %3 = tpu.matmul %2, %0, %cst {dimension_numbers = #tpu.dot_dimension_numbers<[1], [0], [0], [1], [0, 0, 1, 1], [], []>} : vector<64x64xf32>, vector<64x32xf32>, vector<64x32xf32> -> vector<64x32xf32>
    %c0_4 = arith.constant 0 : index
    %c0_5 = arith.constant 0 : index
    %c0_6 = arith.constant 0 : index
    %4 = vector.load %arg1[%c0_4, %c0_5, %c0_6] : memref<5x32x512xf32, #tpu.memory_space<vmem>>, vector<1x32x512xf32>
    %5 = vector.shape_cast %4 : vector<1x32x512xf32> to vector<32x512xf32>
    %cst_7 = arith.constant dense<0.000000e+00> : vector<64x512xf32>
    %6 = tpu.matmul %3, %5, %cst_7 {dimension_numbers = #tpu.dot_dimension_numbers<[1], [0], [0], [1], [0, 0, 1, 1], [], []>} : vector<64x32xf32>, vector<32x512xf32>, vector<64x512xf32> -> vector<64x512xf32>
    %c1 = arith.constant 1 : index
    %c0_8 = arith.constant 0 : index
    %c0_9 = arith.constant 0 : index
    %7 = vector.load %arg2[%c1, %c0_8, %c0_9] : memref<5x64x64xf32, #tpu.memory_space<vmem>>, vector<1x64x64xf32>
    %8 = vector.shape_cast %7 : vector<1x64x64xf32> to vector<64x64xf32>
    %cst_10 = arith.constant dense<0.000000e+00> : vector<64x32xf32>
    %9 = tpu.matmul %8, %0, %cst_10 {dimension_numbers = #tpu.dot_dimension_numbers<[1], [0], [0], [1], [0, 0, 1, 1], [], []>} : vector<64x64xf32>, vector<64x32xf32>, vector<64x32xf32> -> vector<64x32xf32>
    %c1_11 = arith.constant 1 : index
    %c0_12 = arith.constant 0 : index
    %c0_13 = arith.constant 0 : index
    %10 = vector.load %arg1[%c1_11, %c0_12, %c0_13] : memref<5x32x512xf32, #tpu.memory_space<vmem>>, vector<1x32x512xf32>
    %11 = vector.shape_cast %10 : vector<1x32x512xf32> to vector<32x512xf32>
    %cst_14 = arith.constant dense<0.000000e+00> : vector<64x512xf32>
    %12 = tpu.matmul %9, %11, %cst_14 {dimension_numbers = #tpu.dot_dimension_numbers<[1], [0], [0], [1], [0, 0, 1, 1], [], []>} : vector<64x32xf32>, vector<32x512xf32>, vector<64x512xf32> -> vector<64x512xf32>
    %13 = arith.addf %6, %12 : vector<64x512xf32>
    %c2 = arith.constant 2 : index
    %c0_15 = arith.constant 0 : index
    %c0_16 = arith.constant 0 : index
    %14 = vector.load %arg2[%c2, %c0_15, %c0_16] : memref<5x64x64xf32, #tpu.memory_space<vmem>>, vector<1x64x64xf32>
    %15 = vector.shape_cast %14 : vector<1x64x64xf32> to vector<64x64xf32>
    %cst_17 = arith.constant dense<0.000000e+00> : vector<64x32xf32>
    %16 = tpu.matmul %15, %0, %cst_17 {dimension_numbers = #tpu.dot_dimension_numbers<[1], [0], [0], [1], [0, 0, 1, 1], [], []>} : vector<64x64xf32>, vector<64x32xf32>, vector<64x32xf32> -> vector<64x32xf32>
    %c2_18 = arith.constant 2 : index
    %c0_19 = arith.constant 0 : index
    %c0_20 = arith.constant 0 : index
    %17 = vector.load %arg1[%c2_18, %c0_19, %c0_20] : memref<5x32x512xf32, #tpu.memory_space<vmem>>, vector<1x32x512xf32>
    %18 = vector.shape_cast %17 : vector<1x32x512xf32> to vector<32x512xf32>
    %cst_21 = arith.constant dense<0.000000e+00> : vector<64x512xf32>
    %19 = tpu.matmul %16, %18, %cst_21 {dimension_numbers = #tpu.dot_dimension_numbers<[1], [0], [0], [1], [0, 0, 1, 1], [], []>} : vector<64x32xf32>, vector<32x512xf32>, vector<64x512xf32> -> vector<64x512xf32>
    %20 = arith.addf %13, %19 : vector<64x512xf32>
    %c3 = arith.constant 3 : index
    %c0_22 = arith.constant 0 : index
    %c0_23 = arith.constant 0 : index
    %21 = vector.load %arg2[%c3, %c0_22, %c0_23] : memref<5x64x64xf32, #tpu.memory_space<vmem>>, vector<1x64x64xf32>
    %22 = vector.shape_cast %21 : vector<1x64x64xf32> to vector<64x64xf32>
    %cst_24 = arith.constant dense<0.000000e+00> : vector<64x32xf32>
    %23 = tpu.matmul %22, %0, %cst_24 {dimension_numbers = #tpu.dot_dimension_numbers<[1], [0], [0], [1], [0, 0, 1, 1], [], []>} : vector<64x64xf32>, vector<64x32xf32>, vector<64x32xf32> -> vector<64x32xf32>
    %c3_25 = arith.constant 3 : index
    %c0_26 = arith.constant 0 : index
    %c0_27 = arith.constant 0 : index
    %24 = vector.load %arg1[%c3_25, %c0_26, %c0_27] : memref<5x32x512xf32, #tpu.memory_space<vmem>>, vector<1x32x512xf32>
    %25 = vector.shape_cast %24 : vector<1x32x512xf32> to vector<32x512xf32>
    %cst_28 = arith.constant dense<0.000000e+00> : vector<64x512xf32>
    %26 = tpu.matmul %23, %25, %cst_28 {dimension_numbers = #tpu.dot_dimension_numbers<[1], [0], [0], [1], [0, 0, 1, 1], [], []>} : vector<64x32xf32>, vector<32x512xf32>, vector<64x512xf32> -> vector<64x512xf32>
    %27 = arith.addf %20, %26 : vector<64x512xf32>
    %c4 = arith.constant 4 : index
    %c0_29 = arith.constant 0 : index
    %c0_30 = arith.constant 0 : index
    %28 = vector.load %arg2[%c4, %c0_29, %c0_30] : memref<5x64x64xf32, #tpu.memory_space<vmem>>, vector<1x64x64xf32>
    %29 = vector.shape_cast %28 : vector<1x64x64xf32> to vector<64x64xf32>
    %cst_31 = arith.constant dense<0.000000e+00> : vector<64x32xf32>
    %30 = tpu.matmul %29, %0, %cst_31 {dimension_numbers = #tpu.dot_dimension_numbers<[1], [0], [0], [1], [0, 0, 1, 1], [], []>} : vector<64x64xf32>, vector<64x32xf32>, vector<64x32xf32> -> vector<64x32xf32>
    %c4_32 = arith.constant 4 : index
    %c0_33 = arith.constant 0 : index
    %c0_34 = arith.constant 0 : index
    %31 = vector.load %arg1[%c4_32, %c0_33, %c0_34] : memref<5x32x512xf32, #tpu.memory_space<vmem>>, vector<1x32x512xf32>
    %32 = vector.shape_cast %31 : vector<1x32x512xf32> to vector<32x512xf32>
    %cst_35 = arith.constant dense<0.000000e+00> : vector<64x512xf32>
    %33 = tpu.matmul %30, %32, %cst_35 {dimension_numbers = #tpu.dot_dimension_numbers<[1], [0], [0], [1], [0, 0, 1, 1], [], []>} : vector<64x32xf32>, vector<32x512xf32>, vector<64x512xf32> -> vector<64x512xf32>
    %34 = arith.addf %27, %33 : vector<64x512xf32>
    %c0_36 = arith.constant 0 : index
    %c0_37 = arith.constant 0 : index
    %35 = vector.load %arg3[%c0_36, %c0_37] : memref<1x512xf32, #tpu.memory_space<vmem>>, vector<1x512xf32>
    %36 = vector.broadcast %35 : vector<1x512xf32> to vector<64x512xf32>
    %37 = arith.addf %34, %36 : vector<64x512xf32>
    %cst_38 = arith.constant 0.000000e+00 : f32
    %38 = vector.broadcast %cst_38 : f32 to vector<64x512xf32>
    %39 = arith.maximumf %37, %38 : vector<64x512xf32>
    %c0_39 = arith.constant 0 : index
    %c0_40 = arith.constant 0 : index
    %40 = vector.load %arg4[%c0_39, %c0_40] : memref<32x64xf32, #tpu.memory_space<vmem>>, vector<32x64xf32>
    %cst_41 = arith.constant dense<0.000000e+00> : vector<32x512xf32>
    %41 = tpu.matmul %40, %39, %cst_41 {dimension_numbers = #tpu.dot_dimension_numbers<[1], [0], [0], [1], [0, 0, 1, 1], [], []>} : vector<32x64xf32>, vector<64x512xf32>, vector<32x512xf32> -> vector<32x512xf32>
    %c0_42 = arith.constant 0 : index
    %c0_43 = arith.constant 0 : index
    %42 = vector.load %arg5[%c0_42, %c0_43] : memref<32x64xf32, #tpu.memory_space<vmem>>, vector<32x64xf32>
    %cst_44 = arith.constant dense<0.000000e+00> : vector<32x512xf32>
    %43 = tpu.matmul %42, %39, %cst_44 {dimension_numbers = #tpu.dot_dimension_numbers<[1], [0], [0], [1], [0, 0, 1, 1], [], []>} : vector<32x64xf32>, vector<64x512xf32>, vector<32x512xf32> -> vector<32x512xf32>
    %44 = arith.maximumf %41, %43 : vector<32x512xf32>
    %c0_45 = arith.constant 0 : index
    %c0_46 = arith.constant 0 : index
    %45 = vector.load %arg6[%c0_45, %c0_46] : memref<512x256xf32, #tpu.memory_space<vmem>>, vector<512x256xf32>
    %cst_47 = arith.constant dense<0.000000e+00> : vector<32x256xf32>
    %46 = tpu.matmul %44, %45, %cst_47 {dimension_numbers = #tpu.dot_dimension_numbers<[1], [0], [0], [1], [0, 0, 1, 1], [], []>} : vector<32x512xf32>, vector<512x256xf32>, vector<32x256xf32> -> vector<32x256xf32>
    %c0_48 = arith.constant 0 : index
    %c0_49 = arith.constant 0 : index
    %47 = vector.load %arg7[%c0_48, %c0_49] : memref<512x256xf32, #tpu.memory_space<vmem>>, vector<512x256xf32>
    %cst_50 = arith.constant dense<0.000000e+00> : vector<32x256xf32>
    %48 = tpu.matmul %44, %47, %cst_50 {dimension_numbers = #tpu.dot_dimension_numbers<[1], [0], [0], [1], [0, 0, 1, 1], [], []>} : vector<32x512xf32>, vector<512x256xf32>, vector<32x256xf32> -> vector<32x256xf32>
    %49 = arith.maximumf %46, %48 : vector<32x256xf32>
    %c0_51 = arith.constant 0 : index
    %c0_52 = arith.constant 0 : index
    %c0_53 = arith.constant 0 : index
    %50 = vector.load %arg9[%c0_51, %c0_52, %c0_53] : memref<3x32x32xf32, #tpu.memory_space<vmem>>, vector<1x32x32xf32>
    %51 = vector.shape_cast %50 : vector<1x32x32xf32> to vector<32x32xf32>
    %cst_54 = arith.constant dense<0.000000e+00> : vector<32x256xf32>
    %52 = tpu.matmul %51, %49, %cst_54 {dimension_numbers = #tpu.dot_dimension_numbers<[1], [0], [0], [1], [0, 0, 1, 1], [], []>} : vector<32x32xf32>, vector<32x256xf32>, vector<32x256xf32> -> vector<32x256xf32>
    %c0_55 = arith.constant 0 : index
    %c0_56 = arith.constant 0 : index
    %c0_57 = arith.constant 0 : index
    %53 = vector.load %arg8[%c0_55, %c0_56, %c0_57] : memref<3x256x112xf32, #tpu.memory_space<vmem>>, vector<1x256x112xf32>
    %54 = vector.shape_cast %53 : vector<1x256x112xf32> to vector<256x112xf32>
    %cst_58 = arith.constant dense<0.000000e+00> : vector<32x112xf32>
    %55 = tpu.matmul %52, %54, %cst_58 {dimension_numbers = #tpu.dot_dimension_numbers<[1], [0], [0], [1], [0, 0, 1, 1], [], []>} : vector<32x256xf32>, vector<256x112xf32>, vector<32x112xf32> -> vector<32x112xf32>
    %c1_59 = arith.constant 1 : index
    %c0_60 = arith.constant 0 : index
    %c0_61 = arith.constant 0 : index
    %56 = vector.load %arg9[%c1_59, %c0_60, %c0_61] : memref<3x32x32xf32, #tpu.memory_space<vmem>>, vector<1x32x32xf32>
    %57 = vector.shape_cast %56 : vector<1x32x32xf32> to vector<32x32xf32>
    %cst_62 = arith.constant dense<0.000000e+00> : vector<32x256xf32>
    %58 = tpu.matmul %57, %49, %cst_62 {dimension_numbers = #tpu.dot_dimension_numbers<[1], [0], [0], [1], [0, 0, 1, 1], [], []>} : vector<32x32xf32>, vector<32x256xf32>, vector<32x256xf32> -> vector<32x256xf32>
    %c1_63 = arith.constant 1 : index
    %c0_64 = arith.constant 0 : index
    %c0_65 = arith.constant 0 : index
    %59 = vector.load %arg8[%c1_63, %c0_64, %c0_65] : memref<3x256x112xf32, #tpu.memory_space<vmem>>, vector<1x256x112xf32>
    %60 = vector.shape_cast %59 : vector<1x256x112xf32> to vector<256x112xf32>
    %cst_66 = arith.constant dense<0.000000e+00> : vector<32x112xf32>
    %61 = tpu.matmul %58, %60, %cst_66 {dimension_numbers = #tpu.dot_dimension_numbers<[1], [0], [0], [1], [0, 0, 1, 1], [], []>} : vector<32x256xf32>, vector<256x112xf32>, vector<32x112xf32> -> vector<32x112xf32>
    %62 = arith.addf %55, %61 : vector<32x112xf32>
    %c2_67 = arith.constant 2 : index
    %c0_68 = arith.constant 0 : index
    %c0_69 = arith.constant 0 : index
    %63 = vector.load %arg9[%c2_67, %c0_68, %c0_69] : memref<3x32x32xf32, #tpu.memory_space<vmem>>, vector<1x32x32xf32>
    %64 = vector.shape_cast %63 : vector<1x32x32xf32> to vector<32x32xf32>
    %cst_70 = arith.constant dense<0.000000e+00> : vector<32x256xf32>
    %65 = tpu.matmul %64, %49, %cst_70 {dimension_numbers = #tpu.dot_dimension_numbers<[1], [0], [0], [1], [0, 0, 1, 1], [], []>} : vector<32x32xf32>, vector<32x256xf32>, vector<32x256xf32> -> vector<32x256xf32>
    %c2_71 = arith.constant 2 : index
    %c0_72 = arith.constant 0 : index
    %c0_73 = arith.constant 0 : index
    %66 = vector.load %arg8[%c2_71, %c0_72, %c0_73] : memref<3x256x112xf32, #tpu.memory_space<vmem>>, vector<1x256x112xf32>
    %67 = vector.shape_cast %66 : vector<1x256x112xf32> to vector<256x112xf32>
    %cst_74 = arith.constant dense<0.000000e+00> : vector<32x112xf32>
    %68 = tpu.matmul %65, %67, %cst_74 {dimension_numbers = #tpu.dot_dimension_numbers<[1], [0], [0], [1], [0, 0, 1, 1], [], []>} : vector<32x256xf32>, vector<256x112xf32>, vector<32x112xf32> -> vector<32x112xf32>
    %69 = arith.addf %62, %68 : vector<32x112xf32>
    %c0_75 = arith.constant 0 : index
    %c0_76 = arith.constant 0 : index
    %70 = vector.load %arg10[%c0_75, %c0_76] : memref<1x112xf32, #tpu.memory_space<vmem>>, vector<1x112xf32>
    %71 = vector.broadcast %70 : vector<1x112xf32> to vector<32x112xf32>
    %72 = arith.addf %69, %71 : vector<32x112xf32>
    %cst_77 = arith.constant 0.000000e+00 : f32
    %73 = vector.broadcast %cst_77 : f32 to vector<32x112xf32>
    %74 = arith.maximumf %72, %73 : vector<32x112xf32>
    %c0_78 = arith.constant 0 : index
    %c0_79 = arith.constant 0 : index
    %75 = vector.load %arg11[%c0_78, %c0_79] : memref<14x32xf32, #tpu.memory_space<vmem>>, vector<14x32xf32>
    %cst_80 = arith.constant dense<0.000000e+00> : vector<14x112xf32>
    %76 = tpu.matmul %75, %74, %cst_80 {dimension_numbers = #tpu.dot_dimension_numbers<[1], [0], [0], [1], [0, 0, 1, 1], [], []>} : vector<14x32xf32>, vector<32x112xf32>, vector<14x112xf32> -> vector<14x112xf32>
    %c0_81 = arith.constant 0 : index
    %c0_82 = arith.constant 0 : index
    %77 = vector.load %arg12[%c0_81, %c0_82] : memref<14x32xf32, #tpu.memory_space<vmem>>, vector<14x32xf32>
    %cst_83 = arith.constant dense<0.000000e+00> : vector<14x112xf32>
    %78 = tpu.matmul %77, %74, %cst_83 {dimension_numbers = #tpu.dot_dimension_numbers<[1], [0], [0], [1], [0, 0, 1, 1], [], []>} : vector<14x32xf32>, vector<32x112xf32>, vector<14x112xf32> -> vector<14x112xf32>
    %79 = arith.maximumf %76, %78 : vector<14x112xf32>
    %c0_84 = arith.constant 0 : index
    %c0_85 = arith.constant 0 : index
    %80 = vector.load %arg13[%c0_84, %c0_85] : memref<112x56xf32, #tpu.memory_space<vmem>>, vector<112x56xf32>
    %cst_86 = arith.constant dense<0.000000e+00> : vector<14x56xf32>
    %81 = tpu.matmul %79, %80, %cst_86 {dimension_numbers = #tpu.dot_dimension_numbers<[1], [0], [0], [1], [0, 0, 1, 1], [], []>} : vector<14x112xf32>, vector<112x56xf32>, vector<14x56xf32> -> vector<14x56xf32>
    %c0_87 = arith.constant 0 : index
    %c0_88 = arith.constant 0 : index
    %82 = vector.load %arg14[%c0_87, %c0_88] : memref<112x56xf32, #tpu.memory_space<vmem>>, vector<112x56xf32>
    %cst_89 = arith.constant dense<0.000000e+00> : vector<14x56xf32>
    %83 = tpu.matmul %79, %82, %cst_89 {dimension_numbers = #tpu.dot_dimension_numbers<[1], [0], [0], [1], [0, 0, 1, 1], [], []>} : vector<14x112xf32>, vector<112x56xf32>, vector<14x56xf32> -> vector<14x56xf32>
    %84 = arith.maximumf %81, %83 : vector<14x56xf32>
    %cst_90 = arith.constant 0.000000e+00 : f32
    %85 = vector.broadcast %cst_90 : f32 to vector<2x10xf32>
    %c0_91 = arith.constant 0 : index
    %c0_92 = arith.constant 0 : index
    %c0_93 = arith.constant 0 : index
    %86 = vector.load %arg15[%c0_91, %c0_92, %c0_93] : memref<7x2x14xf32, #tpu.memory_space<vmem>>, vector<1x2x14xf32>
    %87 = vector.shape_cast %86 : vector<1x2x14xf32> to vector<2x14xf32>
    %cst_94 = arith.constant dense<0.000000e+00> : vector<2x56xf32>
    %88 = tpu.matmul %87, %84, %cst_94 {dimension_numbers = #tpu.dot_dimension_numbers<[1], [0], [0], [1], [0, 0, 1, 1], [], []>} : vector<2x14xf32>, vector<14x56xf32>, vector<2x56xf32> -> vector<2x56xf32>
    %c0_95 = arith.constant 0 : index
    %c0_96 = arith.constant 0 : index
    %c0_97 = arith.constant 0 : index
    %89 = vector.load %arg16[%c0_95, %c0_96, %c0_97] : memref<7x56x10xf32, #tpu.memory_space<vmem>>, vector<1x56x10xf32>
    %90 = vector.shape_cast %89 : vector<1x56x10xf32> to vector<56x10xf32>
    %cst_98 = arith.constant dense<0.000000e+00> : vector<2x10xf32>
    %91 = tpu.matmul %88, %90, %cst_98 {dimension_numbers = #tpu.dot_dimension_numbers<[1], [0], [0], [1], [0, 0, 1, 1], [], []>} : vector<2x56xf32>, vector<56x10xf32>, vector<2x10xf32> -> vector<2x10xf32>
    %92 = arith.addf %85, %91 : vector<2x10xf32>
    %c1_99 = arith.constant 1 : index
    %c0_100 = arith.constant 0 : index
    %c0_101 = arith.constant 0 : index
    %93 = vector.load %arg15[%c1_99, %c0_100, %c0_101] : memref<7x2x14xf32, #tpu.memory_space<vmem>>, vector<1x2x14xf32>
    %94 = vector.shape_cast %93 : vector<1x2x14xf32> to vector<2x14xf32>
    %cst_102 = arith.constant dense<0.000000e+00> : vector<2x56xf32>
    %95 = tpu.matmul %94, %84, %cst_102 {dimension_numbers = #tpu.dot_dimension_numbers<[1], [0], [0], [1], [0, 0, 1, 1], [], []>} : vector<2x14xf32>, vector<14x56xf32>, vector<2x56xf32> -> vector<2x56xf32>
    %c1_103 = arith.constant 1 : index
    %c0_104 = arith.constant 0 : index
    %c0_105 = arith.constant 0 : index
    %96 = vector.load %arg16[%c1_103, %c0_104, %c0_105] : memref<7x56x10xf32, #tpu.memory_space<vmem>>, vector<1x56x10xf32>
    %97 = vector.shape_cast %96 : vector<1x56x10xf32> to vector<56x10xf32>
    %cst_106 = arith.constant dense<0.000000e+00> : vector<2x10xf32>
    %98 = tpu.matmul %95, %97, %cst_106 {dimension_numbers = #tpu.dot_dimension_numbers<[1], [0], [0], [1], [0, 0, 1, 1], [], []>} : vector<2x56xf32>, vector<56x10xf32>, vector<2x10xf32> -> vector<2x10xf32>
    %99 = arith.addf %92, %98 : vector<2x10xf32>
    %c2_107 = arith.constant 2 : index
    %c0_108 = arith.constant 0 : index
    %c0_109 = arith.constant 0 : index
    %100 = vector.load %arg15[%c2_107, %c0_108, %c0_109] : memref<7x2x14xf32, #tpu.memory_space<vmem>>, vector<1x2x14xf32>
    %101 = vector.shape_cast %100 : vector<1x2x14xf32> to vector<2x14xf32>
    %cst_110 = arith.constant dense<0.000000e+00> : vector<2x56xf32>
    %102 = tpu.matmul %101, %84, %cst_110 {dimension_numbers = #tpu.dot_dimension_numbers<[1], [0], [0], [1], [0, 0, 1, 1], [], []>} : vector<2x14xf32>, vector<14x56xf32>, vector<2x56xf32> -> vector<2x56xf32>
    %c2_111 = arith.constant 2 : index
    %c0_112 = arith.constant 0 : index
    %c0_113 = arith.constant 0 : index
    %103 = vector.load %arg16[%c2_111, %c0_112, %c0_113] : memref<7x56x10xf32, #tpu.memory_space<vmem>>, vector<1x56x10xf32>
    %104 = vector.shape_cast %103 : vector<1x56x10xf32> to vector<56x10xf32>
    %cst_114 = arith.constant dense<0.000000e+00> : vector<2x10xf32>
    %105 = tpu.matmul %102, %104, %cst_114 {dimension_numbers = #tpu.dot_dimension_numbers<[1], [0], [0], [1], [0, 0, 1, 1], [], []>} : vector<2x56xf32>, vector<56x10xf32>, vector<2x10xf32> -> vector<2x10xf32>
    %106 = arith.addf %99, %105 : vector<2x10xf32>
    %c3_115 = arith.constant 3 : index
    %c0_116 = arith.constant 0 : index
    %c0_117 = arith.constant 0 : index
    %107 = vector.load %arg15[%c3_115, %c0_116, %c0_117] : memref<7x2x14xf32, #tpu.memory_space<vmem>>, vector<1x2x14xf32>
    %108 = vector.shape_cast %107 : vector<1x2x14xf32> to vector<2x14xf32>
    %cst_118 = arith.constant dense<0.000000e+00> : vector<2x56xf32>
    %109 = tpu.matmul %108, %84, %cst_118 {dimension_numbers = #tpu.dot_dimension_numbers<[1], [0], [0], [1], [0, 0, 1, 1], [], []>} : vector<2x14xf32>, vector<14x56xf32>, vector<2x56xf32> -> vector<2x56xf32>
    %c3_119 = arith.constant 3 : index
    %c0_120 = arith.constant 0 : index
    %c0_121 = arith.constant 0 : index
    %110 = vector.load %arg16[%c3_119, %c0_120, %c0_121] : memref<7x56x10xf32, #tpu.memory_space<vmem>>, vector<1x56x10xf32>
    %111 = vector.shape_cast %110 : vector<1x56x10xf32> to vector<56x10xf32>
    %cst_122 = arith.constant dense<0.000000e+00> : vector<2x10xf32>
    %112 = tpu.matmul %109, %111, %cst_122 {dimension_numbers = #tpu.dot_dimension_numbers<[1], [0], [0], [1], [0, 0, 1, 1], [], []>} : vector<2x56xf32>, vector<56x10xf32>, vector<2x10xf32> -> vector<2x10xf32>
    %113 = arith.addf %106, %112 : vector<2x10xf32>
    %c4_123 = arith.constant 4 : index
    %c0_124 = arith.constant 0 : index
    %c0_125 = arith.constant 0 : index
    %114 = vector.load %arg15[%c4_123, %c0_124, %c0_125] : memref<7x2x14xf32, #tpu.memory_space<vmem>>, vector<1x2x14xf32>
    %115 = vector.shape_cast %114 : vector<1x2x14xf32> to vector<2x14xf32>
    %cst_126 = arith.constant dense<0.000000e+00> : vector<2x56xf32>
    %116 = tpu.matmul %115, %84, %cst_126 {dimension_numbers = #tpu.dot_dimension_numbers<[1], [0], [0], [1], [0, 0, 1, 1], [], []>} : vector<2x14xf32>, vector<14x56xf32>, vector<2x56xf32> -> vector<2x56xf32>
    %c4_127 = arith.constant 4 : index
    %c0_128 = arith.constant 0 : index
    %c0_129 = arith.constant 0 : index
    %117 = vector.load %arg16[%c4_127, %c0_128, %c0_129] : memref<7x56x10xf32, #tpu.memory_space<vmem>>, vector<1x56x10xf32>
    %118 = vector.shape_cast %117 : vector<1x56x10xf32> to vector<56x10xf32>
    %cst_130 = arith.constant dense<0.000000e+00> : vector<2x10xf32>
    %119 = tpu.matmul %116, %118, %cst_130 {dimension_numbers = #tpu.dot_dimension_numbers<[1], [0], [0], [1], [0, 0, 1, 1], [], []>} : vector<2x56xf32>, vector<56x10xf32>, vector<2x10xf32> -> vector<2x10xf32>
    %120 = arith.addf %113, %119 : vector<2x10xf32>
    %c5 = arith.constant 5 : index
    %c0_131 = arith.constant 0 : index
    %c0_132 = arith.constant 0 : index
    %121 = vector.load %arg15[%c5, %c0_131, %c0_132] : memref<7x2x14xf32, #tpu.memory_space<vmem>>, vector<1x2x14xf32>
    %122 = vector.shape_cast %121 : vector<1x2x14xf32> to vector<2x14xf32>
    %cst_133 = arith.constant dense<0.000000e+00> : vector<2x56xf32>
    %123 = tpu.matmul %122, %84, %cst_133 {dimension_numbers = #tpu.dot_dimension_numbers<[1], [0], [0], [1], [0, 0, 1, 1], [], []>} : vector<2x14xf32>, vector<14x56xf32>, vector<2x56xf32> -> vector<2x56xf32>
    %c5_134 = arith.constant 5 : index
    %c0_135 = arith.constant 0 : index
    %c0_136 = arith.constant 0 : index
    %124 = vector.load %arg16[%c5_134, %c0_135, %c0_136] : memref<7x56x10xf32, #tpu.memory_space<vmem>>, vector<1x56x10xf32>
    %125 = vector.shape_cast %124 : vector<1x56x10xf32> to vector<56x10xf32>
    %cst_137 = arith.constant dense<0.000000e+00> : vector<2x10xf32>
    %126 = tpu.matmul %123, %125, %cst_137 {dimension_numbers = #tpu.dot_dimension_numbers<[1], [0], [0], [1], [0, 0, 1, 1], [], []>} : vector<2x56xf32>, vector<56x10xf32>, vector<2x10xf32> -> vector<2x10xf32>
    %127 = arith.addf %120, %126 : vector<2x10xf32>
    %c6 = arith.constant 6 : index
    %c0_138 = arith.constant 0 : index
    %c0_139 = arith.constant 0 : index
    %128 = vector.load %arg15[%c6, %c0_138, %c0_139] : memref<7x2x14xf32, #tpu.memory_space<vmem>>, vector<1x2x14xf32>
    %129 = vector.shape_cast %128 : vector<1x2x14xf32> to vector<2x14xf32>
    %cst_140 = arith.constant dense<0.000000e+00> : vector<2x56xf32>
    %130 = tpu.matmul %129, %84, %cst_140 {dimension_numbers = #tpu.dot_dimension_numbers<[1], [0], [0], [1], [0, 0, 1, 1], [], []>} : vector<2x14xf32>, vector<14x56xf32>, vector<2x56xf32> -> vector<2x56xf32>
    %c6_141 = arith.constant 6 : index
    %c0_142 = arith.constant 0 : index
    %c0_143 = arith.constant 0 : index
    %131 = vector.load %arg16[%c6_141, %c0_142, %c0_143] : memref<7x56x10xf32, #tpu.memory_space<vmem>>, vector<1x56x10xf32>
    %132 = vector.shape_cast %131 : vector<1x56x10xf32> to vector<56x10xf32>
    %cst_144 = arith.constant dense<0.000000e+00> : vector<2x10xf32>
    %133 = tpu.matmul %130, %132, %cst_144 {dimension_numbers = #tpu.dot_dimension_numbers<[1], [0], [0], [1], [0, 0, 1, 1], [], []>} : vector<2x56xf32>, vector<56x10xf32>, vector<2x10xf32> -> vector<2x10xf32>
    %134 = arith.addf %127, %133 : vector<2x10xf32>
    %c0_145 = arith.constant 0 : index
    %c0_146 = arith.constant 0 : index
    %135 = vector.load %arg17[%c0_145, %c0_146] : memref<1x10xf32, #tpu.memory_space<vmem>>, vector<1x10xf32>
    %136 = vector.broadcast %135 : vector<1x10xf32> to vector<2x10xf32>
    %137 = arith.addf %134, %136 : vector<2x10xf32>
    %c0_147 = arith.constant 0 : index
    %c0_148 = arith.constant 0 : index
    %138 = vector.load %arg18[%c0_147, %c0_148] : memref<2x10xf32, #tpu.memory_space<vmem>>, vector<2x10xf32>
    tpu.vector_store %arg18[%c0_147, %c0_148], %137 {strides = array<i32>} : memref<2x10xf32, #tpu.memory_space<vmem>>, vector<2x10xf32>,
    return
  }
}

</mosaic_0001>

<llo_original>
// kernel: cnn_forward.1
$region0: #{cnn_forward.1}
  #allocation0 [shape = 'u32[]', space=smem, size = 0x4, offset = 0x4, fixed_abs, tag = 'smem constant byte address 0x4 - core index']
  #allocation1 [shape = 'u32[72,128]{1,0:T(1,128)}', space=vmem, size = 0x9000, scoped, tag = 'internal scratch']
  %s0 = inlined_call_operand.vmem [shape: f32[64,32], index: 0, kind: input, shape index: {}]
  %s1 = inlined_call_operand.hbm [shape: f32[5,32,512], index: 1, kind: input, shape index: {}]
  %s2 = inlined_call_operand.vmem [shape: f32[5,64,64], index: 2, kind: input, shape index: {}]
  %s3 = inlined_call_operand.vmem [shape: f32[1,512], index: 3, kind: input, shape index: {}]
  %s4 = inlined_call_operand.hbm [shape: f32[32,64], index: 4, kind: input, shape index: {}]
  %s5 = inlined_call_operand.vmem [shape: f32[32,64], index: 5, kind: input, shape index: {}]
  %s6 = inlined_call_operand.hbm [shape: f32[512,256], index: 6, kind: input, shape index: {}]
  %s7 = inlined_call_operand.vmem [shape: f32[512,256], index: 7, kind: input, shape index: {}]
  %s8 = inlined_call_operand.vmem [shape: f32[3,256,112], index: 8, kind: input, shape index: {}]
  %s9 = inlined_call_operand.hbm [shape: f32[3,32,32], index: 9, kind: input, shape index: {}]
  %s10 = inlined_call_operand.vmem [shape: f32[1,112], index: 10, kind: input, shape index: {}]
  %s11 = inlined_call_operand.hbm [shape: f32[14,32], index: 11, kind: input, shape index: {}]
  %s12 = inlined_call_operand.hbm [shape: f32[14,32], index: 12, kind: input, shape index: {}]
  %s13 = inlined_call_operand.vmem [shape: f32[112,56], index: 13, kind: input, shape index: {}]
  %s14 = inlined_call_operand.vmem [shape: f32[112,56], index: 14, kind: input, shape index: {}]
  %s15 = inlined_call_operand.hbm [shape: f32[7,2,14], index: 15, kind: input, shape index: {}]
  %s16 = inlined_call_operand.vmem [shape: f32[7,56,10], index: 16, kind: input, shape index: {}]
  %s17 = inlined_call_operand.hbm [shape: f32[1,10], index: 17, kind: input, shape index: {}]
  %s18 = inlined_call_operand.hbm [shape: f32[2,10], index: 18, kind: output, shape index: {}]
  %s19 = sld [smem:[#allocation0]]
  $region114: #{cnn_forward.1} parent=0
    _
  %s21 = ssub.s32 1, %s19
  %s22 = scalar_select 0, %s21, %s19
  $region1: #{cnn_forward.1} parent=0
    #allocation2 [shape = 'u8[327680]{0}', space=vmem, size = 0x50000, scoped, tag = 'input window, operand 1, single buffered']
    #allocation3 [shape = 's32[1]{0}', space=sflag, size = 0x4, scoped, tag = 'scoped memory for cnn_forward.1']
    #allocation4 [shape = 's32[1]{0}', space=sflag, size = 0x4, scoped, tag = 'scoped memory for cnn_forward.1']
    #allocation5 [shape = 'u8[16384]{0}', space=vmem, size = 0x4000, scoped, tag = 'input window, operand 4, single buffered']
    #allocation6 [shape = 's32[1]{0}', space=sflag, size = 0x4, scoped, tag = 'scoped memory for cnn_forward.1']
    #allocation7 [shape = 'u8[524288]{0}', space=vmem, size = 0x80000, scoped, tag = 'input window, operand 6, single buffered']
    #allocation8 [shape = 'u8[49152]{0}', space=vmem, size = 0xc000, scoped, tag = 'input window, operand 9, single buffered']
    #allocation9 [shape = 's32[1]{0}', space=sflag, size = 0x4, scoped, tag = 'scoped memory for cnn_forward.1']
    #allocation10 [shape = 'u8[8192]{0}', space=vmem, size = 0x2000, scoped, tag = 'input window, operand 11, single buffered']
    #allocation11 [shape = 'u8[8192]{0}', space=vmem, size = 0x2000, scoped, tag = 'input window, operand 12, single buffered']
    #allocation12 [shape = 's32[1]{0}', space=sflag, size = 0x4, scoped, tag = 'scoped memory for cnn_forward.1']
    #allocation13 [shape = 'u8[7168]{0}', space=vmem, size = 0x1c00, scoped, tag = 'input window, operand 15, single buffered']
    #allocation14 [shape = 'u8[512]{0}', space=vmem, size = 0x400, scoped, tag = 'input window, operand 17, single buffered']
    #allocation15 [shape = 's32[1]{0}', space=sflag, size = 0x4, scoped, tag = 'scoped memory for cnn_forward.1']
    #allocation16 [shape = 'u8[1024]{0}', space=vmem, size = 0x400, scoped, tag = 'output window, operand 0, single buffered']
    %23 = vsyncpa [#allocation3], 0
    %24 = vsyncpa [#allocation6], 0
    %25 = vsyncpa [#allocation9], 0
    %26 = vsyncpa [#allocation12], 0
    %27 = vsyncpa [#allocation15], 0
    %28 = vsyncpa [#allocation4], 0
    // Predicated region
    $region2: #{cnn_forward.1} parent=1 // pred_check
      _
    $region3: #{cnn_forward.1} parent=1 // pred_check_branch
      %30 = sbr.rel (0) target = $region5
    $region4: #{cnn_forward.1} parent=1 // pred_region
      _
    $region5: #{cnn_forward.1} parent=1 // pred_fallthru
      _
    // Predicated region
    $region6: #{cnn_forward.1} parent=1 // pred_check
      _
    $region7: #{cnn_forward.1} parent=1 // pred_check_branch
      %32 = sbr.rel (0) target = $region9
    $region8: #{cnn_forward.1} parent=1 // pred_region
      %34 = vsyncadd [#allocation3], 0
      %s35 = sshll.u32 %s1, 4
      %s36 = int_to_ptr.hbm [resolvable:$true] %s35
      %s37 = sshll.u32 [#allocation2], 4
      %s38 = int_to_ptr.vmem [resolvable:$true] %s37
      %43 = dma.hbm_to_vmem [thread:$0]  %s36, 10240, %s38, [#allocation3], 512, 512, 32
    $region9: #{cnn_forward.1} parent=1 // pred_fallthru
      _
    // Predicated region
    $region10: #{cnn_forward.1} parent=1 // pred_check
      _
    $region11: #{cnn_forward.1} parent=1 // pred_check_branch
      %45 = sbr.rel (0) target = $region13
    $region12: #{cnn_forward.1} parent=1 // pred_region
      _
    $region13: #{cnn_forward.1} parent=1 // pred_fallthru
      _
    // Predicated region
    $region14: #{cnn_forward.1} parent=1 // pred_check
      _
    $region15: #{cnn_forward.1} parent=1 // pred_check_branch
      %47 = sbr.rel (0) target = $region17
    $region16: #{cnn_forward.1} parent=1 // pred_region
      _
    $region17: #{cnn_forward.1} parent=1 // pred_fallthru
      _
    // Predicated region
    $region18: #{cnn_forward.1} parent=1 // pred_check
      _
    $region19: #{cnn_forward.1} parent=1 // pred_check_branch
      %49 = sbr.rel (0) target = $region21
    $region20: #{cnn_forward.1} parent=1 // pred_region
      %51 = vsyncadd [#allocation6], 0
      %s52 = sshll.u32 %s4, 4
      %s53 = int_to_ptr.hbm [resolvable:$true] %s52
      %s54 = sshll.u32 [#allocation5], 4
      %s55 = int_to_ptr.vmem [resolvable:$true] %s54
      %60 = dma.hbm_to_vmem [thread:$0]  %s53, 512, %s55, [#allocation6], 128, 128, 8
    $region21: #{cnn_forward.1} parent=1 // pred_fallthru
      _
    // Predicated region
    $region22: #{cnn_forward.1} parent=1 // pred_check
      _
    $region23: #{cnn_forward.1} parent=1 // pred_check_branch
      %62 = sbr.rel (0) target = $region25
    $region24: #{cnn_forward.1} parent=1 // pred_region
      _
    $region25: #{cnn_forward.1} parent=1 // pred_fallthru
      _
    // Predicated region
    $region26: #{cnn_forward.1} parent=1 // pred_check
      _
    $region27: #{cnn_forward.1} parent=1 // pred_check_branch
      %64 = sbr.rel (0) target = $region29
    $region28: #{cnn_forward.1} parent=1 // pred_region
      %66 = vsyncadd [#allocation6], 0
      %s67 = sshll.u32 %s6, 4
      %s68 = int_to_ptr.hbm [resolvable:$true] %s67
      %s69 = sshll.u32 [#allocation7], 4
      %s70 = int_to_ptr.vmem [resolvable:$true] %s69
      %75 = dma.hbm_to_vmem [thread:$0]  %s68, 16384, %s70, [#allocation6], 256, 256, 16
    $region29: #{cnn_forward.1} parent=1 // pred_fallthru
      _
    // Predicated region
    $region30: #{cnn_forward.1} parent=1 // pred_check
      _
    $region31: #{cnn_forward.1} parent=1 // pred_check_branch
      %77 = sbr.rel (0) target = $region33
    $region32: #{cnn_forward.1} parent=1 // pred_region
      _
    $region33: #{cnn_forward.1} parent=1 // pred_fallthru
      _
    // Predicated region
    $region34: #{cnn_forward.1} parent=1 // pred_check
      _
    $region35: #{cnn_forward.1} parent=1 // pred_check_branch
      %79 = sbr.rel (0) target = $region37
    $region36: #{cnn_forward.1} parent=1 // pred_region
      _
    $region37: #{cnn_forward.1} parent=1 // pred_fallthru
      _
    // Predicated region
    $region38: #{cnn_forward.1} parent=1 // pred_check
      _
    $region39: #{cnn_forward.1} parent=1 // pred_check_branch
      %81 = sbr.rel (0) target = $region41
    $region40: #{cnn_forward.1} parent=1 // pred_region
      %83 = vsyncadd [#allocation9], 0
      %s84 = sshll.u32 %s9, 4
      %s85 = int_to_ptr.hbm [resolvable:$true] %s84
      %s86 = sshll.u32 [#allocation8], 4
      %s87 = int_to_ptr.vmem [resolvable:$true] %s86
      %92 = dma.hbm_to_vmem [thread:$0]  %s85, 1536, %s87, [#allocation9], 128, 128, 8
    $region41: #{cnn_forward.1} parent=1 // pred_fallthru
      _
    // Predicated region
    $region42: #{cnn_forward.1} parent=1 // pred_check
      _
    $region43: #{cnn_forward.1} parent=1 // pred_check_branch
      %94 = sbr.rel (0) target = $region45
    $region44: #{cnn_forward.1} parent=1 // pred_region
      _
    $region45: #{cnn_forward.1} parent=1 // pred_fallthru
      _
    // Predicated region
    $region46: #{cnn_forward.1} parent=1 // pred_check
      _
    $region47: #{cnn_forward.1} parent=1 // pred_check_branch
      %96 = sbr.rel (0) target = $region49
    $region48: #{cnn_forward.1} parent=1 // pred_region
      %98 = vsyncadd [#allocation9], 0
      %s99 = sshll.u32 %s11, 4
      %s100 = int_to_ptr.hbm [resolvable:$true] %s99
      %s101 = sshll.u32 [#allocation10], 4
      %s102 = int_to_ptr.vmem [resolvable:$true] %s101
      %107 = dma.hbm_to_vmem [thread:$0]  %s100, 256, %s102, [#allocation9], 128, 128, 8
    $region49: #{cnn_forward.1} parent=1 // pred_fallthru
      _
    // Predicated region
    $region50: #{cnn_forward.1} parent=1 // pred_check
      _
    $region51: #{cnn_forward.1} parent=1 // pred_check_branch
      %109 = sbr.rel (0) target = $region53
    $region52: #{cnn_forward.1} parent=1 // pred_region
      %111 = vsyncadd [#allocation12], 0
      %s112 = sshll.u32 %s12, 4
      %s113 = int_to_ptr.hbm [resolvable:$true] %s112
      %s114 = sshll.u32 [#allocation11], 4
      %s115 = int_to_ptr.vmem [resolvable:$true] %s114
      %120 = dma.hbm_to_vmem [thread:$0]  %s113, 256, %s115, [#allocation12], 128, 128, 8
    $region53: #{cnn_forward.1} parent=1 // pred_fallthru
      _
    // Predicated region
    $region54: #{cnn_forward.1} parent=1 // pred_check
      _
    $region55: #{cnn_forward.1} parent=1 // pred_check_branch
      %122 = sbr.rel (0) target = $region57
    $region56: #{cnn_forward.1} parent=1 // pred_region
      _
    $region57: #{cnn_forward.1} parent=1 // pred_fallthru
      _
    // Predicated region
    $region58: #{cnn_forward.1} parent=1 // pred_check
      _
    $region59: #{cnn_forward.1} parent=1 // pred_check_branch
      %124 = sbr.rel (0) target = $region61
    $region60: #{cnn_forward.1} parent=1 // pred_region
      _
    $region61: #{cnn_forward.1} parent=1 // pred_fallthru
      _
    // Predicated region
    $region62: #{cnn_forward.1} parent=1 // pred_check
      _
    $region63: #{cnn_forward.1} parent=1 // pred_check_branch
      %126 = sbr.rel (0) target = $region65
    $region64: #{cnn_forward.1} parent=1 // pred_region
      %128 = vsyncadd [#allocation12], 0
      %s129 = sshll.u32 %s15, 4
      %s130 = int_to_ptr.hbm [resolvable:$true] %s129
      %s131 = sshll.u32 [#allocation13], 4
      %s132 = int_to_ptr.vmem [resolvable:$true] %s131
      %137 = dma.hbm_to_vmem [thread:$0]  %s130, 224, %s132, [#allocation12], 32, 32, 2
    $region65: #{cnn_forward.1} parent=1 // pred_fallthru
      _
    // Predicated region
    $region66: #{cnn_forward.1} parent=1 // pred_check
      _
    $region67: #{cnn_forward.1} parent=1 // pred_check_branch
      %139 = sbr.rel (0) target = $region69
    $region68: #{cnn_forward.1} parent=1 // pred_region
      _
    $region69: #{cnn_forward.1} parent=1 // pred_fallthru
      _
    // Predicated region
    $region70: #{cnn_forward.1} parent=1 // pred_check
      _
    $region71: #{cnn_forward.1} parent=1 // pred_check_branch
      %141 = sbr.rel (0) target = $region73
    $region72: #{cnn_forward.1} parent=1 // pred_region
      %143 = vsyncadd [#allocation15], 0
      %s145 = sshll.u32 %s17, 4
      %s146 = int_to_ptr.hbm [resolvable:$true] %s145
      %s147 = sshll.u32 [#allocation14], 4
      %s148 = int_to_ptr.vmem [resolvable:$true] %s147
      %150 = dma.hbm_to_vmem [thread:$0]  %s146, 16, %s148, [#allocation15]
    $region73: #{cnn_forward.1} parent=1 // pred_fallthru
      _
    // Predicated region
    $region74: #{cnn_forward.1} parent=1 // pred_check
      _
    $region75: #{cnn_forward.1} parent=1 // pred_check_branch
      %152 = sbr.rel (0) target = $region77
    $region76: #{cnn_forward.1} parent=1 // pred_region
      %154 = dma.done [#allocation3], 10240
    $region77: #{cnn_forward.1} parent=1 // pred_fallthru
      _
    // Predicated region
    $region78: #{cnn_forward.1} parent=1 // pred_check
      _
    $region79: #{cnn_forward.1} parent=1 // pred_check_branch
      %156 = sbr.rel (0) target = $region81
    $region80: #{cnn_forward.1} parent=1 // pred_region
      %158 = dma.done [#allocation6], 512
    $region81: #{cnn_forward.1} parent=1 // pred_fallthru
      _
    // Predicated region
    $region82: #{cnn_forward.1} parent=1 // pred_check
      _
    $region83: #{cnn_forward.1} parent=1 // pred_check_branch
      %160 = sbr.rel (0) target = $region85
    $region84: #{cnn_forward.1} parent=1 // pred_region
      %162 = dma.done [#allocation6], 16384
    $region85: #{cnn_forward.1} parent=1 // pred_fallthru
      _
    // Predicated region
    $region86: #{cnn_forward.1} parent=1 // pred_check
      _
    $region87: #{cnn_forward.1} parent=1 // pred_check_branch
      %164 = sbr.rel (0) target = $region89
    $region88: #{cnn_forward.1} parent=1 // pred_region
      %166 = dma.done [#allocation9], 1536
    $region89: #{cnn_forward.1} parent=1 // pred_fallthru
      _
    // Predicated region
    $region90: #{cnn_forward.1} parent=1 // pred_check
      _
    $region91: #{cnn_forward.1} parent=1 // pred_check_branch
      %168 = sbr.rel (0) target = $region93
    $region92: #{cnn_forward.1} parent=1 // pred_region
      %170 = dma.done [#allocation9], 256
    $region93: #{cnn_forward.1} parent=1 // pred_fallthru
      _
    // Predicated region
    $region94: #{cnn_forward.1} parent=1 // pred_check
      _
    $region95: #{cnn_forward.1} parent=1 // pred_check_branch
      %172 = sbr.rel (0) target = $region97
    $region96: #{cnn_forward.1} parent=1 // pred_region
      %174 = dma.done [#allocation12], 256
    $region97: #{cnn_forward.1} parent=1 // pred_fallthru
      _
    // Predicated region
    $region98: #{cnn_forward.1} parent=1 // pred_check
      _
    $region99: #{cnn_forward.1} parent=1 // pred_check_branch
      %176 = sbr.rel (0) target = $region101
    $region100: #{cnn_forward.1} parent=1 // pred_region
      %178 = dma.done [#allocation12], 224
    $region101: #{cnn_forward.1} parent=1 // pred_fallthru
      _
    // Predicated region
    $region102: #{cnn_forward.1} parent=1 // pred_check
      _
    $region103: #{cnn_forward.1} parent=1 // pred_check_branch
      %180 = sbr.rel (0) target = $region105
    $region104: #{cnn_forward.1} parent=1 // pred_region
      %182 = dma.done [#allocation15], 16
    $region105: #{cnn_forward.1} parent=1 // pred_fallthru
      _
    %v183 = vld [vmem:[%s0] sm:$0xff]
    %v184 = vld [vmem:[%s0 + $0x8] sm:$0xff]
    %v185 = vld [vmem:[%s0 + $0x10] sm:$0xff]
    %v186 = vld [vmem:[%s0 + $0x18] sm:$0xff]
    %v187 = vld [vmem:[%s0 + $0x20] sm:$0xff]
    %v188 = vld [vmem:[%s0 + $0x28] sm:$0xff]
    %v189 = vld [vmem:[%s0 + $0x30] sm:$0xff]
    %v190 = vld [vmem:[%s0 + $0x38] sm:$0xff]
    %v191 = vld [vmem:[%s2] sm:$0xff]
    %v192 = vld [vmem:[%s2 + $0x8] sm:$0xff]
    %v193 = vld [vmem:[%s2 + $0x10] sm:$0xff]
    %v194 = vld [vmem:[%s2 + $0x18] sm:$0xff]
    %v195 = vld [vmem:[%s2 + $0x20] sm:$0xff]
    %v196 = vld [vmem:[%s2 + $0x28] sm:$0xff]
    %v197 = vld [vmem:[%s2 + $0x30] sm:$0xff]
    %v198 = vld [vmem:[%s2 + $0x38] sm:$0xff]
    %vm199 = vcmask 523264
    %v201 = vsel %vm199, %v191, 0
    %v204 = vsel %vm199, %v192, 0
    %v207 = vsel %vm199, %v193, 0
    %v210 = vsel %vm199, %v194, 0
    %v213 = vsel %vm199, %v195, 0
    %v216 = vsel %vm199, %v196, 0
    %v219 = vsel %vm199, %v197, 0
    %v222 = vsel %vm199, %v198, 0
    %224 = vmatpush.msra.mxu0 0.0
    %225 = vmatpush.msra.mxu0 0.0
    %226 = vmatpush.msra.mxu0 0.0
    %227 = vmatpush.msra.mxu0 0.0
    %228 = vmatpush.msra.mxu0 0.0
    %229 = vmatpush.msra.mxu0 0.0
    %230 = vmatpush.msra.mxu0 0.0
    %231 = vmatpush.msra.mxu0 0.0
    %232 = vmatpush.msra.mxu0 %v190
    %233 = vmatpush.msra.mxu0 %v189
    %234 = vmatpush.msra.mxu0 %v188
    %235 = vmatpush.msra.mxu0 %v187
    %236 = vmatpush.msra.mxu0 %v186
    %237 = vmatpush.msra.mxu0 %v185
    %238 = vmatpush.msra.mxu0 %v184
    %239 = vmatpush.msra.mxu0 %v183
    %240 = vmatmul.f32.gmra.mxu0 %v201
    %v241 = vpop.f32.mrf.mxu0
    %v242 = vadd.f32 0.0, %v241
    %243 = vmatmul.f32.gmra.mxu0 %v204
    %v244 = vpop.f32.mrf.mxu0
    %v245 = vadd.f32 0.0, %v244
    %246 = vmatmul.f32.gmra.mxu0 %v207
    %v247 = vpop.f32.mrf.mxu0
    %v248 = vadd.f32 0.0, %v247
    %249 = vmatmul.f32.gmra.mxu0 %v210
    %v250 = vpop.f32.mrf.mxu0
    %v251 = vadd.f32 0.0, %v250
    %252 = vmatmul.f32.gmra.mxu0 %v213
    %v253 = vpop.f32.mrf.mxu0
    %v254 = vadd.f32 0.0, %v253
    %255 = vmatmul.f32.gmra.mxu0 %v216
    %v256 = vpop.f32.mrf.mxu0
    %v257 = vadd.f32 0.0, %v256
    %258 = vmatmul.f32.gmra.mxu0 %v219
    %v259 = vpop.f32.mrf.mxu0
    %v260 = vadd.f32 0.0, %v259
    %261 = vmatmul.f32.gmra.mxu0 %v222
    %v262 = vpop.f32.mrf.mxu0
    %v263 = vadd.f32 0.0, %v262
    %264 = vdwg.mxu0
    %v265 = vld [vmem:[#allocation2] sm:$0xff]
    %v266 = vld [vmem:[#allocation2 + $0x8] sm:$0xff]
    %v267 = vld [vmem:[#allocation2 + $0x10] sm:$0xff]
    %v268 = vld [vmem:[#allocation2 + $0x18] sm:$0xff]
    %v269 = vld [vmem:[#allocation2 + $0x20] sm:$0xff]
    %v270 = vld [vmem:[#allocation2 + $0x28] sm:$0xff]
    %v271 = vld [vmem:[#allocation2 + $0x30] sm:$0xff]
    %v272 = vld [vmem:[#allocation2 + $0x38] sm:$0xff]
    %v273 = vld [vmem:[#allocation2 + $0x40] sm:$0xff]
    %v274 = vld [vmem:[#allocation2 + $0x48] sm:$0xff]
    %v275 = vld [vmem:[#allocation2 + $0x50] sm:$0xff]
    %v276 = vld [vmem:[#allocation2 + $0x58] sm:$0xff]
    %v277 = vld [vmem:[#allocation2 + $0x60] sm:$0xff]
    %v278 = vld [vmem:[#allocation2 + $0x68] sm:$0xff]
    %v279 = vld [vmem:[#allocation2 + $0x70] sm:$0xff]
    %v280 = vld [vmem:[#allocation2 + $0x78] sm:$0xff]
    %s281 = scalar_lea.vmem %s2, 64
    %v282 = vld [vmem:[%s281] sm:$0xff]
    %v283 = vld [vmem:[%s281 + $0x8] sm:$0xff]
    %v284 = vld [vmem:[%s281 + $0x10] sm:$0xff]
    %v285 = vld [vmem:[%s281 + $0x18] sm:$0xff]
    %v286 = vld [vmem:[%s281 + $0x20] sm:$0xff]
    %v287 = vld [vmem:[%s281 + $0x28] sm:$0xff]
    %v288 = vld [vmem:[%s281 + $0x30] sm:$0xff]
    %v289 = vld [vmem:[%s281 + $0x38] sm:$0xff]
    %v291 = vsel %vm199, %v282, 0
    %v294 = vsel %vm199, %v283, 0
    %v297 = vsel %vm199, %v284, 0
    %v300 = vsel %vm199, %v285, 0
    %v303 = vsel %vm199, %v286, 0
    %v306 = vsel %vm199, %v287, 0
    %v309 = vsel %vm199, %v288, 0
    %v312 = vsel %vm199, %v289, 0
    %314 = vmatpush.msra.mxu0 0.0
    %315 = vmatpush.msra.mxu0 0.0
    %316 = vmatpush.msra.mxu0 0.0
    %317 = vmatpush.msra.mxu0 0.0
    %318 = vmatpush.msra.mxu0 0.0
    %319 = vmatpush.msra.mxu0 0.0
    %320 = vmatpush.msra.mxu0 0.0
    %321 = vmatpush.msra.mxu0 0.0
    %322 = vmatpush.msra.mxu0 %v190
    %323 = vmatpush.msra.mxu0 %v189
    %324 = vmatpush.msra.mxu0 %v188
    %325 = vmatpush.msra.mxu0 %v187
    %326 = vmatpush.msra.mxu0 %v186
    %327 = vmatpush.msra.mxu0 %v185
    %328 = vmatpush.msra.mxu0 %v184
    %329 = vmatpush.msra.mxu0 %v183
    %330 = vmatmul.f32.gmra.mxu0 %v291
    %v331 = vpop.f32.mrf.mxu0
    %v332 = vadd.f32 0.0, %v331
    %333 = vmatmul.f32.gmra.mxu0 %v294
    %v334 = vpop.f32.mrf.mxu0
    %v335 = vadd.f32 0.0, %v334
    %336 = vmatmul.f32.gmra.mxu0 %v297
    %v337 = vpop.f32.mrf.mxu0
    %v338 = vadd.f32 0.0, %v337
    %339 = vmatmul.f32.gmra.mxu0 %v300
    %v340 = vpop.f32.mrf.mxu0
    %v341 = vadd.f32 0.0, %v340
    %342 = vmatmul.f32.gmra.mxu0 %v303
    %v343 = vpop.f32.mrf.mxu0
    %v344 = vadd.f32 0.0, %v343
    %345 = vmatmul.f32.gmra.mxu0 %v306
    %v346 = vpop.f32.mrf.mxu0
    %v347 = vadd.f32 0.0, %v346
    %348 = vmatmul.f32.gmra.mxu0 %v309
    %v349 = vpop.f32.mrf.mxu0
    %v350 = vadd.f32 0.0, %v349
    %351 = vmatmul.f32.gmra.mxu0 %v312
    %v352 = vpop.f32.mrf.mxu0
    %v353 = vadd.f32 0.0, %v352
    %354 = vdwg.mxu0
    %s355 = scalar_lea.vmem [#allocation2], 128
    %v356 = vld [vmem:[%s355] sm:$0xff]
    %v357 = vld [vmem:[%s355 + $0x8] sm:$0xff]
    %v358 = vld [vmem:[%s355 + $0x10] sm:$0xff]
    %v359 = vld [vmem:[%s355 + $0x18] sm:$0xff]
    %v360 = vld [vmem:[%s355 + $0x20] sm:$0xff]
    %v361 = vld [vmem:[%s355 + $0x28] sm:$0xff]
    %v362 = vld [vmem:[%s355 + $0x30] sm:$0xff]
    %v363 = vld [vmem:[%s355 + $0x38] sm:$0xff]
    %v364 = vld [vmem:[%s355 + $0x40] sm:$0xff]
    %v365 = vld [vmem:[%s355 + $0x48] sm:$0xff]
    %v366 = vld [vmem:[%s355 + $0x50] sm:$0xff]
    %v367 = vld [vmem:[%s355 + $0x58] sm:$0xff]
    %v368 = vld [vmem:[%s355 + $0x60] sm:$0xff]
    %v369 = vld [vmem:[%s355 + $0x68] sm:$0xff]
    %v370 = vld [vmem:[%s355 + $0x70] sm:$0xff]
    %v371 = vld [vmem:[%s355 + $0x78] sm:$0xff]
    %vm372 = vcmask 261120
    %v374 = vsel %vm372, %v332, 0
    %v377 = vsel %vm372, %v335, 0
    %v380 = vsel %vm372, %v338, 0
    %v383 = vsel %vm372, %v341, 0
    %v386 = vsel %vm372, %v344, 0
    %v389 = vsel %vm372, %v347, 0
    %v392 = vsel %vm372, %v350, 0
    %v395 = vsel %vm372, %v353, 0
    %397 = vmatpush.msra.mxu0 0.0
    %398 = vmatpush.msra.mxu0 0.0
    %399 = vmatpush.msra.mxu0 0.0
    %400 = vmatpush.msra.mxu0 0.0
    %401 = vmatpush.msra.mxu0 0.0
    %402 = vmatpush.msra.mxu0 0.0
    %403 = vmatpush.msra.mxu0 0.0
    %404 = vmatpush.msra.mxu0 0.0
    %405 = vmatpush.msra.mxu0 0.0
    %406 = vmatpush.msra.mxu0 0.0
    %407 = vmatpush.msra.mxu0 0.0
    %408 = vmatpush.msra.mxu0 0.0
    %409 = vmatpush.msra.mxu0 %v368
    %410 = vmatpush.msra.mxu0 %v364
    %411 = vmatpush.msra.mxu0 %v360
    %412 = vmatpush.msra.mxu0 %v356
    %413 = vmatmul.f32.gmra.mxu0 %v374
    %v414 = vpop.f32.mrf.mxu0
    %v415 = vadd.f32 0.0, %v414
    %416 = vmatmul.f32.gmra.mxu0 %v377
    %v417 = vpop.f32.mrf.mxu0
    %v418 = vadd.f32 0.0, %v417
    %419 = vmatmul.f32.gmra.mxu0 %v380
    %v420 = vpop.f32.mrf.mxu0
    %v421 = vadd.f32 0.0, %v420
    %422 = vmatmul.f32.gmra.mxu0 %v383
    %v423 = vpop.f32.mrf.mxu0
    %v424 = vadd.f32 0.0, %v423
    %425 = vmatmul.f32.gmra.mxu0 %v386
    %v426 = vpop.f32.mrf.mxu0
    %v427 = vadd.f32 0.0, %v426
    %428 = vmatmul.f32.gmra.mxu0 %v389
    %v429 = vpop.f32.mrf.mxu0
    %v430 = vadd.f32 0.0, %v429
    %431 = vmatmul.f32.gmra.mxu0 %v392
    %v432 = vpop.f32.mrf.mxu0
    %v433 = vadd.f32 0.0, %v432
    %434 = vmatmul.f32.gmra.mxu0 %v395
    %v435 = vpop.f32.mrf.mxu0
    %v436 = vadd.f32 0.0, %v435
    %437 = vdwg.mxu0
    %438 = vmatpush.msra.mxu0 0.0
    %439 = vmatpush.msra.mxu0 0.0
    %440 = vmatpush.msra.mxu0 0.0
    %441 = vmatpush.msra.mxu0 0.0
    %442 = vmatpush.msra.mxu0 0.0
    %443 = vmatpush.msra.mxu0 0.0
    %444 = vmatpush.msra.mxu0 0.0
    %445 = vmatpush.msra.mxu0 0.0
    %446 = vmatpush.msra.mxu0 0.0
    %447 = vmatpush.msra.mxu0 0.0
    %448 = vmatpush.msra.mxu0 0.0
    %449 = vmatpush.msra.mxu0 0.0
    %450 = vmatpush.msra.mxu0 %v369
    %451 = vmatpush.msra.mxu0 %v365
    %452 = vmatpush.msra.mxu0 %v361
    %453 = vmatpush.msra.mxu0 %v357
    %454 = vmatmul.f32.gmra.mxu0 %v374
    %v455 = vpop.f32.mrf.mxu0
    %v456 = vadd.f32 0.0, %v455
    %457 = vmatmul.f32.gmra.mxu0 %v377
    %v458 = vpop.f32.mrf.mxu0
    %v459 = vadd.f32 0.0, %v458
    %460 = vmatmul.f32.gmra.mxu0 %v380
    %v461 = vpop.f32.mrf.mxu0
    %v462 = vadd.f32 0.0, %v461
    %463 = vmatmul.f32.gmra.mxu0 %v383
    %v464 = vpop.f32.mrf.mxu0
    %v465 = vadd.f32 0.0, %v464
    %466 = vmatmul.f32.gmra.mxu0 %v386
    %v467 = vpop.f32.mrf.mxu0
    %v468 = vadd.f32 0.0, %v467
    %469 = vmatmul.f32.gmra.mxu0 %v389
    %v470 = vpop.f32.mrf.mxu0
    %v471 = vadd.f32 0.0, %v470
    %472 = vmatmul.f32.gmra.mxu0 %v392
    %v473 = vpop.f32.mrf.mxu0
    %v474 = vadd.f32 0.0, %v473
    %475 = vmatmul.f32.gmra.mxu0 %v395
    %v476 = vpop.f32.mrf.mxu0
    %v477 = vadd.f32 0.0, %v476
    %478 = vdwg.mxu0
    %479 = vmatpush.msra.mxu0 0.0
    %480 = vmatpush.msra.mxu0 0.0
    %481 = vmatpush.msra.mxu0 0.0
    %482 = vmatpush.msra.mxu0 0.0
    %483 = vmatpush.msra.mxu0 0.0
    %484 = vmatpush.msra.mxu0 0.0
    %485 = vmatpush.msra.mxu0 0.0
    %486 = vmatpush.msra.mxu0 0.0
    %487 = vmatpush.msra.mxu0 0.0
    %488 = vmatpush.msra.mxu0 0.0
    %489 = vmatpush.msra.mxu0 0.0
    %490 = vmatpush.msra.mxu0 0.0
    %491 = vmatpush.msra.mxu0 %v370
    %492 = vmatpush.msra.mxu0 %v366
    %493 = vmatpush.msra.mxu0 %v362
    %494 = vmatpush.msra.mxu0 %v358
    %495 = vmatmul.f32.gmra.mxu0 %v374
    %v496 = vpop.f32.mrf.mxu0
    %v497 = vadd.f32 0.0, %v496
    %498 = vmatmul.f32.gmra.mxu0 %v377
    %v499 = vpop.f32.mrf.mxu0
    %v500 = vadd.f32 0.0, %v499
    %501 = vmatmul.f32.gmra.mxu0 %v380
    %v502 = vpop.f32.mrf.mxu0
    %v503 = vadd.f32 0.0, %v502
    %504 = vmatmul.f32.gmra.mxu0 %v383
    %v505 = vpop.f32.mrf.mxu0
    %v506 = vadd.f32 0.0, %v505
    %507 = vmatmul.f32.gmra.mxu0 %v386
    %v508 = vpop.f32.mrf.mxu0
    %v509 = vadd.f32 0.0, %v508
    %510 = vmatmul.f32.gmra.mxu0 %v389
    %v511 = vpop.f32.mrf.mxu0
    %v512 = vadd.f32 0.0, %v511
    %513 = vmatmul.f32.gmra.mxu0 %v392
    %v514 = vpop.f32.mrf.mxu0
    %v515 = vadd.f32 0.0, %v514
    %516 = vmatmul.f32.gmra.mxu0 %v395
    %v517 = vpop.f32.mrf.mxu0
    %v518 = vadd.f32 0.0, %v517
    %519 = vdwg.mxu0
    %520 = vmatpush.msra.mxu0 0.0
    %521 = vmatpush.msra.mxu0 0.0
    %522 = vmatpush.msra.mxu0 0.0
    %523 = vmatpush.msra.mxu0 0.0
    %524 = vmatpush.msra.mxu0 0.0
    %525 = vmatpush.msra.mxu0 0.0
    %526 = vmatpush.msra.mxu0 0.0
    %527 = vmatpush.msra.mxu0 0.0
    %528 = vmatpush.msra.mxu0 0.0
    %529 = vmatpush.msra.mxu0 0.0
    %530 = vmatpush.msra.mxu0 0.0
    %531 = vmatpush.msra.mxu0 0.0
    %532 = vmatpush.msra.mxu0 %v371
    %533 = vmatpush.msra.mxu0 %v367
    %534 = vmatpush.msra.mxu0 %v363
    %535 = vmatpush.msra.mxu0 %v359
    %536 = vmatmul.f32.gmra.mxu0 %v374
    %v537 = vpop.f32.mrf.mxu0
    %v538 = vadd.f32 0.0, %v537
    %539 = vmatmul.f32.gmra.mxu0 %v377
    %v540 = vpop.f32.mrf.mxu0
    %v541 = vadd.f32 0.0, %v540
    %542 = vmatmul.f32.gmra.mxu0 %v380
    %v543 = vpop.f32.mrf.mxu0
    %v544 = vadd.f32 0.0, %v543
    %545 = vmatmul.f32.gmra.mxu0 %v383
    %v546 = vpop.f32.mrf.mxu0
    %v547 = vadd.f32 0.0, %v546
    %548 = vmatmul.f32.gmra.mxu0 %v386
    %v549 = vpop.f32.mrf.mxu0
    %v550 = vadd.f32 0.0, %v549
    %551 = vmatmul.f32.gmra.mxu0 %v389
    %v552 = vpop.f32.mrf.mxu0
    %v553 = vadd.f32 0.0, %v552
    %554 = vmatmul.f32.gmra.mxu0 %v392
    %v555 = vpop.f32.mrf.mxu0
    %v556 = vadd.f32 0.0, %v555
    %557 = vmatmul.f32.gmra.mxu0 %v395
    %v558 = vpop.f32.mrf.mxu0
    %v559 = vadd.f32 0.0, %v558
    %560 = vdwg.mxu0
    %v562 = vsel %vm372, %v242, 0
    %v565 = vsel %vm372, %v245, 0
    %v568 = vsel %vm372, %v248, 0
    %v571 = vsel %vm372, %v251, 0
    %v574 = vsel %vm372, %v254, 0
    %v577 = vsel %vm372, %v257, 0
    %v580 = vsel %vm372, %v260, 0
    %v583 = vsel %vm372, %v263, 0
    %585 = vmatpush.msra.mxu0 0.0
    %586 = vmatpush.msra.mxu0 0.0
    %587 = vmatpush.msra.mxu0 0.0
    %588 = vmatpush.msra.mxu0 0.0
    %589 = vmatpush.msra.mxu0 0.0
    %590 = vmatpush.msra.mxu0 0.0
    %591 = vmatpush.msra.mxu0 0.0
    %592 = vmatpush.msra.mxu0 0.0
    %593 = vmatpush.msra.mxu0 0.0
    %594 = vmatpush.msra.mxu0 0.0
    %595 = vmatpush.msra.mxu0 0.0
    %596 = vmatpush.msra.mxu0 0.0
    %597 = vmatpush.msra.mxu0 %v277
    %598 = vmatpush.msra.mxu0 %v273
    %599 = vmatpush.msra.mxu0 %v269
    %600 = vmatpush.msra.mxu0 %v265
    %601 = vmatmul.f32.gmra.mxu0 %v562
    %v602 = vpop.f32.mrf.mxu0
    %v603 = vadd.f32 %v415, %v602
    %604 = vmatmul.f32.gmra.mxu0 %v565
    %v605 = vpop.f32.mrf.mxu0
    %v606 = vadd.f32 %v418, %v605
    %607 = vmatmul.f32.gmra.mxu0 %v568
    %v608 = vpop.f32.mrf.mxu0
    %v609 = vadd.f32 %v421, %v608
    %610 = vmatmul.f32.gmra.mxu0 %v571
    %v611 = vpop.f32.mrf.mxu0
    %v612 = vadd.f32 %v424, %v611
    %613 = vmatmul.f32.gmra.mxu0 %v574
    %v614 = vpop.f32.mrf.mxu0
    %v615 = vadd.f32 %v427, %v614
    %616 = vmatmul.f32.gmra.mxu0 %v577
    %v617 = vpop.f32.mrf.mxu0
    %v618 = vadd.f32 %v430, %v617
    %619 = vmatmul.f32.gmra.mxu0 %v580
    %v620 = vpop.f32.mrf.mxu0
    %v621 = vadd.f32 %v433, %v620
    %622 = vmatmul.f32.gmra.mxu0 %v583
    %v623 = vpop.f32.mrf.mxu0
    %v624 = vadd.f32 %v436, %v623
    %625 = vdwg.mxu0
    %626 = vmatpush.msra.mxu0 0.0
    %627 = vmatpush.msra.mxu0 0.0
    %628 = vmatpush.msra.mxu0 0.0
    %629 = vmatpush.msra.mxu0 0.0
    %630 = vmatpush.msra.mxu0 0.0
    %631 = vmatpush.msra.mxu0 0.0
    %632 = vmatpush.msra.mxu0 0.0
    %633 = vmatpush.msra.mxu0 0.0
    %634 = vmatpush.msra.mxu0 0.0
    %635 = vmatpush.msra.mxu0 0.0
    %636 = vmatpush.msra.mxu0 0.0
    %637 = vmatpush.msra.mxu0 0.0
    %638 = vmatpush.msra.mxu0 %v278
    %639 = vmatpush.msra.mxu0 %v274
    %640 = vmatpush.msra.mxu0 %v270
    %641 = vmatpush.msra.mxu0 %v266
    %642 = vmatmul.f32.gmra.mxu0 %v562
    %v643 = vpop.f32.mrf.mxu0
    %v644 = vadd.f32 %v456, %v643
    %645 = vmatmul.f32.gmra.mxu0 %v565
    %v646 = vpop.f32.mrf.mxu0
    %v647 = vadd.f32 %v459, %v646
    %648 = vmatmul.f32.gmra.mxu0 %v568
    %v649 = vpop.f32.mrf.mxu0
    %v650 = vadd.f32 %v462, %v649
    %651 = vmatmul.f32.gmra.mxu0 %v571
    %v652 = vpop.f32.mrf.mxu0
    %v653 = vadd.f32 %v465, %v652
    %654 = vmatmul.f32.gmra.mxu0 %v574
    %v655 = vpop.f32.mrf.mxu0
    %v656 = vadd.f32 %v468, %v655
    %657 = vmatmul.f32.gmra.mxu0 %v577
    %v658 = vpop.f32.mrf.mxu0
    %v659 = vadd.f32 %v471, %v658
    %660 = vmatmul.f32.gmra.mxu0 %v580
    %v661 = vpop.f32.mrf.mxu0
    %v662 = vadd.f32 %v474, %v661
    %663 = vmatmul.f32.gmra.mxu0 %v583
    %v664 = vpop.f32.mrf.mxu0
    %v665 = vadd.f32 %v477, %v664
    %666 = vdwg.mxu0
    %667 = vmatpush.msra.mxu0 0.0
    %668 = vmatpush.msra.mxu0 0.0
    %669 = vmatpush.msra.mxu0 0.0
    %670 = vmatpush.msra.mxu0 0.0
    %671 = vmatpush.msra.mxu0 0.0
    %672 = vmatpush.msra.mxu0 0.0
    %673 = vmatpush.msra.mxu0 0.0
    %674 = vmatpush.msra.mxu0 0.0
    %675 = vmatpush.msra.mxu0 0.0
    %676 = vmatpush.msra.mxu0 0.0
    %677 = vmatpush.msra.mxu0 0.0
    %678 = vmatpush.msra.mxu0 0.0
    %679 = vmatpush.msra.mxu0 %v279
    %680 = vmatpush.msra.mxu0 %v275
    %681 = vmatpush.msra.mxu0 %v271
    %682 = vmatpush.msra.mxu0 %v267
    %683 = vmatmul.f32.gmra.mxu0 %v562
    %v684 = vpop.f32.mrf.mxu0
    %v685 = vadd.f32 %v497, %v684
    %686 = vmatmul.f32.gmra.mxu0 %v565
    %v687 = vpop.f32.mrf.mxu0
    %v688 = vadd.f32 %v500, %v687
    %689 = vmatmul.f32.gmra.mxu0 %v568
    %v690 = vpop.f32.mrf.mxu0
    %v691 = vadd.f32 %v503, %v690
    %692 = vmatmul.f32.gmra.mxu0 %v571
    %v693 = vpop.f32.mrf.mxu0
    %v694 = vadd.f32 %v506, %v693
    %695 = vmatmul.f32.gmra.mxu0 %v574
    %v696 = vpop.f32.mrf.mxu0
    %v697 = vadd.f32 %v509, %v696
    %698 = vmatmul.f32.gmra.mxu0 %v577
    %v699 = vpop.f32.mrf.mxu0
    %v700 = vadd.f32 %v512, %v699
    %701 = vmatmul.f32.gmra.mxu0 %v580
    %v702 = vpop.f32.mrf.mxu0
    %v703 = vadd.f32 %v515, %v702
    %704 = vmatmul.f32.gmra.mxu0 %v583
    %v705 = vpop.f32.mrf.mxu0
    %v706 = vadd.f32 %v518, %v705
    %707 = vdwg.mxu0
    %708 = vmatpush.msra.mxu0 0.0
    %709 = vmatpush.msra.mxu0 0.0
    %710 = vmatpush.msra.mxu0 0.0
    %711 = vmatpush.msra.mxu0 0.0
    %712 = vmatpush.msra.mxu0 0.0
    %713 = vmatpush.msra.mxu0 0.0
    %714 = vmatpush.msra.mxu0 0.0
    %715 = vmatpush.msra.mxu0 0.0
    %716 = vmatpush.msra.mxu0 0.0
    %717 = vmatpush.msra.mxu0 0.0
    %718 = vmatpush.msra.mxu0 0.0
    %719 = vmatpush.msra.mxu0 0.0
    %720 = vmatpush.msra.mxu0 %v280
    %721 = vmatpush.msra.mxu0 %v276
    %722 = vmatpush.msra.mxu0 %v272
    %723 = vmatpush.msra.mxu0 %v268
    %724 = vmatmul.f32.gmra.mxu0 %v562
    %v725 = vpop.f32.mrf.mxu0
    %v726 = vadd.f32 %v538, %v725
    %727 = vmatmul.f32.gmra.mxu0 %v565
    %v728 = vpop.f32.mrf.mxu0
    %v729 = vadd.f32 %v541, %v728
    %730 = vmatmul.f32.gmra.mxu0 %v568
    %v731 = vpop.f32.mrf.mxu0
    %v732 = vadd.f32 %v544, %v731
    %733 = vmatmul.f32.gmra.mxu0 %v571
    %v734 = vpop.f32.mrf.mxu0
    %v735 = vadd.f32 %v547, %v734
    %736 = vmatmul.f32.gmra.mxu0 %v574
    %v737 = vpop.f32.mrf.mxu0
    %v738 = vadd.f32 %v550, %v737
    %739 = vmatmul.f32.gmra.mxu0 %v577
    %v740 = vpop.f32.mrf.mxu0
    %v741 = vadd.f32 %v553, %v740
    %742 = vmatmul.f32.gmra.mxu0 %v580
    %v743 = vpop.f32.mrf.mxu0
    %v744 = vadd.f32 %v556, %v743
    %745 = vmatmul.f32.gmra.mxu0 %v583
    %v746 = vpop.f32.mrf.mxu0
    %v747 = vadd.f32 %v559, %v746
    %748 = vdwg.mxu0
    %s749 = scalar_lea.vmem %s2, 128
    %v750 = vld [vmem:[%s749] sm:$0xff]
    %v751 = vld [vmem:[%s749 + $0x8] sm:$0xff]
    %v752 = vld [vmem:[%s749 + $0x10] sm:$0xff]
    %v753 = vld [vmem:[%s749 + $0x18] sm:$0xff]
    %v754 = vld [vmem:[%s749 + $0x20] sm:$0xff]
    %v755 = vld [vmem:[%s749 + $0x28] sm:$0xff]
    %v756 = vld [vmem:[%s749 + $0x30] sm:$0xff]
    %v757 = vld [vmem:[%s749 + $0x38] sm:$0xff]
    %v759 = vsel %vm199, %v750, 0
    %v762 = vsel %vm199, %v751, 0
    %v765 = vsel %vm199, %v752, 0
    %v768 = vsel %vm199, %v753, 0
    %v771 = vsel %vm199, %v754, 0
    %v774 = vsel %vm199, %v755, 0
    %v777 = vsel %vm199, %v756, 0
    %v780 = vsel %vm199, %v757, 0
    %782 = vmatpush.msra.mxu0 0.0
    %783 = vmatpush.msra.mxu0 0.0
    %784 = vmatpush.msra.mxu0 0.0
    %785 = vmatpush.msra.mxu0 0.0
    %786 = vmatpush.msra.mxu0 0.0
    %787 = vmatpush.msra.mxu0 0.0
    %788 = vmatpush.msra.mxu0 0.0
    %789 = vmatpush.msra.mxu0 0.0
    %790 = vmatpush.msra.mxu0 %v190
    %791 = vmatpush.msra.mxu0 %v189
    %792 = vmatpush.msra.mxu0 %v188
    %793 = vmatpush.msra.mxu0 %v187
    %794 = vmatpush.msra.mxu0 %v186
    %795 = vmatpush.msra.mxu0 %v185
    %796 = vmatpush.msra.mxu0 %v184
    %797 = vmatpush.msra.mxu0 %v183
    %798 = vmatmul.f32.gmra.mxu0 %v759
    %v799 = vpop.f32.mrf.mxu0
    %v800 = vadd.f32 0.0, %v799
    %801 = vmatmul.f32.gmra.mxu0 %v762
    %v802 = vpop.f32.mrf.mxu0
    %v803 = vadd.f32 0.0, %v802
    %804 = vmatmul.f32.gmra.mxu0 %v765
    %v805 = vpop.f32.mrf.mxu0
    %v806 = vadd.f32 0.0, %v805
    %807 = vmatmul.f32.gmra.mxu0 %v768
    %v808 = vpop.f32.mrf.mxu0
    %v809 = vadd.f32 0.0, %v808
    %810 = vmatmul.f32.gmra.mxu0 %v771
    %v811 = vpop.f32.mrf.mxu0
    %v812 = vadd.f32 0.0, %v811
    %813 = vmatmul.f32.gmra.mxu0 %v774
    %v814 = vpop.f32.mrf.mxu0
    %v815 = vadd.f32 0.0, %v814
    %816 = vmatmul.f32.gmra.mxu0 %v777
    %v817 = vpop.f32.mrf.mxu0
    %v818 = vadd.f32 0.0, %v817
    %819 = vmatmul.f32.gmra.mxu0 %v780
    %v820 = vpop.f32.mrf.mxu0
    %v821 = vadd.f32 0.0, %v820
    %822 = vdwg.mxu0
    %s823 = scalar_lea.vmem [#allocation2], 256
    %v824 = vld [vmem:[%s823] sm:$0xff]
    %v825 = vld [vmem:[%s823 + $0x8] sm:$0xff]
    %v826 = vld [vmem:[%s823 + $0x10] sm:$0xff]
    %v827 = vld [vmem:[%s823 + $0x18] sm:$0xff]
    %v828 = vld [vmem:[%s823 + $0x20] sm:$0xff]
    %v829 = vld [vmem:[%s823 + $0x28] sm:$0xff]
    %v830 = vld [vmem:[%s823 + $0x30] sm:$0xff]
    %v831 = vld [vmem:[%s823 + $0x38] sm:$0xff]
    %v832 = vld [vmem:[%s823 + $0x40] sm:$0xff]
    %v833 = vld [vmem:[%s823 + $0x48] sm:$0xff]
    %v834 = vld [vmem:[%s823 + $0x50] sm:$0xff]
    %v835 = vld [vmem:[%s823 + $0x58] sm:$0xff]
    %v836 = vld [vmem:[%s823 + $0x60] sm:$0xff]
    %v837 = vld [vmem:[%s823 + $0x68] sm:$0xff]
    %v838 = vld [vmem:[%s823 + $0x70] sm:$0xff]
    %v839 = vld [vmem:[%s823 + $0x78] sm:$0xff]
    %v841 = vsel %vm372, %v800, 0
    %v844 = vsel %vm372, %v803, 0
    %v847 = vsel %vm372, %v806, 0
    %v850 = vsel %vm372, %v809, 0
    %v853 = vsel %vm372, %v812, 0
    %v856 = vsel %vm372, %v815, 0
    %v859 = vsel %vm372, %v818, 0
    %v862 = vsel %vm372, %v821, 0
    %864 = vmatpush.msra.mxu0 0.0
    %865 = vmatpush.msra.mxu0 0.0
    %866 = vmatpush.msra.mxu0 0.0
    %867 = vmatpush.msra.mxu0 0.0
    %868 = vmatpush.msra.mxu0 0.0
    %869 = vmatpush.msra.mxu0 0.0
    %870 = vmatpush.msra.mxu0 0.0
    %871 = vmatpush.msra.mxu0 0.0
    %872 = vmatpush.msra.mxu0 0.0
    %873 = vmatpush.msra.mxu0 0.0
    %874 = vmatpush.msra.mxu0 0.0
    %875 = vmatpush.msra.mxu0 0.0
    %876 = vmatpush.msra.mxu0 %v836
    %877 = vmatpush.msra.mxu0 %v832
    %878 = vmatpush.msra.mxu0 %v828
    %879 = vmatpush.msra.mxu0 %v824
    %880 = vmatmul.f32.gmra.mxu0 %v841
    %v881 = vpop.f32.mrf.mxu0
    %v882 = vadd.f32 0.0, %v881
    %883 = vmatmul.f32.gmra.mxu0 %v844
    %v884 = vpop.f32.mrf.mxu0
    %v885 = vadd.f32 0.0, %v884
    %886 = vmatmul.f32.gmra.mxu0 %v847
    %v887 = vpop.f32.mrf.mxu0
    %v888 = vadd.f32 0.0, %v887
    %889 = vmatmul.f32.gmra.mxu0 %v850
    %v890 = vpop.f32.mrf.mxu0
    %v891 = vadd.f32 0.0, %v890
    %892 = vmatmul.f32.gmra.mxu0 %v853
    %v893 = vpop.f32.mrf.mxu0
    %v894 = vadd.f32 0.0, %v893
    %895 = vmatmul.f32.gmra.mxu0 %v856
    %v896 = vpop.f32.mrf.mxu0
    %v897 = vadd.f32 0.0, %v896
    %898 = vmatmul.f32.gmra.mxu0 %v859
    %v899 = vpop.f32.mrf.mxu0
    %v900 = vadd.f32 0.0, %v899
    %901 = vmatmul.f32.gmra.mxu0 %v862
    %v902 = vpop.f32.mrf.mxu0
    %v903 = vadd.f32 0.0, %v902
    %904 = vdwg.mxu0
    %905 = vmatpush.msra.mxu0 0.0
    %906 = vmatpush.msra.mxu0 0.0
    %907 = vmatpush.msra.mxu0 0.0
    %908 = vmatpush.msra.mxu0 0.0
    %909 = vmatpush.msra.mxu0 0.0
    %910 = vmatpush.msra.mxu0 0.0
    %911 = vmatpush.msra.mxu0 0.0
    %912 = vmatpush.msra.mxu0 0.0
    %913 = vmatpush.msra.mxu0 0.0
    %914 = vmatpush.msra.mxu0 0.0
    %915 = vmatpush.msra.mxu0 0.0
    %916 = vmatpush.msra.mxu0 0.0
    %917 = vmatpush.msra.mxu0 %v837
    %918 = vmatpush.msra.mxu0 %v833
    %919 = vmatpush.msra.mxu0 %v829
    %920 = vmatpush.msra.mxu0 %v825
    %921 = vmatmul.f32.gmra.mxu0 %v841
    %v922 = vpop.f32.mrf.mxu0
    %v923 = vadd.f32 0.0, %v922
    %924 = vmatmul.f32.gmra.mxu0 %v844
    %v925 = vpop.f32.mrf.mxu0
    %v926 = vadd.f32 0.0, %v925
    %927 = vmatmul.f32.gmra.mxu0 %v847
    %v928 = vpop.f32.mrf.mxu0
    %v929 = vadd.f32 0.0, %v928
    %930 = vmatmul.f32.gmra.mxu0 %v850
    %v931 = vpop.f32.mrf.mxu0
    %v932 = vadd.f32 0.0, %v931
    %933 = vmatmul.f32.gmra.mxu0 %v853
    %v934 = vpop.f32.mrf.mxu0
    %v935 = vadd.f32 0.0, %v934
    %936 = vmatmul.f32.gmra.mxu0 %v856
    %v937 = vpop.f32.mrf.mxu0
    %v938 = vadd.f32 0.0, %v937
    %939 = vmatmul.f32.gmra.mxu0 %v859
    %v940 = vpop.f32.mrf.mxu0
    %v941 = vadd.f32 0.0, %v940
    %942 = vmatmul.f32.gmra.mxu0 %v862
    %v943 = vpop.f32.mrf.mxu0
    %v944 = vadd.f32 0.0, %v943
    %945 = vdwg.mxu0
    %946 = vmatpush.msra.mxu0 0.0
    %947 = vmatpush.msra.mxu0 0.0
    %948 = vmatpush.msra.mxu0 0.0
    %949 = vmatpush.msra.mxu0 0.0
    %950 = vmatpush.msra.mxu0 0.0
    %951 = vmatpush.msra.mxu0 0.0
    %952 = vmatpush.msra.mxu0 0.0
    %953 = vmatpush.msra.mxu0 0.0
    %954 = vmatpush.msra.mxu0 0.0
    %955 = vmatpush.msra.mxu0 0.0
    %956 = vmatpush.msra.mxu0 0.0
    %957 = vmatpush.msra.mxu0 0.0
    %958 = vmatpush.msra.mxu0 %v838
    %959 = vmatpush.msra.mxu0 %v834
    %960 = vmatpush.msra.mxu0 %v830
    %961 = vmatpush.msra.mxu0 %v826
    %962 = vmatmul.f32.gmra.mxu0 %v841
    %v963 = vpop.f32.mrf.mxu0
    %v964 = vadd.f32 0.0, %v963
    %965 = vmatmul.f32.gmra.mxu0 %v844
    %v966 = vpop.f32.mrf.mxu0
    %v967 = vadd.f32 0.0, %v966
    %968 = vmatmul.f32.gmra.mxu0 %v847
    %v969 = vpop.f32.mrf.mxu0
    %v970 = vadd.f32 0.0, %v969
    %971 = vmatmul.f32.gmra.mxu0 %v850
    %v972 = vpop.f32.mrf.mxu0
    %v973 = vadd.f32 0.0, %v972
    %974 = vmatmul.f32.gmra.mxu0 %v853
    %v975 = vpop.f32.mrf.mxu0
    %v976 = vadd.f32 0.0, %v975
    %977 = vmatmul.f32.gmra.mxu0 %v856
    %v978 = vpop.f32.mrf.mxu0
    %v979 = vadd.f32 0.0, %v978
    %980 = vmatmul.f32.gmra.mxu0 %v859
    %v981 = vpop.f32.mrf.mxu0
    %v982 = vadd.f32 0.0, %v981
    %983 = vmatmul.f32.gmra.mxu0 %v862
    %v984 = vpop.f32.mrf.mxu0
    %v985 = vadd.f32 0.0, %v984
    %986 = vdwg.mxu0
    %987 = vmatpush.msra.mxu0 0.0
    %988 = vmatpush.msra.mxu0 0.0
    %989 = vmatpush.msra.mxu0 0.0
    %990 = vmatpush.msra.mxu0 0.0
    %991 = vmatpush.msra.mxu0 0.0
    %992 = vmatpush.msra.mxu0 0.0
    %993 = vmatpush.msra.mxu0 0.0
    %994 = vmatpush.msra.mxu0 0.0
    %995 = vmatpush.msra.mxu0 0.0
    %996 = vmatpush.msra.mxu0 0.0
    %997 = vmatpush.msra.mxu0 0.0
    %998 = vmatpush.msra.mxu0 0.0
    %999 = vmatpush.msra.mxu0 %v839
    %1000 = vmatpush.msra.mxu0 %v835
    %1001 = vmatpush.msra.mxu0 %v831
    %1002 = vmatpush.msra.mxu0 %v827
    %1003 = vmatmul.f32.gmra.mxu0 %v841
    %v1004 = vpop.f32.mrf.mxu0
    %v1005 = vadd.f32 0.0, %v1004
    %1006 = vmatmul.f32.gmra.mxu0 %v844
    %v1007 = vpop.f32.mrf.mxu0
    %v1008 = vadd.f32 0.0, %v1007
    %1009 = vmatmul.f32.gmra.mxu0 %v847
    %v1010 = vpop.f32.mrf.mxu0
    %v1011 = vadd.f32 0.0, %v1010
    %1012 = vmatmul.f32.gmra.mxu0 %v850
    %v1013 = vpop.f32.mrf.mxu0
    %v1014 = vadd.f32 0.0, %v1013
    %1015 = vmatmul.f32.gmra.mxu0 %v853
    %v1016 = vpop.f32.mrf.mxu0
    %v1017 = vadd.f32 0.0, %v1016
    %1018 = vmatmul.f32.gmra.mxu0 %v856
    %v1019 = vpop.f32.mrf.mxu0
    %v1020 = vadd.f32 0.0, %v1019
    %1021 = vmatmul.f32.gmra.mxu0 %v859
    %v1022 = vpop.f32.mrf.mxu0
    %v1023 = vadd.f32 0.0, %v1022
    %1024 = vmatmul.f32.gmra.mxu0 %v862
    %v1025 = vpop.f32.mrf.mxu0
    %v1026 = vadd.f32 0.0, %v1025
    %1027 = vdwg.mxu0
    %v1028 = vadd.f32 %v603, %v882
    %v1029 = vadd.f32 %v644, %v923
    %v1030 = vadd.f32 %v685, %v964
    %v1031 = vadd.f32 %v726, %v1005
    %v1032 = vadd.f32 %v606, %v885
    %v1033 = vadd.f32 %v647, %v926
    %v1034 = vadd.f32 %v688, %v967
    %v1035 = vadd.f32 %v729, %v1008
    %v1036 = vadd.f32 %v609, %v888
    %v1037 = vadd.f32 %v650, %v929
    %v1038 = vadd.f32 %v691, %v970
    %v1039 = vadd.f32 %v732, %v1011
    %v1040 = vadd.f32 %v612, %v891
    %v1041 = vadd.f32 %v653, %v932
    %v1042 = vadd.f32 %v694, %v973
    %v1043 = vadd.f32 %v735, %v1014
    %v1044 = vadd.f32 %v615, %v894
    %v1045 = vadd.f32 %v656, %v935
    %v1046 = vadd.f32 %v697, %v976
    %v1047 = vadd.f32 %v738, %v1017
    %v1048 = vadd.f32 %v618, %v897
    %v1049 = vadd.f32 %v659, %v938
    %v1050 = vadd.f32 %v700, %v979
    %v1051 = vadd.f32 %v741, %v1020
    %v1052 = vadd.f32 %v621, %v900
    %v1053 = vadd.f32 %v662, %v941
    %v1054 = vadd.f32 %v703, %v982
    %v1055 = vadd.f32 %v744, %v1023
    %v1056 = vadd.f32 %v624, %v903
    %v1057 = vadd.f32 %v665, %v944
    %v1058 = vadd.f32 %v706, %v985
    %v1059 = vadd.f32 %v747, %v1026
    %s1060 = scalar_lea.vmem %s2, 192
    %v1061 = vld [vmem:[%s1060] sm:$0xff]
    %v1062 = vld [vmem:[%s1060 + $0x8] sm:$0xff]
    %v1063 = vld [vmem:[%s1060 + $0x10] sm:$0xff]
    %v1064 = vld [vmem:[%s1060 + $0x18] sm:$0xff]
    %v1065 = vld [vmem:[%s1060 + $0x20] sm:$0xff]
    %v1066 = vld [vmem:[%s1060 + $0x28] sm:$0xff]
    %v1067 = vld [vmem:[%s1060 + $0x30] sm:$0xff]
    %v1068 = vld [vmem:[%s1060 + $0x38] sm:$0xff]
    %v1070 = vsel %vm199, %v1061, 0
    %v1073 = vsel %vm199, %v1062, 0
    %v1076 = vsel %vm199, %v1063, 0
    %v1079 = vsel %vm199, %v1064, 0
    %v1082 = vsel %vm199, %v1065, 0
    %v1085 = vsel %vm199, %v1066, 0
    %v1088 = vsel %vm199, %v1067, 0
    %v1091 = vsel %vm199, %v1068, 0
    %1093 = vmatpush.msra.mxu0 0.0
    %1094 = vmatpush.msra.mxu0 0.0
    %1095 = vmatpush.msra.mxu0 0.0
    %1096 = vmatpush.msra.mxu0 0.0
    %1097 = vmatpush.msra.mxu0 0.0
    %1098 = vmatpush.msra.mxu0 0.0
    %1099 = vmatpush.msra.mxu0 0.0
    %1100 = vmatpush.msra.mxu0 0.0
    %1101 = vmatpush.msra.mxu0 %v190
    %1102 = vmatpush.msra.mxu0 %v189
    %1103 = vmatpush.msra.mxu0 %v188
    %1104 = vmatpush.msra.mxu0 %v187
    %1105 = vmatpush.msra.mxu0 %v186
    %1106 = vmatpush.msra.mxu0 %v185
    %1107 = vmatpush.msra.mxu0 %v184
    %1108 = vmatpush.msra.mxu0 %v183
    %1109 = vmatmul.f32.gmra.mxu0 %v1070
    %v1110 = vpop.f32.mrf.mxu0
    %v1111 = vadd.f32 0.0, %v1110
    %1112 = vmatmul.f32.gmra.mxu0 %v1073
    %v1113 = vpop.f32.mrf.mxu0
    %v1114 = vadd.f32 0.0, %v1113
    %1115 = vmatmul.f32.gmra.mxu0 %v1076
    %v1116 = vpop.f32.mrf.mxu0
    %v1117 = vadd.f32 0.0, %v1116
    %1118 = vmatmul.f32.gmra.mxu0 %v1079
    %v1119 = vpop.f32.mrf.mxu0
    %v1120 = vadd.f32 0.0, %v1119
    %1121 = vmatmul.f32.gmra.mxu0 %v1082
    %v1122 = vpop.f32.mrf.mxu0
    %v1123 = vadd.f32 0.0, %v1122
    %1124 = vmatmul.f32.gmra.mxu0 %v1085
    %v1125 = vpop.f32.mrf.mxu0
    %v1126 = vadd.f32 0.0, %v1125
    %1127 = vmatmul.f32.gmra.mxu0 %v1088
    %v1128 = vpop.f32.mrf.mxu0
    %v1129 = vadd.f32 0.0, %v1128
    %1130 = vmatmul.f32.gmra.mxu0 %v1091
    %v1131 = vpop.f32.mrf.mxu0
    %v1132 = vadd.f32 0.0, %v1131
    %1133 = vdwg.mxu0
    %s1134 = scalar_lea.vmem [#allocation2], 384
    %v1135 = vld [vmem:[%s1134] sm:$0xff]
    %v1136 = vld [vmem:[%s1134 + $0x8] sm:$0xff]
    %v1137 = vld [vmem:[%s1134 + $0x10] sm:$0xff]
    %v1138 = vld [vmem:[%s1134 + $0x18] sm:$0xff]
    %v1139 = vld [vmem:[%s1134 + $0x20] sm:$0xff]
    %v1140 = vld [vmem:[%s1134 + $0x28] sm:$0xff]
    %v1141 = vld [vmem:[%s1134 + $0x30] sm:$0xff]
    %v1142 = vld [vmem:[%s1134 + $0x38] sm:$0xff]
    %v1143 = vld [vmem:[%s1134 + $0x40] sm:$0xff]
    %v1144 = vld [vmem:[%s1134 + $0x48] sm:$0xff]
    %v1145 = vld [vmem:[%s1134 + $0x50] sm:$0xff]
    %v1146 = vld [vmem:[%s1134 + $0x58] sm:$0xff]
    %v1147 = vld [vmem:[%s1134 + $0x60] sm:$0xff]
    %v1148 = vld [vmem:[%s1134 + $0x68] sm:$0xff]
    %v1149 = vld [vmem:[%s1134 + $0x70] sm:$0xff]
    %v1150 = vld [vmem:[%s1134 + $0x78] sm:$0xff]
    %v1152 = vsel %vm372, %v1111, 0
    %v1155 = vsel %vm372, %v1114, 0
    %v1158 = vsel %vm372, %v1117, 0
    %v1161 = vsel %vm372, %v1120, 0
    %v1164 = vsel %vm372, %v1123, 0
    %v1167 = vsel %vm372, %v1126, 0
    %v1170 = vsel %vm372, %v1129, 0
    %v1173 = vsel %vm372, %v1132, 0
    %1175 = vmatpush.msra.mxu0 0.0
    %1176 = vmatpush.msra.mxu0 0.0
    %1177 = vmatpush.msra.mxu0 0.0
    %1178 = vmatpush.msra.mxu0 0.0
    %1179 = vmatpush.msra.mxu0 0.0
    %1180 = vmatpush.msra.mxu0 0.0
    %1181 = vmatpush.msra.mxu0 0.0
    %1182 = vmatpush.msra.mxu0 0.0
    %1183 = vmatpush.msra.mxu0 0.0
    %1184 = vmatpush.msra.mxu0 0.0
    %1185 = vmatpush.msra.mxu0 0.0
    %1186 = vmatpush.msra.mxu0 0.0
    %1187 = vmatpush.msra.mxu0 %v1147
    %1188 = vmatpush.msra.mxu0 %v1143
    %1189 = vmatpush.msra.mxu0 %v1139
    %1190 = vmatpush.msra.mxu0 %v1135
    %1191 = vmatmul.f32.gmra.mxu0 %v1152
    %v1192 = vpop.f32.mrf.mxu0
    %v1193 = vadd.f32 0.0, %v1192
    %1194 = vmatmul.f32.gmra.mxu0 %v1155
    %v1195 = vpop.f32.mrf.mxu0
    %v1196 = vadd.f32 0.0, %v1195
    %1197 = vmatmul.f32.gmra.mxu0 %v1158
    %v1198 = vpop.f32.mrf.mxu0
    %v1199 = vadd.f32 0.0, %v1198
    %1200 = vmatmul.f32.gmra.mxu0 %v1161
    %v1201 = vpop.f32.mrf.mxu0
    %v1202 = vadd.f32 0.0, %v1201
    %1203 = vmatmul.f32.gmra.mxu0 %v1164
    %v1204 = vpop.f32.mrf.mxu0
    %v1205 = vadd.f32 0.0, %v1204
    %1206 = vmatmul.f32.gmra.mxu0 %v1167
    %v1207 = vpop.f32.mrf.mxu0
    %v1208 = vadd.f32 0.0, %v1207
    %1209 = vmatmul.f32.gmra.mxu0 %v1170
    %v1210 = vpop.f32.mrf.mxu0
    %v1211 = vadd.f32 0.0, %v1210
    %1212 = vmatmul.f32.gmra.mxu0 %v1173
    %v1213 = vpop.f32.mrf.mxu0
    %v1214 = vadd.f32 0.0, %v1213
    %1215 = vdwg.mxu0
    %1216 = vmatpush.msra.mxu0 0.0
    %1217 = vmatpush.msra.mxu0 0.0
    %1218 = vmatpush.msra.mxu0 0.0
    %1219 = vmatpush.msra.mxu0 0.0
    %1220 = vmatpush.msra.mxu0 0.0
    %1221 = vmatpush.msra.mxu0 0.0
    %1222 = vmatpush.msra.mxu0 0.0
    %1223 = vmatpush.msra.mxu0 0.0
    %1224 = vmatpush.msra.mxu0 0.0
    %1225 = vmatpush.msra.mxu0 0.0
    %1226 = vmatpush.msra.mxu0 0.0
    %1227 = vmatpush.msra.mxu0 0.0
    %1228 = vmatpush.msra.mxu0 %v1148
    %1229 = vmatpush.msra.mxu0 %v1144
    %1230 = vmatpush.msra.mxu0 %v1140
    %1231 = vmatpush.msra.mxu0 %v1136
    %1232 = vmatmul.f32.gmra.mxu0 %v1152
    %v1233 = vpop.f32.mrf.mxu0
    %v1234 = vadd.f32 0.0, %v1233
    %1235 = vmatmul.f32.gmra.mxu0 %v1155
    %v1236 = vpop.f32.mrf.mxu0
    %v1237 = vadd.f32 0.0, %v1236
    %1238 = vmatmul.f32.gmra.mxu0 %v1158
    %v1239 = vpop.f32.mrf.mxu0
    %v1240 = vadd.f32 0.0, %v1239
    %1241 = vmatmul.f32.gmra.mxu0 %v1161
    %v1242 = vpop.f32.mrf.mxu0
    %v1243 = vadd.f32 0.0, %v1242
    %1244 = vmatmul.f32.gmra.mxu0 %v1164
    %v1245 = vpop.f32.mrf.mxu0
    %v1246 = vadd.f32 0.0, %v1245
    %1247 = vmatmul.f32.gmra.mxu0 %v1167
    %v1248 = vpop.f32.mrf.mxu0
    %v1249 = vadd.f32 0.0, %v1248
    %1250 = vmatmul.f32.gmra.mxu0 %v1170
    %v1251 = vpop.f32.mrf.mxu0
    %v1252 = vadd.f32 0.0, %v1251
    %1253 = vmatmul.f32.gmra.mxu0 %v1173
    %v1254 = vpop.f32.mrf.mxu0
    %v1255 = vadd.f32 0.0, %v1254
    %1256 = vdwg.mxu0
    %1257 = vmatpush.msra.mxu0 0.0
    %1258 = vmatpush.msra.mxu0 0.0
    %1259 = vmatpush.msra.mxu0 0.0
    %1260 = vmatpush.msra.mxu0 0.0
    %1261 = vmatpush.msra.mxu0 0.0
    %1262 = vmatpush.msra.mxu0 0.0
    %1263 = vmatpush.msra.mxu0 0.0
    %1264 = vmatpush.msra.mxu0 0.0
    %1265 = vmatpush.msra.mxu0 0.0
    %1266 = vmatpush.msra.mxu0 0.0
    %1267 = vmatpush.msra.mxu0 0.0
    %1268 = vmatpush.msra.mxu0 0.0
    %1269 = vmatpush.msra.mxu0 %v1149
    %1270 = vmatpush.msra.mxu0 %v1145
    %1271 = vmatpush.msra.mxu0 %v1141
    %1272 = vmatpush.msra.mxu0 %v1137
    %1273 = vmatmul.f32.gmra.mxu0 %v1152
    %v1274 = vpop.f32.mrf.mxu0
    %v1275 = vadd.f32 0.0, %v1274
    %1276 = vmatmul.f32.gmra.mxu0 %v1155
    %v1277 = vpop.f32.mrf.mxu0
    %v1278 = vadd.f32 0.0, %v1277
    %1279 = vmatmul.f32.gmra.mxu0 %v1158
    %v1280 = vpop.f32.mrf.mxu0
    %v1281 = vadd.f32 0.0, %v1280
    %1282 = vmatmul.f32.gmra.mxu0 %v1161
    %v1283 = vpop.f32.mrf.mxu0
    %v1284 = vadd.f32 0.0, %v1283
    %1285 = vmatmul.f32.gmra.mxu0 %v1164
    %v1286 = vpop.f32.mrf.mxu0
    %v1287 = vadd.f32 0.0, %v1286
    %1288 = vmatmul.f32.gmra.mxu0 %v1167
    %v1289 = vpop.f32.mrf.mxu0
    %v1290 = vadd.f32 0.0, %v1289
    %1291 = vmatmul.f32.gmra.mxu0 %v1170
    %v1292 = vpop.f32.mrf.mxu0
    %v1293 = vadd.f32 0.0, %v1292
    %1294 = vmatmul.f32.gmra.mxu0 %v1173
    %v1295 = vpop.f32.mrf.mxu0
    %v1296 = vadd.f32 0.0, %v1295
    %1297 = vdwg.mxu0
    %1298 = vmatpush.msra.mxu0 0.0
    %1299 = vmatpush.msra.mxu0 0.0
    %1300 = vmatpush.msra.mxu0 0.0
    %1301 = vmatpush.msra.mxu0 0.0
    %1302 = vmatpush.msra.mxu0 0.0
    %1303 = vmatpush.msra.mxu0 0.0
    %1304 = vmatpush.msra.mxu0 0.0
    %1305 = vmatpush.msra.mxu0 0.0
    %1306 = vmatpush.msra.mxu0 0.0
    %1307 = vmatpush.msra.mxu0 0.0
    %1308 = vmatpush.msra.mxu0 0.0
    %1309 = vmatpush.msra.mxu0 0.0
    %1310 = vmatpush.msra.mxu0 %v1150
    %1311 = vmatpush.msra.mxu0 %v1146
    %1312 = vmatpush.msra.mxu0 %v1142
    %1313 = vmatpush.msra.mxu0 %v1138
    %1314 = vmatmul.f32.gmra.mxu0 %v1152
    %v1315 = vpop.f32.mrf.mxu0
    %v1316 = vadd.f32 0.0, %v1315
    %1317 = vmatmul.f32.gmra.mxu0 %v1155
    %v1318 = vpop.f32.mrf.mxu0
    %v1319 = vadd.f32 0.0, %v1318
    %1320 = vmatmul.f32.gmra.mxu0 %v1158
    %v1321 = vpop.f32.mrf.mxu0
    %v1322 = vadd.f32 0.0, %v1321
    %1323 = vmatmul.f32.gmra.mxu0 %v1161
    %v1324 = vpop.f32.mrf.mxu0
    %v1325 = vadd.f32 0.0, %v1324
    %1326 = vmatmul.f32.gmra.mxu0 %v1164
    %v1327 = vpop.f32.mrf.mxu0
    %v1328 = vadd.f32 0.0, %v1327
    %1329 = vmatmul.f32.gmra.mxu0 %v1167
    %v1330 = vpop.f32.mrf.mxu0
    %v1331 = vadd.f32 0.0, %v1330
    %1332 = vmatmul.f32.gmra.mxu0 %v1170
    %v1333 = vpop.f32.mrf.mxu0
    %v1334 = vadd.f32 0.0, %v1333
    %1335 = vmatmul.f32.gmra.mxu0 %v1173
    %v1336 = vpop.f32.mrf.mxu0
    %v1337 = vadd.f32 0.0, %v1336
    %1338 = vdwg.mxu0
    %v1339 = vadd.f32 %v1028, %v1193
    %v1340 = vadd.f32 %v1029, %v1234
    %v1341 = vadd.f32 %v1030, %v1275
    %v1342 = vadd.f32 %v1031, %v1316
    %v1343 = vadd.f32 %v1032, %v1196
    %v1344 = vadd.f32 %v1033, %v1237
    %v1345 = vadd.f32 %v1034, %v1278
    %v1346 = vadd.f32 %v1035, %v1319
    %v1347 = vadd.f32 %v1036, %v1199
    %v1348 = vadd.f32 %v1037, %v1240
    %v1349 = vadd.f32 %v1038, %v1281
    %v1350 = vadd.f32 %v1039, %v1322
    %v1351 = vadd.f32 %v1040, %v1202
    %v1352 = vadd.f32 %v1041, %v1243
    %v1353 = vadd.f32 %v1042, %v1284
    %v1354 = vadd.f32 %v1043, %v1325
    %v1355 = vadd.f32 %v1044, %v1205
    %v1356 = vadd.f32 %v1045, %v1246
    %v1357 = vadd.f32 %v1046, %v1287
    %v1358 = vadd.f32 %v1047, %v1328
    %v1359 = vadd.f32 %v1048, %v1208
    %v1360 = vadd.f32 %v1049, %v1249
    %v1361 = vadd.f32 %v1050, %v1290
    %v1362 = vadd.f32 %v1051, %v1331
    %v1363 = vadd.f32 %v1052, %v1211
    %v1364 = vadd.f32 %v1053, %v1252
    %v1365 = vadd.f32 %v1054, %v1293
    %v1366 = vadd.f32 %v1055, %v1334
    %v1367 = vadd.f32 %v1056, %v1214
    %v1368 = vadd.f32 %v1057, %v1255
    %v1369 = vadd.f32 %v1058, %v1296
    %v1370 = vadd.f32 %v1059, %v1337
    %s1371 = scalar_lea.vmem %s2, 256
    %v1372 = vld [vmem:[%s1371] sm:$0xff]
    %v1373 = vld [vmem:[%s1371 + $0x8] sm:$0xff]
    %v1374 = vld [vmem:[%s1371 + $0x10] sm:$0xff]
    %v1375 = vld [vmem:[%s1371 + $0x18] sm:$0xff]
    %v1376 = vld [vmem:[%s1371 + $0x20] sm:$0xff]
    %v1377 = vld [vmem:[%s1371 + $0x28] sm:$0xff]
    %v1378 = vld [vmem:[%s1371 + $0x30] sm:$0xff]
    %v1379 = vld [vmem:[%s1371 + $0x38] sm:$0xff]
    %v1381 = vsel %vm199, %v1372, 0
    %v1384 = vsel %vm199, %v1373, 0
    %v1387 = vsel %vm199, %v1374, 0
    %v1390 = vsel %vm199, %v1375, 0
    %v1393 = vsel %vm199, %v1376, 0
    %v1396 = vsel %vm199, %v1377, 0
    %v1399 = vsel %vm199, %v1378, 0
    %v1402 = vsel %vm199, %v1379, 0
    %1404 = vmatpush.msra.mxu0 0.0
    %1405 = vmatpush.msra.mxu0 0.0
    %1406 = vmatpush.msra.mxu0 0.0
    %1407 = vmatpush.msra.mxu0 0.0
    %1408 = vmatpush.msra.mxu0 0.0
    %1409 = vmatpush.msra.mxu0 0.0
    %1410 = vmatpush.msra.mxu0 0.0
    %1411 = vmatpush.msra.mxu0 0.0
    %1412 = vmatpush.msra.mxu0 %v190
    %1413 = vmatpush.msra.mxu0 %v189
    %1414 = vmatpush.msra.mxu0 %v188
    %1415 = vmatpush.msra.mxu0 %v187
    %1416 = vmatpush.msra.mxu0 %v186
    %1417 = vmatpush.msra.mxu0 %v185
    %1418 = vmatpush.msra.mxu0 %v184
    %1419 = vmatpush.msra.mxu0 %v183
    %1420 = vmatmul.f32.gmra.mxu0 %v1381
    %v1421 = vpop.f32.mrf.mxu0
    %v1422 = vadd.f32 0.0, %v1421
    %1423 = vmatmul.f32.gmra.mxu0 %v1384
    %v1424 = vpop.f32.mrf.mxu0
    %v1425 = vadd.f32 0.0, %v1424
    %1426 = vmatmul.f32.gmra.mxu0 %v1387
    %v1427 = vpop.f32.mrf.mxu0
    %v1428 = vadd.f32 0.0, %v1427
    %1429 = vmatmul.f32.gmra.mxu0 %v1390
    %v1430 = vpop.f32.mrf.mxu0
    %v1431 = vadd.f32 0.0, %v1430
    %1432 = vmatmul.f32.gmra.mxu0 %v1393
    %v1433 = vpop.f32.mrf.mxu0
    %v1434 = vadd.f32 0.0, %v1433
    %1435 = vmatmul.f32.gmra.mxu0 %v1396
    %v1436 = vpop.f32.mrf.mxu0
    %v1437 = vadd.f32 0.0, %v1436
    %1438 = vmatmul.f32.gmra.mxu0 %v1399
    %v1439 = vpop.f32.mrf.mxu0
    %v1440 = vadd.f32 0.0, %v1439
    %1441 = vmatmul.f32.gmra.mxu0 %v1402
    %v1442 = vpop.f32.mrf.mxu0
    %v1443 = vadd.f32 0.0, %v1442
    %1444 = vdwg.mxu0
    %s1445 = scalar_lea.vmem [#allocation2], 512
    %v1446 = vld [vmem:[%s1445] sm:$0xff]
    %v1447 = vld [vmem:[%s1445 + $0x8] sm:$0xff]
    %v1448 = vld [vmem:[%s1445 + $0x10] sm:$0xff]
    %v1449 = vld [vmem:[%s1445 + $0x18] sm:$0xff]
    %v1450 = vld [vmem:[%s1445 + $0x20] sm:$0xff]
    %v1451 = vld [vmem:[%s1445 + $0x28] sm:$0xff]
    %v1452 = vld [vmem:[%s1445 + $0x30] sm:$0xff]
    %v1453 = vld [vmem:[%s1445 + $0x38] sm:$0xff]
    %v1454 = vld [vmem:[%s1445 + $0x40] sm:$0xff]
    %v1455 = vld [vmem:[%s1445 + $0x48] sm:$0xff]
    %v1456 = vld [vmem:[%s1445 + $0x50] sm:$0xff]
    %v1457 = vld [vmem:[%s1445 + $0x58] sm:$0xff]
    %v1458 = vld [vmem:[%s1445 + $0x60] sm:$0xff]
    %v1459 = vld [vmem:[%s1445 + $0x68] sm:$0xff]
    %v1460 = vld [vmem:[%s1445 + $0x70] sm:$0xff]
    %v1461 = vld [vmem:[%s1445 + $0x78] sm:$0xff]
    %v1463 = vsel %vm372, %v1422, 0
    %v1466 = vsel %vm372, %v1425, 0
    %v1469 = vsel %vm372, %v1428, 0
    %v1472 = vsel %vm372, %v1431, 0
    %v1475 = vsel %vm372, %v1434, 0
    %v1478 = vsel %vm372, %v1437, 0
    %v1481 = vsel %vm372, %v1440, 0
    %v1484 = vsel %vm372, %v1443, 0
    %1486 = vmatpush.msra.mxu0 0.0
    %1487 = vmatpush.msra.mxu0 0.0
    %1488 = vmatpush.msra.mxu0 0.0
    %1489 = vmatpush.msra.mxu0 0.0
    %1490 = vmatpush.msra.mxu0 0.0
    %1491 = vmatpush.msra.mxu0 0.0
    %1492 = vmatpush.msra.mxu0 0.0
    %1493 = vmatpush.msra.mxu0 0.0
    %1494 = vmatpush.msra.mxu0 0.0
    %1495 = vmatpush.msra.mxu0 0.0
    %1496 = vmatpush.msra.mxu0 0.0
    %1497 = vmatpush.msra.mxu0 0.0
    %1498 = vmatpush.msra.mxu0 %v1458
    %1499 = vmatpush.msra.mxu0 %v1454
    %1500 = vmatpush.msra.mxu0 %v1450
    %1501 = vmatpush.msra.mxu0 %v1446
    %1502 = vmatmul.f32.gmra.mxu0 %v1463
    %v1503 = vpop.f32.mrf.mxu0
    %v1504 = vadd.f32 0.0, %v1503
    %1505 = vmatmul.f32.gmra.mxu0 %v1466
    %v1506 = vpop.f32.mrf.mxu0
    %v1507 = vadd.f32 0.0, %v1506
    %1508 = vmatmul.f32.gmra.mxu0 %v1469
    %v1509 = vpop.f32.mrf.mxu0
    %v1510 = vadd.f32 0.0, %v1509
    %1511 = vmatmul.f32.gmra.mxu0 %v1472
    %v1512 = vpop.f32.mrf.mxu0
    %v1513 = vadd.f32 0.0, %v1512
    %1514 = vmatmul.f32.gmra.mxu0 %v1475
    %v1515 = vpop.f32.mrf.mxu0
    %v1516 = vadd.f32 0.0, %v1515
    %1517 = vmatmul.f32.gmra.mxu0 %v1478
    %v1518 = vpop.f32.mrf.mxu0
    %v1519 = vadd.f32 0.0, %v1518
    %1520 = vmatmul.f32.gmra.mxu0 %v1481
    %v1521 = vpop.f32.mrf.mxu0
    %v1522 = vadd.f32 0.0, %v1521
    %1523 = vmatmul.f32.gmra.mxu0 %v1484
    %v1524 = vpop.f32.mrf.mxu0
    %v1525 = vadd.f32 0.0, %v1524
    %1526 = vdwg.mxu0
    %1527 = vmatpush.msra.mxu0 0.0
    %1528 = vmatpush.msra.mxu0 0.0
    %1529 = vmatpush.msra.mxu0 0.0
    %1530 = vmatpush.msra.mxu0 0.0
    %1531 = vmatpush.msra.mxu0 0.0
    %1532 = vmatpush.msra.mxu0 0.0
    %1533 = vmatpush.msra.mxu0 0.0
    %1534 = vmatpush.msra.mxu0 0.0
    %1535 = vmatpush.msra.mxu0 0.0
    %1536 = vmatpush.msra.mxu0 0.0
    %1537 = vmatpush.msra.mxu0 0.0
    %1538 = vmatpush.msra.mxu0 0.0
    %1539 = vmatpush.msra.mxu0 %v1459
    %1540 = vmatpush.msra.mxu0 %v1455
    %1541 = vmatpush.msra.mxu0 %v1451
    %1542 = vmatpush.msra.mxu0 %v1447
    %1543 = vmatmul.f32.gmra.mxu0 %v1463
    %v1544 = vpop.f32.mrf.mxu0
    %v1545 = vadd.f32 0.0, %v1544
    %1546 = vmatmul.f32.gmra.mxu0 %v1466
    %v1547 = vpop.f32.mrf.mxu0
    %v1548 = vadd.f32 0.0, %v1547
    %1549 = vmatmul.f32.gmra.mxu0 %v1469
    %v1550 = vpop.f32.mrf.mxu0
    %v1551 = vadd.f32 0.0, %v1550
    %1552 = vmatmul.f32.gmra.mxu0 %v1472
    %v1553 = vpop.f32.mrf.mxu0
    %v1554 = vadd.f32 0.0, %v1553
    %1555 = vmatmul.f32.gmra.mxu0 %v1475
    %v1556 = vpop.f32.mrf.mxu0
    %v1557 = vadd.f32 0.0, %v1556
    %1558 = vmatmul.f32.gmra.mxu0 %v1478
    %v1559 = vpop.f32.mrf.mxu0
    %v1560 = vadd.f32 0.0, %v1559
    %1561 = vmatmul.f32.gmra.mxu0 %v1481
    %v1562 = vpop.f32.mrf.mxu0
    %v1563 = vadd.f32 0.0, %v1562
    %1564 = vmatmul.f32.gmra.mxu0 %v1484
    %v1565 = vpop.f32.mrf.mxu0
    %v1566 = vadd.f32 0.0, %v1565
    %1567 = vdwg.mxu0
    %1568 = vmatpush.msra.mxu0 0.0
    %1569 = vmatpush.msra.mxu0 0.0
    %1570 = vmatpush.msra.mxu0 0.0
    %1571 = vmatpush.msra.mxu0 0.0
    %1572 = vmatpush.msra.mxu0 0.0
    %1573 = vmatpush.msra.mxu0 0.0
    %1574 = vmatpush.msra.mxu0 0.0
    %1575 = vmatpush.msra.mxu0 0.0
    %1576 = vmatpush.msra.mxu0 0.0
    %1577 = vmatpush.msra.mxu0 0.0
    %1578 = vmatpush.msra.mxu0 0.0
    %1579 = vmatpush.msra.mxu0 0.0
    %1580 = vmatpush.msra.mxu0 %v1460
    %1581 = vmatpush.msra.mxu0 %v1456
    %1582 = vmatpush.msra.mxu0 %v1452
    %1583 = vmatpush.msra.mxu0 %v1448
    %1584 = vmatmul.f32.gmra.mxu0 %v1463
    %v1585 = vpop.f32.mrf.mxu0
    %v1586 = vadd.f32 0.0, %v1585
    %1587 = vmatmul.f32.gmra.mxu0 %v1466
    %v1588 = vpop.f32.mrf.mxu0
    %v1589 = vadd.f32 0.0, %v1588
    %1590 = vmatmul.f32.gmra.mxu0 %v1469
    %v1591 = vpop.f32.mrf.mxu0
    %v1592 = vadd.f32 0.0, %v1591
    %1593 = vmatmul.f32.gmra.mxu0 %v1472
    %v1594 = vpop.f32.mrf.mxu0
    %v1595 = vadd.f32 0.0, %v1594
    %1596 = vmatmul.f32.gmra.mxu0 %v1475
    %v1597 = vpop.f32.mrf.mxu0
    %v1598 = vadd.f32 0.0, %v1597
    %1599 = vmatmul.f32.gmra.mxu0 %v1478
    %v1600 = vpop.f32.mrf.mxu0
    %v1601 = vadd.f32 0.0, %v1600
    %1602 = vmatmul.f32.gmra.mxu0 %v1481
    %v1603 = vpop.f32.mrf.mxu0
    %v1604 = vadd.f32 0.0, %v1603
    %1605 = vmatmul.f32.gmra.mxu0 %v1484
    %v1606 = vpop.f32.mrf.mxu0
    %v1607 = vadd.f32 0.0, %v1606
    %1608 = vdwg.mxu0
    %1609 = vmatpush.msra.mxu0 0.0
    %1610 = vmatpush.msra.mxu0 0.0
    %1611 = vmatpush.msra.mxu0 0.0
    %1612 = vmatpush.msra.mxu0 0.0
    %1613 = vmatpush.msra.mxu0 0.0
    %1614 = vmatpush.msra.mxu0 0.0
    %1615 = vmatpush.msra.mxu0 0.0
    %1616 = vmatpush.msra.mxu0 0.0
    %1617 = vmatpush.msra.mxu0 0.0
    %1618 = vmatpush.msra.mxu0 0.0
    %1619 = vmatpush.msra.mxu0 0.0
    %1620 = vmatpush.msra.mxu0 0.0
    %1621 = vmatpush.msra.mxu0 %v1461
    %1622 = vmatpush.msra.mxu0 %v1457
    %1623 = vmatpush.msra.mxu0 %v1453
    %1624 = vmatpush.msra.mxu0 %v1449
    %1625 = vmatmul.f32.gmra.mxu0 %v1463
    %v1626 = vpop.f32.mrf.mxu0
    %v1627 = vadd.f32 0.0, %v1626
    %1628 = vmatmul.f32.gmra.mxu0 %v1466
    %v1629 = vpop.f32.mrf.mxu0
    %v1630 = vadd.f32 0.0, %v1629
    %1631 = vmatmul.f32.gmra.mxu0 %v1469
    %v1632 = vpop.f32.mrf.mxu0
    %v1633 = vadd.f32 0.0, %v1632
    %1634 = vmatmul.f32.gmra.mxu0 %v1472
    %v1635 = vpop.f32.mrf.mxu0
    %v1636 = vadd.f32 0.0, %v1635
    %1637 = vmatmul.f32.gmra.mxu0 %v1475
    %v1638 = vpop.f32.mrf.mxu0
    %v1639 = vadd.f32 0.0, %v1638
    %1640 = vmatmul.f32.gmra.mxu0 %v1478
    %v1641 = vpop.f32.mrf.mxu0
    %v1642 = vadd.f32 0.0, %v1641
    %1643 = vmatmul.f32.gmra.mxu0 %v1481
    %v1644 = vpop.f32.mrf.mxu0
    %v1645 = vadd.f32 0.0, %v1644
    %1646 = vmatmul.f32.gmra.mxu0 %v1484
    %v1647 = vpop.f32.mrf.mxu0
    %v1648 = vadd.f32 0.0, %v1647
    %1649 = vdwg.mxu0
    %v1650 = vadd.f32 %v1339, %v1504
    %v1651 = vadd.f32 %v1340, %v1545
    %v1652 = vadd.f32 %v1341, %v1586
    %v1653 = vadd.f32 %v1342, %v1627
    %v1654 = vadd.f32 %v1343, %v1507
    %v1655 = vadd.f32 %v1344, %v1548
    %v1656 = vadd.f32 %v1345, %v1589
    %v1657 = vadd.f32 %v1346, %v1630
    %v1658 = vadd.f32 %v1347, %v1510
    %v1659 = vadd.f32 %v1348, %v1551
    %v1660 = vadd.f32 %v1349, %v1592
    %v1661 = vadd.f32 %v1350, %v1633
    %v1662 = vadd.f32 %v1351, %v1513
    %v1663 = vadd.f32 %v1352, %v1554
    %v1664 = vadd.f32 %v1353, %v1595
    %v1665 = vadd.f32 %v1354, %v1636
    %v1666 = vadd.f32 %v1355, %v1516
    %v1667 = vadd.f32 %v1356, %v1557
    %v1668 = vadd.f32 %v1357, %v1598
    %v1669 = vadd.f32 %v1358, %v1639
    %v1670 = vadd.f32 %v1359, %v1519
    %v1671 = vadd.f32 %v1360, %v1560
    %v1672 = vadd.f32 %v1361, %v1601
    %v1673 = vadd.f32 %v1362, %v1642
    %v1674 = vadd.f32 %v1363, %v1522
    %v1675 = vadd.f32 %v1364, %v1563
    %v1676 = vadd.f32 %v1365, %v1604
    %v1677 = vadd.f32 %v1366, %v1645
    %v1678 = vadd.f32 %v1367, %v1525
    %v1679 = vadd.f32 %v1368, %v1566
    %v1680 = vadd.f32 %v1369, %v1607
    %v1681 = vadd.f32 %v1370, %v1648
    %v1682 = vld [vmem:[%s3] sm:$0xf]
    %v1684 = vperm.slane %v1682, 0
    %v1685 = vperm.slane %v1682, 1
    %v1686 = vperm.slane %v1682, 2
    %v1687 = vperm.slane %v1682, 3
    %v1692 = vadd.f32 %v1650, %v1684
    %v1693 = vadd.f32 %v1651, %v1685
    %v1694 = vadd.f32 %v1652, %v1686
    %v1695 = vadd.f32 %v1653, %v1687
    %v1696 = vadd.f32 %v1654, %v1684
    %v1697 = vadd.f32 %v1655, %v1685
    %v1698 = vadd.f32 %v1656, %v1686
    %v1699 = vadd.f32 %v1657, %v1687
    %v1700 = vadd.f32 %v1658, %v1684
    %v1701 = vadd.f32 %v1659, %v1685
    %v1702 = vadd.f32 %v1660, %v1686
    %v1703 = vadd.f32 %v1661, %v1687
    %v1704 = vadd.f32 %v1662, %v1684
    %v1705 = vadd.f32 %v1663, %v1685
    %v1706 = vadd.f32 %v1664, %v1686
    %v1707 = vadd.f32 %v1665, %v1687
    %v1708 = vadd.f32 %v1666, %v1684
    %v1709 = vadd.f32 %v1667, %v1685
    %v1710 = vadd.f32 %v1668, %v1686
    %v1711 = vadd.f32 %v1669, %v1687
    %v1712 = vadd.f32 %v1670, %v1684
    %v1713 = vadd.f32 %v1671, %v1685
    %v1714 = vadd.f32 %v1672, %v1686
    %v1715 = vadd.f32 %v1673, %v1687
    %v1716 = vadd.f32 %v1674, %v1684
    %v1717 = vadd.f32 %v1675, %v1685
    %v1718 = vadd.f32 %v1676, %v1686
    %v1719 = vadd.f32 %v1677, %v1687
    %v1720 = vadd.f32 %v1678, %v1684
    %v1721 = vadd.f32 %v1679, %v1685
    %v1722 = vadd.f32 %v1680, %v1686
    %v1723 = vadd.f32 %v1681, %v1687
    %v1724 = vmax.f32 %v1692, 0.0
    %v1725 = vmax.f32 %v1693, 0.0
    %v1726 = vmax.f32 %v1694, 0.0
    %v1727 = vmax.f32 %v1695, 0.0
    %v1728 = vmax.f32 %v1696, 0.0
    %v1729 = vmax.f32 %v1697, 0.0
    %v1730 = vmax.f32 %v1698, 0.0
    %v1731 = vmax.f32 %v1699, 0.0
    %v1732 = vmax.f32 %v1700, 0.0
    %v1733 = vmax.f32 %v1701, 0.0
    %v1734 = vmax.f32 %v1702, 0.0
    %v1735 = vmax.f32 %v1703, 0.0
    %v1736 = vmax.f32 %v1704, 0.0
    %v1737 = vmax.f32 %v1705, 0.0
    %v1738 = vmax.f32 %v1706, 0.0
    %v1739 = vmax.f32 %v1707, 0.0
    %v1740 = vmax.f32 %v1708, 0.0
    %v1741 = vmax.f32 %v1709, 0.0
    %v1742 = vmax.f32 %v1710, 0.0
    %v1743 = vmax.f32 %v1711, 0.0
    %v1744 = vmax.f32 %v1712, 0.0
    %v1745 = vmax.f32 %v1713, 0.0
    %v1746 = vmax.f32 %v1714, 0.0
    %v1747 = vmax.f32 %v1715, 0.0
    %v1748 = vmax.f32 %v1716, 0.0
    %v1749 = vmax.f32 %v1717, 0.0
    %v1750 = vmax.f32 %v1718, 0.0
    %v1751 = vmax.f32 %v1719, 0.0
    %v1752 = vmax.f32 %v1720, 0.0
    %v1753 = vmax.f32 %v1721, 0.0
    %v1754 = vmax.f32 %v1722, 0.0
    %v1755 = vmax.f32 %v1723, 0.0
    %v1756 = vld [vmem:[#allocation5] sm:$0xff]
    %v1757 = vld [vmem:[#allocation5 + $0x8] sm:$0xff]
    %v1758 = vld [vmem:[#allocation5 + $0x10] sm:$0xff]
    %v1759 = vld [vmem:[#allocation5 + $0x18] sm:$0xff]
    %v1761 = vsel %vm199, %v1756, 0
    %v1764 = vsel %vm199, %v1757, 0
    %v1767 = vsel %vm199, %v1758, 0
    %v1770 = vsel %vm199, %v1759, 0
    %1772 = vmatpush.msra.mxu0 0.0
    %1773 = vmatpush.msra.mxu0 0.0
    %1774 = vmatpush.msra.mxu0 0.0
    %1775 = vmatpush.msra.mxu0 0.0
    %1776 = vmatpush.msra.mxu0 0.0
    %1777 = vmatpush.msra.mxu0 0.0
    %1778 = vmatpush.msra.mxu0 0.0
    %1779 = vmatpush.msra.mxu0 0.0
    %1780 = vmatpush.msra.mxu0 %v1752
    %1781 = vmatpush.msra.mxu0 %v1748
    %1782 = vmatpush.msra.mxu0 %v1744
    %1783 = vmatpush.msra.mxu0 %v1740
    %1784 = vmatpush.msra.mxu0 %v1736
    %1785 = vmatpush.msra.mxu0 %v1732
    %1786 = vmatpush.msra.mxu0 %v1728
    %1787 = vmatpush.msra.mxu0 %v1724
    %1788 = vmatmul.f32.gmra.mxu0 %v1761
    %v1789 = vpop.f32.mrf.mxu0
    %v1790 = vadd.f32 0.0, %v1789
    %1791 = vmatmul.f32.gmra.mxu0 %v1764
    %v1792 = vpop.f32.mrf.mxu0
    %v1793 = vadd.f32 0.0, %v1792
    %1794 = vmatmul.f32.gmra.mxu0 %v1767
    %v1795 = vpop.f32.mrf.mxu0
    %v1796 = vadd.f32 0.0, %v1795
    %1797 = vmatmul.f32.gmra.mxu0 %v1770
    %v1798 = vpop.f32.mrf.mxu0
    %v1799 = vadd.f32 0.0, %v1798
    %1800 = vdwg.mxu0
    %1801 = vmatpush.msra.mxu0 0.0
    %1802 = vmatpush.msra.mxu0 0.0
    %1803 = vmatpush.msra.mxu0 0.0
    %1804 = vmatpush.msra.mxu0 0.0
    %1805 = vmatpush.msra.mxu0 0.0
    %1806 = vmatpush.msra.mxu0 0.0
    %1807 = vmatpush.msra.mxu0 0.0
    %1808 = vmatpush.msra.mxu0 0.0
    %1809 = vmatpush.msra.mxu0 %v1753
    %1810 = vmatpush.msra.mxu0 %v1749
    %1811 = vmatpush.msra.mxu0 %v1745
    %1812 = vmatpush.msra.mxu0 %v1741
    %1813 = vmatpush.msra.mxu0 %v1737
    %1814 = vmatpush.msra.mxu0 %v1733
    %1815 = vmatpush.msra.mxu0 %v1729
    %1816 = vmatpush.msra.mxu0 %v1725
    %1817 = vmatmul.f32.gmra.mxu0 %v1761
    %v1818 = vpop.f32.mrf.mxu0
    %v1819 = vadd.f32 0.0, %v1818
    %1820 = vmatmul.f32.gmra.mxu0 %v1764
    %v1821 = vpop.f32.mrf.mxu0
    %v1822 = vadd.f32 0.0, %v1821
    %1823 = vmatmul.f32.gmra.mxu0 %v1767
    %v1824 = vpop.f32.mrf.mxu0
    %v1825 = vadd.f32 0.0, %v1824
    %1826 = vmatmul.f32.gmra.mxu0 %v1770
    %v1827 = vpop.f32.mrf.mxu0
    %v1828 = vadd.f32 0.0, %v1827
    %1829 = vdwg.mxu0
    %1830 = vmatpush.msra.mxu0 0.0
    %1831 = vmatpush.msra.mxu0 0.0
    %1832 = vmatpush.msra.mxu0 0.0
    %1833 = vmatpush.msra.mxu0 0.0
    %1834 = vmatpush.msra.mxu0 0.0
    %1835 = vmatpush.msra.mxu0 0.0
    %1836 = vmatpush.msra.mxu0 0.0
    %1837 = vmatpush.msra.mxu0 0.0
    %1838 = vmatpush.msra.mxu0 %v1754
    %1839 = vmatpush.msra.mxu0 %v1750
    %1840 = vmatpush.msra.mxu0 %v1746
    %1841 = vmatpush.msra.mxu0 %v1742
    %1842 = vmatpush.msra.mxu0 %v1738
    %1843 = vmatpush.msra.mxu0 %v1734
    %1844 = vmatpush.msra.mxu0 %v1730
    %1845 = vmatpush.msra.mxu0 %v1726
    %1846 = vmatmul.f32.gmra.mxu0 %v1761
    %v1847 = vpop.f32.mrf.mxu0
    %v1848 = vadd.f32 0.0, %v1847
    %1849 = vmatmul.f32.gmra.mxu0 %v1764
    %v1850 = vpop.f32.mrf.mxu0
    %v1851 = vadd.f32 0.0, %v1850
    %1852 = vmatmul.f32.gmra.mxu0 %v1767
    %v1853 = vpop.f32.mrf.mxu0
    %v1854 = vadd.f32 0.0, %v1853
    %1855 = vmatmul.f32.gmra.mxu0 %v1770
    %v1856 = vpop.f32.mrf.mxu0
    %v1857 = vadd.f32 0.0, %v1856
    %1858 = vdwg.mxu0
    %1859 = vmatpush.msra.mxu0 0.0
    %1860 = vmatpush.msra.mxu0 0.0
    %1861 = vmatpush.msra.mxu0 0.0
    %1862 = vmatpush.msra.mxu0 0.0
    %1863 = vmatpush.msra.mxu0 0.0
    %1864 = vmatpush.msra.mxu0 0.0
    %1865 = vmatpush.msra.mxu0 0.0
    %1866 = vmatpush.msra.mxu0 0.0
    %1867 = vmatpush.msra.mxu0 %v1755
    %1868 = vmatpush.msra.mxu0 %v1751
    %1869 = vmatpush.msra.mxu0 %v1747
    %1870 = vmatpush.msra.mxu0 %v1743
    %1871 = vmatpush.msra.mxu0 %v1739
    %1872 = vmatpush.msra.mxu0 %v1735
    %1873 = vmatpush.msra.mxu0 %v1731
    %1874 = vmatpush.msra.mxu0 %v1727
    %1875 = vmatmul.f32.gmra.mxu0 %v1761
    %v1876 = vpop.f32.mrf.mxu0
    %v1877 = vadd.f32 0.0, %v1876
    %1878 = vmatmul.f32.gmra.mxu0 %v1764
    %v1879 = vpop.f32.mrf.mxu0
    %v1880 = vadd.f32 0.0, %v1879
    %1881 = vmatmul.f32.gmra.mxu0 %v1767
    %v1882 = vpop.f32.mrf.mxu0
    %v1883 = vadd.f32 0.0, %v1882
    %1884 = vmatmul.f32.gmra.mxu0 %v1770
    %v1885 = vpop.f32.mrf.mxu0
    %v1886 = vadd.f32 0.0, %v1885
    %1887 = vdwg.mxu0
    %v1888 = vld [vmem:[%s5] sm:$0xff]
    %v1889 = vld [vmem:[%s5 + $0x8] sm:$0xff]
    %v1890 = vld [vmem:[%s5 + $0x10] sm:$0xff]
    %v1891 = vld [vmem:[%s5 + $0x18] sm:$0xff]
    %v1893 = vsel %vm199, %v1888, 0
    %v1896 = vsel %vm199, %v1889, 0
    %v1899 = vsel %vm199, %v1890, 0
    %v1902 = vsel %vm199, %v1891, 0
    %1904 = vmatpush.msra.mxu0 0.0
    %1905 = vmatpush.msra.mxu0 0.0
    %1906 = vmatpush.msra.mxu0 0.0
    %1907 = vmatpush.msra.mxu0 0.0
    %1908 = vmatpush.msra.mxu0 0.0
    %1909 = vmatpush.msra.mxu0 0.0
    %1910 = vmatpush.msra.mxu0 0.0
    %1911 = vmatpush.msra.mxu0 0.0
    %1912 = vmatpush.msra.mxu0 %v1752
    %1913 = vmatpush.msra.mxu0 %v1748
    %1914 = vmatpush.msra.mxu0 %v1744
    %1915 = vmatpush.msra.mxu0 %v1740
    %1916 = vmatpush.msra.mxu0 %v1736
    %1917 = vmatpush.msra.mxu0 %v1732
    %1918 = vmatpush.msra.mxu0 %v1728
    %1919 = vmatpush.msra.mxu0 %v1724
    %1920 = vmatmul.f32.gmra.mxu0 %v1893
    %v1921 = vpop.f32.mrf.mxu0
    %v1922 = vadd.f32 0.0, %v1921
    %1923 = vmatmul.f32.gmra.mxu0 %v1896
    %v1924 = vpop.f32.mrf.mxu0
    %v1925 = vadd.f32 0.0, %v1924
    %1926 = vmatmul.f32.gmra.mxu0 %v1899
    %v1927 = vpop.f32.mrf.mxu0
    %v1928 = vadd.f32 0.0, %v1927
    %1929 = vmatmul.f32.gmra.mxu0 %v1902
    %v1930 = vpop.f32.mrf.mxu0
    %v1931 = vadd.f32 0.0, %v1930
    %1932 = vdwg.mxu0
    %1933 = vmatpush.msra.mxu0 0.0
    %1934 = vmatpush.msra.mxu0 0.0
    %1935 = vmatpush.msra.mxu0 0.0
    %1936 = vmatpush.msra.mxu0 0.0
    %1937 = vmatpush.msra.mxu0 0.0
    %1938 = vmatpush.msra.mxu0 0.0
    %1939 = vmatpush.msra.mxu0 0.0
    %1940 = vmatpush.msra.mxu0 0.0
    %1941 = vmatpush.msra.mxu0 %v1753
    %1942 = vmatpush.msra.mxu0 %v1749
    %1943 = vmatpush.msra.mxu0 %v1745
    %1944 = vmatpush.msra.mxu0 %v1741
    %1945 = vmatpush.msra.mxu0 %v1737
    %1946 = vmatpush.msra.mxu0 %v1733
    %1947 = vmatpush.msra.mxu0 %v1729
    %1948 = vmatpush.msra.mxu0 %v1725
    %1949 = vmatmul.f32.gmra.mxu0 %v1893
    %v1950 = vpop.f32.mrf.mxu0
    %v1951 = vadd.f32 0.0, %v1950
    %1952 = vmatmul.f32.gmra.mxu0 %v1896
    %v1953 = vpop.f32.mrf.mxu0
    %v1954 = vadd.f32 0.0, %v1953
    %1955 = vmatmul.f32.gmra.mxu0 %v1899
    %v1956 = vpop.f32.mrf.mxu0
    %v1957 = vadd.f32 0.0, %v1956
    %1958 = vmatmul.f32.gmra.mxu0 %v1902
    %v1959 = vpop.f32.mrf.mxu0
    %v1960 = vadd.f32 0.0, %v1959
    %1961 = vdwg.mxu0
    %1962 = vmatpush.msra.mxu0 0.0
    %1963 = vmatpush.msra.mxu0 0.0
    %1964 = vmatpush.msra.mxu0 0.0
    %1965 = vmatpush.msra.mxu0 0.0
    %1966 = vmatpush.msra.mxu0 0.0
    %1967 = vmatpush.msra.mxu0 0.0
    %1968 = vmatpush.msra.mxu0 0.0
    %1969 = vmatpush.msra.mxu0 0.0
    %1970 = vmatpush.msra.mxu0 %v1754
    %1971 = vmatpush.msra.mxu0 %v1750
    %1972 = vmatpush.msra.mxu0 %v1746
    %1973 = vmatpush.msra.mxu0 %v1742
    %1974 = vmatpush.msra.mxu0 %v1738
    %1975 = vmatpush.msra.mxu0 %v1734
    %1976 = vmatpush.msra.mxu0 %v1730
    %1977 = vmatpush.msra.mxu0 %v1726
    %1978 = vmatmul.f32.gmra.mxu0 %v1893
    %v1979 = vpop.f32.mrf.mxu0
    %v1980 = vadd.f32 0.0, %v1979
    %1981 = vmatmul.f32.gmra.mxu0 %v1896
    %v1982 = vpop.f32.mrf.mxu0
    %v1983 = vadd.f32 0.0, %v1982
    %1984 = vmatmul.f32.gmra.mxu0 %v1899
    %v1985 = vpop.f32.mrf.mxu0
    %v1986 = vadd.f32 0.0, %v1985
    %1987 = vmatmul.f32.gmra.mxu0 %v1902
    %v1988 = vpop.f32.mrf.mxu0
    %v1989 = vadd.f32 0.0, %v1988
    %1990 = vdwg.mxu0
    %1991 = vmatpush.msra.mxu0 0.0
    %1992 = vmatpush.msra.mxu0 0.0
    %1993 = vmatpush.msra.mxu0 0.0
    %1994 = vmatpush.msra.mxu0 0.0
    %1995 = vmatpush.msra.mxu0 0.0
    %1996 = vmatpush.msra.mxu0 0.0
    %1997 = vmatpush.msra.mxu0 0.0
    %1998 = vmatpush.msra.mxu0 0.0
    %1999 = vmatpush.msra.mxu0 %v1755
    %2000 = vmatpush.msra.mxu0 %v1751
    %2001 = vmatpush.msra.mxu0 %v1747
    %2002 = vmatpush.msra.mxu0 %v1743
    %2003 = vmatpush.msra.mxu0 %v1739
    %2004 = vmatpush.msra.mxu0 %v1735
    %2005 = vmatpush.msra.mxu0 %v1731
    %2006 = vmatpush.msra.mxu0 %v1727
    %2007 = vmatmul.f32.gmra.mxu0 %v1893
    %v2008 = vpop.f32.mrf.mxu0
    %v2009 = vadd.f32 0.0, %v2008
    %2010 = vmatmul.f32.gmra.mxu0 %v1896
    %v2011 = vpop.f32.mrf.mxu0
    %v2012 = vadd.f32 0.0, %v2011
    %2013 = vmatmul.f32.gmra.mxu0 %v1899
    %v2014 = vpop.f32.mrf.mxu0
    %v2015 = vadd.f32 0.0, %v2014
    %2016 = vmatmul.f32.gmra.mxu0 %v1902
    %v2017 = vpop.f32.mrf.mxu0
    %v2018 = vadd.f32 0.0, %v2017
    %2019 = vdwg.mxu0
    %v2020 = vmax.f32 %v1790, %v1922
    %v2021 = vmax.f32 %v1819, %v1951
    %v2022 = vmax.f32 %v1848, %v1980
    %v2023 = vmax.f32 %v1877, %v2009
    %v2024 = vmax.f32 %v1793, %v1925
    %v2025 = vmax.f32 %v1822, %v1954
    %v2026 = vmax.f32 %v1851, %v1983
    %v2027 = vmax.f32 %v1880, %v2012
    %v2028 = vmax.f32 %v1796, %v1928
    %v2029 = vmax.f32 %v1825, %v1957
    %v2030 = vmax.f32 %v1854, %v1986
    %v2031 = vmax.f32 %v1883, %v2015
    %v2032 = vmax.f32 %v1799, %v1931
    %v2033 = vmax.f32 %v1828, %v1960
    %v2034 = vmax.f32 %v1857, %v1989
    %v2035 = vmax.f32 %v1886, %v2018
    %v2036 = vld [vmem:[#allocation7] sm:$0xff]
    %v2037 = vld [vmem:[#allocation7 + $0x8] sm:$0xff]
    %v2038 = vld [vmem:[#allocation7 + $0x10] sm:$0xff]
    %v2039 = vld [vmem:[#allocation7 + $0x18] sm:$0xff]
    %v2040 = vld [vmem:[#allocation7 + $0x20] sm:$0xff]
    %v2041 = vld [vmem:[#allocation7 + $0x28] sm:$0xff]
    %v2042 = vld [vmem:[#allocation7 + $0x30] sm:$0xff]
    %v2043 = vld [vmem:[#allocation7 + $0x38] sm:$0xff]
    %v2044 = vld [vmem:[#allocation7 + $0x40] sm:$0xff]
    %v2045 = vld [vmem:[#allocation7 + $0x48] sm:$0xff]
    %v2046 = vld [vmem:[#allocation7 + $0x50] sm:$0xff]
    %v2047 = vld [vmem:[#allocation7 + $0x58] sm:$0xff]
    %v2048 = vld [vmem:[#allocation7 + $0x60] sm:$0xff]
    %v2049 = vld [vmem:[#allocation7 + $0x68] sm:$0xff]
    %v2050 = vld [vmem:[#allocation7 + $0x70] sm:$0xff]
    %v2051 = vld [vmem:[#allocation7 + $0x78] sm:$0xff]
    %v2052 = vld [vmem:[#allocation7 + $0x80] sm:$0xff]
    %v2053 = vld [vmem:[#allocation7 + $0x88] sm:$0xff]
    %v2054 = vld [vmem:[#allocation7 + $0x90] sm:$0xff]
    %v2055 = vld [vmem:[#allocation7 + $0x98] sm:$0xff]
    %v2056 = vld [vmem:[#allocation7 + $0xa0] sm:$0xff]
    %v2057 = vld [vmem:[#allocation7 + $0xa8] sm:$0xff]
    %v2058 = vld [vmem:[#allocation7 + $0xb0] sm:$0xff]
    %v2059 = vld [vmem:[#allocation7 + $0xb8] sm:$0xff]
    %v2060 = vld [vmem:[#allocation7 + $0xc0] sm:$0xff]
    %v2061 = vld [vmem:[#allocation7 + $0xc8] sm:$0xff]
    %v2062 = vld [vmem:[#allocation7 + $0xd0] sm:$0xff]
    %v2063 = vld [vmem:[#allocation7 + $0xd8] sm:$0xff]
    %v2064 = vld [vmem:[#allocation7 + $0xe0] sm:$0xff]
    %v2065 = vld [vmem:[#allocation7 + $0xe8] sm:$0xff]
    %v2066 = vld [vmem:[#allocation7 + $0xf0] sm:$0xff]
    %v2067 = vld [vmem:[#allocation7 + $0xf8] sm:$0xff]
    %v2068 = vld [vmem:[#allocation7 + $0x100] sm:$0xff]
    %v2069 = vld [vmem:[#allocation7 + $0x108] sm:$0xff]
    %v2070 = vld [vmem:[#allocation7 + $0x110] sm:$0xff]
    %v2071 = vld [vmem:[#allocation7 + $0x118] sm:$0xff]
    %v2072 = vld [vmem:[#allocation7 + $0x120] sm:$0xff]
    %v2073 = vld [vmem:[#allocation7 + $0x128] sm:$0xff]
    %v2074 = vld [vmem:[#allocation7 + $0x130] sm:$0xff]
    %v2075 = vld [vmem:[#allocation7 + $0x138] sm:$0xff]
    %v2076 = vld [vmem:[#allocation7 + $0x140] sm:$0xff]
    %v2077 = vld [vmem:[#allocation7 + $0x148] sm:$0xff]
    %v2078 = vld [vmem:[#allocation7 + $0x150] sm:$0xff]
    %v2079 = vld [vmem:[#allocation7 + $0x158] sm:$0xff]
    %v2080 = vld [vmem:[#allocation7 + $0x160] sm:$0xff]
    %v2081 = vld [vmem:[#allocation7 + $0x168] sm:$0xff]
    %v2082 = vld [vmem:[#allocation7 + $0x170] sm:$0xff]
    %v2083 = vld [vmem:[#allocation7 + $0x178] sm:$0xff]
    %v2084 = vld [vmem:[#allocation7 + $0x180] sm:$0xff]
    %v2085 = vld [vmem:[#allocation7 + $0x188] sm:$0xff]
    %v2086 = vld [vmem:[#allocation7 + $0x190] sm:$0xff]
    %v2087 = vld [vmem:[#allocation7 + $0x198] sm:$0xff]
    %v2088 = vld [vmem:[#allocation7 + $0x1a0] sm:$0xff]
    %v2089 = vld [vmem:[#allocation7 + $0x1a8] sm:$0xff]
    %v2090 = vld [vmem:[#allocation7 + $0x1b0] sm:$0xff]
    %v2091 = vld [vmem:[#allocation7 + $0x1b8] sm:$0xff]
    %v2092 = vld [vmem:[#allocation7 + $0x1c0] sm:$0xff]
    %v2093 = vld [vmem:[#allocation7 + $0x1c8] sm:$0xff]
    %v2094 = vld [vmem:[#allocation7 + $0x1d0] sm:$0xff]
    %v2095 = vld [vmem:[#allocation7 + $0x1d8] sm:$0xff]
    %v2096 = vld [vmem:[#allocation7 + $0x1e0] sm:$0xff]
    %v2097 = vld [vmem:[#allocation7 + $0x1e8] sm:$0xff]
    %v2098 = vld [vmem:[#allocation7 + $0x1f0] sm:$0xff]
    %v2099 = vld [vmem:[#allocation7 + $0x1f8] sm:$0xff]
    %v2100 = vld [vmem:[#allocation7 + $0x200] sm:$0xff]
    %v2101 = vld [vmem:[#allocation7 + $0x208] sm:$0xff]
    %v2102 = vld [vmem:[#allocation7 + $0x210] sm:$0xff]
    %v2103 = vld [vmem:[#allocation7 + $0x218] sm:$0xff]
    %v2104 = vld [vmem:[#allocation7 + $0x220] sm:$0xff]
    %v2105 = vld [vmem:[#allocation7 + $0x228] sm:$0xff]
    %v2106 = vld [vmem:[#allocation7 + $0x230] sm:$0xff]
    %v2107 = vld [vmem:[#allocation7 + $0x238] sm:$0xff]
    %v2108 = vld [vmem:[#allocation7 + $0x240] sm:$0xff]
    %v2109 = vld [vmem:[#allocation7 + $0x248] sm:$0xff]
    %v2110 = vld [vmem:[#allocation7 + $0x250] sm:$0xff]
    %v2111 = vld [vmem:[#allocation7 + $0x258] sm:$0xff]
    %v2112 = vld [vmem:[#allocation7 + $0x260] sm:$0xff]
    %v2113 = vld [vmem:[#allocation7 + $0x268] sm:$0xff]
    %v2114 = vld [vmem:[#allocation7 + $0x270] sm:$0xff]
    %v2115 = vld [vmem:[#allocation7 + $0x278] sm:$0xff]
    %v2116 = vld [vmem:[#allocation7 + $0x280] sm:$0xff]
    %v2117 = vld [vmem:[#allocation7 + $0x288] sm:$0xff]
    %v2118 = vld [vmem:[#allocation7 + $0x290] sm:$0xff]
    %v2119 = vld [vmem:[#allocation7 + $0x298] sm:$0xff]
    %v2120 = vld [vmem:[#allocation7 + $0x2a0] sm:$0xff]
    %v2121 = vld [vmem:[#allocation7 + $0x2a8] sm:$0xff]
    %v2122 = vld [vmem:[#allocation7 + $0x2b0] sm:$0xff]
    %v2123 = vld [vmem:[#allocation7 + $0x2b8] sm:$0xff]
    %v2124 = vld [vmem:[#allocation7 + $0x2c0] sm:$0xff]
    %v2125 = vld [vmem:[#allocation7 + $0x2c8] sm:$0xff]
    %v2126 = vld [vmem:[#allocation7 + $0x2d0] sm:$0xff]
    %v2127 = vld [vmem:[#allocation7 + $0x2d8] sm:$0xff]
    %v2128 = vld [vmem:[#allocation7 + $0x2e0] sm:$0xff]
    %v2129 = vld [vmem:[#allocation7 + $0x2e8] sm:$0xff]
    %v2130 = vld [vmem:[#allocation7 + $0x2f0] sm:$0xff]
    %v2131 = vld [vmem:[#allocation7 + $0x2f8] sm:$0xff]
    %v2132 = vld [vmem:[#allocation7 + $0x300] sm:$0xff]
    %v2133 = vld [vmem:[#allocation7 + $0x308] sm:$0xff]
    %v2134 = vld [vmem:[#allocation7 + $0x310] sm:$0xff]
    %v2135 = vld [vmem:[#allocation7 + $0x318] sm:$0xff]
    %v2136 = vld [vmem:[#allocation7 + $0x320] sm:$0xff]
    %v2137 = vld [vmem:[#allocation7 + $0x328] sm:$0xff]
    %v2138 = vld [vmem:[#allocation7 + $0x330] sm:$0xff]
    %v2139 = vld [vmem:[#allocation7 + $0x338] sm:$0xff]
    %v2140 = vld [vmem:[#allocation7 + $0x340] sm:$0xff]
    %v2141 = vld [vmem:[#allocation7 + $0x348] sm:$0xff]
    %v2142 = vld [vmem:[#allocation7 + $0x350] sm:$0xff]
    %v2143 = vld [vmem:[#allocation7 + $0x358] sm:$0xff]
    %v2144 = vld [vmem:[#allocation7 + $0x360] sm:$0xff]
    %v2145 = vld [vmem:[#allocation7 + $0x368] sm:$0xff]
    %v2146 = vld [vmem:[#allocation7 + $0x370] sm:$0xff]
    %v2147 = vld [vmem:[#allocation7 + $0x378] sm:$0xff]
    %v2148 = vld [vmem:[#allocation7 + $0x380] sm:$0xff]
    %v2149 = vld [vmem:[#allocation7 + $0x388] sm:$0xff]
    %v2150 = vld [vmem:[#allocation7 + $0x390] sm:$0xff]
    %v2151 = vld [vmem:[#allocation7 + $0x398] sm:$0xff]
    %v2152 = vld [vmem:[#allocation7 + $0x3a0] sm:$0xff]
    %v2153 = vld [vmem:[#allocation7 + $0x3a8] sm:$0xff]
    %v2154 = vld [vmem:[#allocation7 + $0x3b0] sm:$0xff]
    %v2155 = vld [vmem:[#allocation7 + $0x3b8] sm:$0xff]
    %v2156 = vld [vmem:[#allocation7 + $0x3c0] sm:$0xff]
    %v2157 = vld [vmem:[#allocation7 + $0x3c8] sm:$0xff]
    %v2158 = vld [vmem:[#allocation7 + $0x3d0] sm:$0xff]
    %v2159 = vld [vmem:[#allocation7 + $0x3d8] sm:$0xff]
    %v2160 = vld [vmem:[#allocation7 + $0x3e0] sm:$0xff]
    %v2161 = vld [vmem:[#allocation7 + $0x3e8] sm:$0xff]
    %v2162 = vld [vmem:[#allocation7 + $0x3f0] sm:$0xff]
    %v2163 = vld [vmem:[#allocation7 + $0x3f8] sm:$0xff]
    %2164 = vmatpush.msra.mxu0 %v2066
    %2165 = vmatpush.msra.mxu0 %v2064
    %2166 = vmatpush.msra.mxu0 %v2062
    %2167 = vmatpush.msra.mxu0 %v2060
    %2168 = vmatpush.msra.mxu0 %v2058
    %2169 = vmatpush.msra.mxu0 %v2056
    %2170 = vmatpush.msra.mxu0 %v2054
    %2171 = vmatpush.msra.mxu0 %v2052
    %2172 = vmatpush.msra.mxu0 %v2050
    %2173 = vmatpush.msra.mxu0 %v2048
    %2174 = vmatpush.msra.mxu0 %v2046
    %2175 = vmatpush.msra.mxu0 %v2044
    %2176 = vmatpush.msra.mxu0 %v2042
    %2177 = vmatpush.msra.mxu0 %v2040
    %2178 = vmatpush.msra.mxu0 %v2038
    %2179 = vmatpush.msra.mxu0 %v2036
    %2180 = vmatmul.f32.gmra.mxu0 %v2020
    %v2181 = vpop.f32.mrf.mxu0
    %v2182 = vadd.f32 0.0, %v2181
    %2183 = vmatmul.f32.gmra.mxu0 %v2024
    %v2184 = vpop.f32.mrf.mxu0
    %v2185 = vadd.f32 0.0, %v2184
    %2186 = vmatmul.f32.gmra.mxu0 %v2028
    %v2187 = vpop.f32.mrf.mxu0
    %v2188 = vadd.f32 0.0, %v2187
    %2189 = vmatmul.f32.gmra.mxu0 %v2032
    %v2190 = vpop.f32.mrf.mxu0
    %v2191 = vadd.f32 0.0, %v2190
    %2192 = vdwg.mxu0
    %2193 = vmatpush.msra.mxu0 %v2098
    %2194 = vmatpush.msra.mxu0 %v2096
    %2195 = vmatpush.msra.mxu0 %v2094
    %2196 = vmatpush.msra.mxu0 %v2092
    %2197 = vmatpush.msra.mxu0 %v2090
    %2198 = vmatpush.msra.mxu0 %v2088
    %2199 = vmatpush.msra.mxu0 %v2086
    %2200 = vmatpush.msra.mxu0 %v2084
    %2201 = vmatpush.msra.mxu0 %v2082
    %2202 = vmatpush.msra.mxu0 %v2080
    %2203 = vmatpush.msra.mxu0 %v2078
    %2204 = vmatpush.msra.mxu0 %v2076
    %2205 = vmatpush.msra.mxu0 %v2074
    %2206 = vmatpush.msra.mxu0 %v2072
    %2207 = vmatpush.msra.mxu0 %v2070
    %2208 = vmatpush.msra.mxu0 %v2068
    %2209 = vmatmul.f32.gmra.mxu0 %v2021
    %v2210 = vpop.f32.mrf.mxu0
    %v2211 = vadd.f32 %v2182, %v2210
    %2212 = vmatmul.f32.gmra.mxu0 %v2025
    %v2213 = vpop.f32.mrf.mxu0
    %v2214 = vadd.f32 %v2185, %v2213
    %2215 = vmatmul.f32.gmra.mxu0 %v2029
    %v2216 = vpop.f32.mrf.mxu0
    %v2217 = vadd.f32 %v2188, %v2216
    %2218 = vmatmul.f32.gmra.mxu0 %v2033
    %v2219 = vpop.f32.mrf.mxu0
    %v2220 = vadd.f32 %v2191, %v2219
    %2221 = vdwg.mxu0
    %2222 = vmatpush.msra.mxu0 %v2130
    %2223 = vmatpush.msra.mxu0 %v2128
    %2224 = vmatpush.msra.mxu0 %v2126
    %2225 = vmatpush.msra.mxu0 %v2124
    %2226 = vmatpush.msra.mxu0 %v2122
    %2227 = vmatpush.msra.mxu0 %v2120
    %2228 = vmatpush.msra.mxu0 %v2118
    %2229 = vmatpush.msra.mxu0 %v2116
    %2230 = vmatpush.msra.mxu0 %v2114
    %2231 = vmatpush.msra.mxu0 %v2112
    %2232 = vmatpush.msra.mxu0 %v2110
    %2233 = vmatpush.msra.mxu0 %v2108
    %2234 = vmatpush.msra.mxu0 %v2106
    %2235 = vmatpush.msra.mxu0 %v2104
    %2236 = vmatpush.msra.mxu0 %v2102
    %2237 = vmatpush.msra.mxu0 %v2100
    %2238 = vmatmul.f32.gmra.mxu0 %v2022
    %v2239 = vpop.f32.mrf.mxu0
    %v2240 = vadd.f32 %v2211, %v2239
    %2241 = vmatmul.f32.gmra.mxu0 %v2026
    %v2242 = vpop.f32.mrf.mxu0
    %v2243 = vadd.f32 %v2214, %v2242
    %2244 = vmatmul.f32.gmra.mxu0 %v2030
    %v2245 = vpop.f32.mrf.mxu0
    %v2246 = vadd.f32 %v2217, %v2245
    %2247 = vmatmul.f32.gmra.mxu0 %v2034
    %v2248 = vpop.f32.mrf.mxu0
    %v2249 = vadd.f32 %v2220, %v2248
    %2250 = vdwg.mxu0
    %2251 = vmatpush.msra.mxu0 %v2162
    %2252 = vmatpush.msra.mxu0 %v2160
    %2253 = vmatpush.msra.mxu0 %v2158
    %2254 = vmatpush.msra.mxu0 %v2156
    %2255 = vmatpush.msra.mxu0 %v2154
    %2256 = vmatpush.msra.mxu0 %v2152
    %2257 = vmatpush.msra.mxu0 %v2150
    %2258 = vmatpush.msra.mxu0 %v2148
    %2259 = vmatpush.msra.mxu0 %v2146
    %2260 = vmatpush.msra.mxu0 %v2144
    %2261 = vmatpush.msra.mxu0 %v2142
    %2262 = vmatpush.msra.mxu0 %v2140
    %2263 = vmatpush.msra.mxu0 %v2138
    %2264 = vmatpush.msra.mxu0 %v2136
    %2265 = vmatpush.msra.mxu0 %v2134
    %2266 = vmatpush.msra.mxu0 %v2132
    %2267 = vmatmul.f32.gmra.mxu0 %v2023
    %v2268 = vpop.f32.mrf.mxu0
    %v2269 = vadd.f32 %v2240, %v2268
    %2270 = vmatmul.f32.gmra.mxu0 %v2027
    %v2271 = vpop.f32.mrf.mxu0
    %v2272 = vadd.f32 %v2243, %v2271
    %2273 = vmatmul.f32.gmra.mxu0 %v2031
    %v2274 = vpop.f32.mrf.mxu0
    %v2275 = vadd.f32 %v2246, %v2274
    %2276 = vmatmul.f32.gmra.mxu0 %v2035
    %v2277 = vpop.f32.mrf.mxu0
    %v2278 = vadd.f32 %v2249, %v2277
    %2279 = vdwg.mxu0
    %2280 = vmatpush.msra.mxu0 %v2067
    %2281 = vmatpush.msra.mxu0 %v2065
    %2282 = vmatpush.msra.mxu0 %v2063
    %2283 = vmatpush.msra.mxu0 %v2061
    %2284 = vmatpush.msra.mxu0 %v2059
    %2285 = vmatpush.msra.mxu0 %v2057
    %2286 = vmatpush.msra.mxu0 %v2055
    %2287 = vmatpush.msra.mxu0 %v2053
    %2288 = vmatpush.msra.mxu0 %v2051
    %2289 = vmatpush.msra.mxu0 %v2049
    %2290 = vmatpush.msra.mxu0 %v2047
    %2291 = vmatpush.msra.mxu0 %v2045
    %2292 = vmatpush.msra.mxu0 %v2043
    %2293 = vmatpush.msra.mxu0 %v2041
    %2294 = vmatpush.msra.mxu0 %v2039
    %2295 = vmatpush.msra.mxu0 %v2037
    %2296 = vmatmul.f32.gmra.mxu0 %v2020
    %v2297 = vpop.f32.mrf.mxu0
    %v2298 = vadd.f32 0.0, %v2297
    %2299 = vmatmul.f32.gmra.mxu0 %v2024
    %v2300 = vpop.f32.mrf.mxu0
    %v2301 = vadd.f32 0.0, %v2300
    %2302 = vmatmul.f32.gmra.mxu0 %v2028
    %v2303 = vpop.f32.mrf.mxu0
    %v2304 = vadd.f32 0.0, %v2303
    %2305 = vmatmul.f32.gmra.mxu0 %v2032
    %v2306 = vpop.f32.mrf.mxu0
    %v2307 = vadd.f32 0.0, %v2306
    %2308 = vdwg.mxu0
    %2309 = vmatpush.msra.mxu0 %v2099
    %2310 = vmatpush.msra.mxu0 %v2097
    %2311 = vmatpush.msra.mxu0 %v2095
    %2312 = vmatpush.msra.mxu0 %v2093
    %2313 = vmatpush.msra.mxu0 %v2091
    %2314 = vmatpush.msra.mxu0 %v2089
    %2315 = vmatpush.msra.mxu0 %v2087
    %2316 = vmatpush.msra.mxu0 %v2085
    %2317 = vmatpush.msra.mxu0 %v2083
    %2318 = vmatpush.msra.mxu0 %v2081
    %2319 = vmatpush.msra.mxu0 %v2079
    %2320 = vmatpush.msra.mxu0 %v2077
    %2321 = vmatpush.msra.mxu0 %v2075
    %2322 = vmatpush.msra.mxu0 %v2073
    %2323 = vmatpush.msra.mxu0 %v2071
    %2324 = vmatpush.msra.mxu0 %v2069
    %2325 = vmatmul.f32.gmra.mxu0 %v2021
    %v2326 = vpop.f32.mrf.mxu0
    %v2327 = vadd.f32 %v2298, %v2326
    %2328 = vmatmul.f32.gmra.mxu0 %v2025
    %v2329 = vpop.f32.mrf.mxu0
    %v2330 = vadd.f32 %v2301, %v2329
    %2331 = vmatmul.f32.gmra.mxu0 %v2029
    %v2332 = vpop.f32.mrf.mxu0
    %v2333 = vadd.f32 %v2304, %v2332
    %2334 = vmatmul.f32.gmra.mxu0 %v2033
    %v2335 = vpop.f32.mrf.mxu0
    %v2336 = vadd.f32 %v2307, %v2335
    %2337 = vdwg.mxu0
    %2338 = vmatpush.msra.mxu0 %v2131
    %2339 = vmatpush.msra.mxu0 %v2129
    %2340 = vmatpush.msra.mxu0 %v2127
    %2341 = vmatpush.msra.mxu0 %v2125
    %2342 = vmatpush.msra.mxu0 %v2123
    %2343 = vmatpush.msra.mxu0 %v2121
    %2344 = vmatpush.msra.mxu0 %v2119
    %2345 = vmatpush.msra.mxu0 %v2117
    %2346 = vmatpush.msra.mxu0 %v2115
    %2347 = vmatpush.msra.mxu0 %v2113
    %2348 = vmatpush.msra.mxu0 %v2111
    %2349 = vmatpush.msra.mxu0 %v2109
    %2350 = vmatpush.msra.mxu0 %v2107
    %2351 = vmatpush.msra.mxu0 %v2105
    %2352 = vmatpush.msra.mxu0 %v2103
    %2353 = vmatpush.msra.mxu0 %v2101
    %2354 = vmatmul.f32.gmra.mxu0 %v2022
    %v2355 = vpop.f32.mrf.mxu0
    %v2356 = vadd.f32 %v2327, %v2355
    %2357 = vmatmul.f32.gmra.mxu0 %v2026
    %v2358 = vpop.f32.mrf.mxu0
    %v2359 = vadd.f32 %v2330, %v2358
    %2360 = vmatmul.f32.gmra.mxu0 %v2030
    %v2361 = vpop.f32.mrf.mxu0
    %v2362 = vadd.f32 %v2333, %v2361
    %2363 = vmatmul.f32.gmra.mxu0 %v2034
    %v2364 = vpop.f32.mrf.mxu0
    %v2365 = vadd.f32 %v2336, %v2364
    %2366 = vdwg.mxu0
    %2367 = vmatpush.msra.mxu0 %v2163
    %2368 = vmatpush.msra.mxu0 %v2161
    %2369 = vmatpush.msra.mxu0 %v2159
    %2370 = vmatpush.msra.mxu0 %v2157
    %2371 = vmatpush.msra.mxu0 %v2155
    %2372 = vmatpush.msra.mxu0 %v2153
    %2373 = vmatpush.msra.mxu0 %v2151
    %2374 = vmatpush.msra.mxu0 %v2149
    %2375 = vmatpush.msra.mxu0 %v2147
    %2376 = vmatpush.msra.mxu0 %v2145
    %2377 = vmatpush.msra.mxu0 %v2143
    %2378 = vmatpush.msra.mxu0 %v2141
    %2379 = vmatpush.msra.mxu0 %v2139
    %2380 = vmatpush.msra.mxu0 %v2137
    %2381 = vmatpush.msra.mxu0 %v2135
    %2382 = vmatpush.msra.mxu0 %v2133
    %2383 = vmatmul.f32.gmra.mxu0 %v2023
    %v2384 = vpop.f32.mrf.mxu0
    %v2385 = vadd.f32 %v2356, %v2384
    %2386 = vmatmul.f32.gmra.mxu0 %v2027
    %v2387 = vpop.f32.mrf.mxu0
    %v2388 = vadd.f32 %v2359, %v2387
    %2389 = vmatmul.f32.gmra.mxu0 %v2031
    %v2390 = vpop.f32.mrf.mxu0
    %v2391 = vadd.f32 %v2362, %v2390
    %2392 = vmatmul.f32.gmra.mxu0 %v2035
    %v2393 = vpop.f32.mrf.mxu0
    %v2394 = vadd.f32 %v2365, %v2393
    %2395 = vdwg.mxu0
    %v2396 = vld [vmem:[%s7] sm:$0xff]
    %v2397 = vld [vmem:[%s7 + $0x8] sm:$0xff]
    %v2398 = vld [vmem:[%s7 + $0x10] sm:$0xff]
    %v2399 = vld [vmem:[%s7 + $0x18] sm:$0xff]
    %v2400 = vld [vmem:[%s7 + $0x20] sm:$0xff]
    %v2401 = vld [vmem:[%s7 + $0x28] sm:$0xff]
    %v2402 = vld [vmem:[%s7 + $0x30] sm:$0xff]
    %v2403 = vld [vmem:[%s7 + $0x38] sm:$0xff]
    %v2404 = vld [vmem:[%s7 + $0x40] sm:$0xff]
    %v2405 = vld [vmem:[%s7 + $0x48] sm:$0xff]
    %v2406 = vld [vmem:[%s7 + $0x50] sm:$0xff]
    %v2407 = vld [vmem:[%s7 + $0x58] sm:$0xff]
    %v2408 = vld [vmem:[%s7 + $0x60] sm:$0xff]
    %v2409 = vld [vmem:[%s7 + $0x68] sm:$0xff]
    %v2410 = vld [vmem:[%s7 + $0x70] sm:$0xff]
    %v2411 = vld [vmem:[%s7 + $0x78] sm:$0xff]
    %v2412 = vld [vmem:[%s7 + $0x80] sm:$0xff]
    %v2413 = vld [vmem:[%s7 + $0x88] sm:$0xff]
    %v2414 = vld [vmem:[%s7 + $0x90] sm:$0xff]
    %v2415 = vld [vmem:[%s7 + $0x98] sm:$0xff]
    %v2416 = vld [vmem:[%s7 + $0xa0] sm:$0xff]
    %v2417 = vld [vmem:[%s7 + $0xa8] sm:$0xff]
    %v2418 = vld [vmem:[%s7 + $0xb0] sm:$0xff]
    %v2419 = vld [vmem:[%s7 + $0xb8] sm:$0xff]
    %v2420 = vld [vmem:[%s7 + $0xc0] sm:$0xff]
    %v2421 = vld [vmem:[%s7 + $0xc8] sm:$0xff]
    %v2422 = vld [vmem:[%s7 + $0xd0] sm:$0xff]
    %v2423 = vld [vmem:[%s7 + $0xd8] sm:$0xff]
    %v2424 = vld [vmem:[%s7 + $0xe0] sm:$0xff]
    %v2425 = vld [vmem:[%s7 + $0xe8] sm:$0xff]
    %v2426 = vld [vmem:[%s7 + $0xf0] sm:$0xff]
    %v2427 = vld [vmem:[%s7 + $0xf8] sm:$0xff]
    %v2428 = vld [vmem:[%s7 + $0x100] sm:$0xff]
    %v2429 = vld [vmem:[%s7 + $0x108] sm:$0xff]
    %v2430 = vld [vmem:[%s7 + $0x110] sm:$0xff]
    %v2431 = vld [vmem:[%s7 + $0x118] sm:$0xff]
    %v2432 = vld [vmem:[%s7 + $0x120] sm:$0xff]
    %v2433 = vld [vmem:[%s7 + $0x128] sm:$0xff]
    %v2434 = vld [vmem:[%s7 + $0x130] sm:$0xff]
    %v2435 = vld [vmem:[%s7 + $0x138] sm:$0xff]
    %v2436 = vld [vmem:[%s7 + $0x140] sm:$0xff]
    %v2437 = vld [vmem:[%s7 + $0x148] sm:$0xff]
    %v2438 = vld [vmem:[%s7 + $0x150] sm:$0xff]
    %v2439 = vld [vmem:[%s7 + $0x158] sm:$0xff]
    %v2440 = vld [vmem:[%s7 + $0x160] sm:$0xff]
    %v2441 = vld [vmem:[%s7 + $0x168] sm:$0xff]
    %v2442 = vld [vmem:[%s7 + $0x170] sm:$0xff]
    %v2443 = vld [vmem:[%s7 + $0x178] sm:$0xff]
    %v2444 = vld [vmem:[%s7 + $0x180] sm:$0xff]
    %v2445 = vld [vmem:[%s7 + $0x188] sm:$0xff]
    %v2446 = vld [vmem:[%s7 + $0x190] sm:$0xff]
    %v2447 = vld [vmem:[%s7 + $0x198] sm:$0xff]
    %v2448 = vld [vmem:[%s7 + $0x1a0] sm:$0xff]
    %v2449 = vld [vmem:[%s7 + $0x1a8] sm:$0xff]
    %v2450 = vld [vmem:[%s7 + $0x1b0] sm:$0xff]
    %v2451 = vld [vmem:[%s7 + $0x1b8] sm:$0xff]
    %v2452 = vld [vmem:[%s7 + $0x1c0] sm:$0xff]
    %v2453 = vld [vmem:[%s7 + $0x1c8] sm:$0xff]
    %v2454 = vld [vmem:[%s7 + $0x1d0] sm:$0xff]
    %v2455 = vld [vmem:[%s7 + $0x1d8] sm:$0xff]
    %v2456 = vld [vmem:[%s7 + $0x1e0] sm:$0xff]
    %v2457 = vld [vmem:[%s7 + $0x1e8] sm:$0xff]
    %v2458 = vld [vmem:[%s7 + $0x1f0] sm:$0xff]
    %v2459 = vld [vmem:[%s7 + $0x1f8] sm:$0xff]
    %v2460 = vld [vmem:[%s7 + $0x200] sm:$0xff]
    %v2461 = vld [vmem:[%s7 + $0x208] sm:$0xff]
    %v2462 = vld [vmem:[%s7 + $0x210] sm:$0xff]
    %v2463 = vld [vmem:[%s7 + $0x218] sm:$0xff]
    %v2464 = vld [vmem:[%s7 + $0x220] sm:$0xff]
    %v2465 = vld [vmem:[%s7 + $0x228] sm:$0xff]
    %v2466 = vld [vmem:[%s7 + $0x230] sm:$0xff]
    %v2467 = vld [vmem:[%s7 + $0x238] sm:$0xff]
    %v2468 = vld [vmem:[%s7 + $0x240] sm:$0xff]
    %v2469 = vld [vmem:[%s7 + $0x248] sm:$0xff]
    %v2470 = vld [vmem:[%s7 + $0x250] sm:$0xff]
    %v2471 = vld [vmem:[%s7 + $0x258] sm:$0xff]
    %v2472 = vld [vmem:[%s7 + $0x260] sm:$0xff]
    %v2473 = vld [vmem:[%s7 + $0x268] sm:$0xff]
    %v2474 = vld [vmem:[%s7 + $0x270] sm:$0xff]
    %v2475 = vld [vmem:[%s7 + $0x278] sm:$0xff]
    %v2476 = vld [vmem:[%s7 + $0x280] sm:$0xff]
    %v2477 = vld [vmem:[%s7 + $0x288] sm:$0xff]
    %v2478 = vld [vmem:[%s7 + $0x290] sm:$0xff]
    %v2479 = vld [vmem:[%s7 + $0x298] sm:$0xff]
    %v2480 = vld [vmem:[%s7 + $0x2a0] sm:$0xff]
    %v2481 = vld [vmem:[%s7 + $0x2a8] sm:$0xff]
    %v2482 = vld [vmem:[%s7 + $0x2b0] sm:$0xff]
    %v2483 = vld [vmem:[%s7 + $0x2b8] sm:$0xff]
    %v2484 = vld [vmem:[%s7 + $0x2c0] sm:$0xff]
    %v2485 = vld [vmem:[%s7 + $0x2c8] sm:$0xff]
    %v2486 = vld [vmem:[%s7 + $0x2d0] sm:$0xff]
    %v2487 = vld [vmem:[%s7 + $0x2d8] sm:$0xff]
    %v2488 = vld [vmem:[%s7 + $0x2e0] sm:$0xff]
    %v2489 = vld [vmem:[%s7 + $0x2e8] sm:$0xff]
    %v2490 = vld [vmem:[%s7 + $0x2f0] sm:$0xff]
    %v2491 = vld [vmem:[%s7 + $0x2f8] sm:$0xff]
    %v2492 = vld [vmem:[%s7 + $0x300] sm:$0xff]
    %v2493 = vld [vmem:[%s7 + $0x308] sm:$0xff]
    %v2494 = vld [vmem:[%s7 + $0x310] sm:$0xff]
    %v2495 = vld [vmem:[%s7 + $0x318] sm:$0xff]
    %v2496 = vld [vmem:[%s7 + $0x320] sm:$0xff]
    %v2497 = vld [vmem:[%s7 + $0x328] sm:$0xff]
    %v2498 = vld [vmem:[%s7 + $0x330] sm:$0xff]
    %v2499 = vld [vmem:[%s7 + $0x338] sm:$0xff]
    %v2500 = vld [vmem:[%s7 + $0x340] sm:$0xff]
    %v2501 = vld [vmem:[%s7 + $0x348] sm:$0xff]
    %v2502 = vld [vmem:[%s7 + $0x350] sm:$0xff]
    %v2503 = vld [vmem:[%s7 + $0x358] sm:$0xff]
    %v2504 = vld [vmem:[%s7 + $0x360] sm:$0xff]
    %v2505 = vld [vmem:[%s7 + $0x368] sm:$0xff]
    %v2506 = vld [vmem:[%s7 + $0x370] sm:$0xff]
    %v2507 = vld [vmem:[%s7 + $0x378] sm:$0xff]
    %v2508 = vld [vmem:[%s7 + $0x380] sm:$0xff]
    %v2509 = vld [vmem:[%s7 + $0x388] sm:$0xff]
    %v2510 = vld [vmem:[%s7 + $0x390] sm:$0xff]
    %v2511 = vld [vmem:[%s7 + $0x398] sm:$0xff]
    %v2512 = vld [vmem:[%s7 + $0x3a0] sm:$0xff]
    %v2513 = vld [vmem:[%s7 + $0x3a8] sm:$0xff]
    %v2514 = vld [vmem:[%s7 + $0x3b0] sm:$0xff]
    %v2515 = vld [vmem:[%s7 + $0x3b8] sm:$0xff]
    %v2516 = vld [vmem:[%s7 + $0x3c0] sm:$0xff]
    %v2517 = vld [vmem:[%s7 + $0x3c8] sm:$0xff]
    %v2518 = vld [vmem:[%s7 + $0x3d0] sm:$0xff]
    %v2519 = vld [vmem:[%s7 + $0x3d8] sm:$0xff]
    %v2520 = vld [vmem:[%s7 + $0x3e0] sm:$0xff]
    %v2521 = vld [vmem:[%s7 + $0x3e8] sm:$0xff]
    %v2522 = vld [vmem:[%s7 + $0x3f0] sm:$0xff]
    %v2523 = vld [vmem:[%s7 + $0x3f8] sm:$0xff]
    %2524 = vmatpush.msra.mxu0 %v2426
    %2525 = vmatpush.msra.mxu0 %v2424
    %2526 = vmatpush.msra.mxu0 %v2422
    %2527 = vmatpush.msra.mxu0 %v2420
    %2528 = vmatpush.msra.mxu0 %v2418
    %2529 = vmatpush.msra.mxu0 %v2416
    %2530 = vmatpush.msra.mxu0 %v2414
    %2531 = vmatpush.msra.mxu0 %v2412
    %2532 = vmatpush.msra.mxu0 %v2410
    %2533 = vmatpush.msra.mxu0 %v2408
    %2534 = vmatpush.msra.mxu0 %v2406
    %2535 = vmatpush.msra.mxu0 %v2404
    %2536 = vmatpush.msra.mxu0 %v2402
    %2537 = vmatpush.msra.mxu0 %v2400
    %2538 = vmatpush.msra.mxu0 %v2398
    %2539 = vmatpush.msra.mxu0 %v2396
    %2540 = vmatmul.f32.gmra.mxu0 %v2020
    %v2541 = vpop.f32.mrf.mxu0
    %v2542 = vadd.f32 0.0, %v2541
    %2543 = vmatmul.f32.gmra.mxu0 %v2024
    %v2544 = vpop.f32.mrf.mxu0
    %v2545 = vadd.f32 0.0, %v2544
    %2546 = vmatmul.f32.gmra.mxu0 %v2028
    %v2547 = vpop.f32.mrf.mxu0
    %v2548 = vadd.f32 0.0, %v2547
    %2549 = vmatmul.f32.gmra.mxu0 %v2032
    %v2550 = vpop.f32.mrf.mxu0
    %v2551 = vadd.f32 0.0, %v2550
    %2552 = vdwg.mxu0
    %2553 = vmatpush.msra.mxu0 %v2458
    %2554 = vmatpush.msra.mxu0 %v2456
    %2555 = vmatpush.msra.mxu0 %v2454
    %2556 = vmatpush.msra.mxu0 %v2452
    %2557 = vmatpush.msra.mxu0 %v2450
    %2558 = vmatpush.msra.mxu0 %v2448
    %2559 = vmatpush.msra.mxu0 %v2446
    %2560 = vmatpush.msra.mxu0 %v2444
    %2561 = vmatpush.msra.mxu0 %v2442
    %2562 = vmatpush.msra.mxu0 %v2440
    %2563 = vmatpush.msra.mxu0 %v2438
    %2564 = vmatpush.msra.mxu0 %v2436
    %2565 = vmatpush.msra.mxu0 %v2434
    %2566 = vmatpush.msra.mxu0 %v2432
    %2567 = vmatpush.msra.mxu0 %v2430
    %2568 = vmatpush.msra.mxu0 %v2428
    %2569 = vmatmul.f32.gmra.mxu0 %v2021
    %v2570 = vpop.f32.mrf.mxu0
    %v2571 = vadd.f32 %v2542, %v2570
    %2572 = vmatmul.f32.gmra.mxu0 %v2025
    %v2573 = vpop.f32.mrf.mxu0
    %v2574 = vadd.f32 %v2545, %v2573
    %2575 = vmatmul.f32.gmra.mxu0 %v2029
    %v2576 = vpop.f32.mrf.mxu0
    %v2577 = vadd.f32 %v2548, %v2576
    %2578 = vmatmul.f32.gmra.mxu0 %v2033
    %v2579 = vpop.f32.mrf.mxu0
    %v2580 = vadd.f32 %v2551, %v2579
    %2581 = vdwg.mxu0
    %2582 = vmatpush.msra.mxu0 %v2490
    %2583 = vmatpush.msra.mxu0 %v2488
    %2584 = vmatpush.msra.mxu0 %v2486
    %2585 = vmatpush.msra.mxu0 %v2484
    %2586 = vmatpush.msra.mxu0 %v2482
    %2587 = vmatpush.msra.mxu0 %v2480
    %2588 = vmatpush.msra.mxu0 %v2478
    %2589 = vmatpush.msra.mxu0 %v2476
    %2590 = vmatpush.msra.mxu0 %v2474
    %2591 = vmatpush.msra.mxu0 %v2472
    %2592 = vmatpush.msra.mxu0 %v2470
    %2593 = vmatpush.msra.mxu0 %v2468
    %2594 = vmatpush.msra.mxu0 %v2466
    %2595 = vmatpush.msra.mxu0 %v2464
    %2596 = vmatpush.msra.mxu0 %v2462
    %2597 = vmatpush.msra.mxu0 %v2460
    %2598 = vmatmul.f32.gmra.mxu0 %v2022
    %v2599 = vpop.f32.mrf.mxu0
    %v2600 = vadd.f32 %v2571, %v2599
    %2601 = vmatmul.f32.gmra.mxu0 %v2026
    %v2602 = vpop.f32.mrf.mxu0
    %v2603 = vadd.f32 %v2574, %v2602
    %2604 = vmatmul.f32.gmra.mxu0 %v2030
    %v2605 = vpop.f32.mrf.mxu0
    %v2606 = vadd.f32 %v2577, %v2605
    %2607 = vmatmul.f32.gmra.mxu0 %v2034
    %v2608 = vpop.f32.mrf.mxu0
    %v2609 = vadd.f32 %v2580, %v2608
    %2610 = vdwg.mxu0
    %2611 = vmatpush.msra.mxu0 %v2522
    %2612 = vmatpush.msra.mxu0 %v2520
    %2613 = vmatpush.msra.mxu0 %v2518
    %2614 = vmatpush.msra.mxu0 %v2516
    %2615 = vmatpush.msra.mxu0 %v2514
    %2616 = vmatpush.msra.mxu0 %v2512
    %2617 = vmatpush.msra.mxu0 %v2510
    %2618 = vmatpush.msra.mxu0 %v2508
    %2619 = vmatpush.msra.mxu0 %v2506
    %2620 = vmatpush.msra.mxu0 %v2504
    %2621 = vmatpush.msra.mxu0 %v2502
    %2622 = vmatpush.msra.mxu0 %v2500
    %2623 = vmatpush.msra.mxu0 %v2498
    %2624 = vmatpush.msra.mxu0 %v2496
    %2625 = vmatpush.msra.mxu0 %v2494
    %2626 = vmatpush.msra.mxu0 %v2492
    %2627 = vmatmul.f32.gmra.mxu0 %v2023
    %v2628 = vpop.f32.mrf.mxu0
    %v2629 = vadd.f32 %v2600, %v2628
    %2630 = vmatmul.f32.gmra.mxu0 %v2027
    %v2631 = vpop.f32.mrf.mxu0
    %v2632 = vadd.f32 %v2603, %v2631
    %2633 = vmatmul.f32.gmra.mxu0 %v2031
    %v2634 = vpop.f32.mrf.mxu0
    %v2635 = vadd.f32 %v2606, %v2634
    %2636 = vmatmul.f32.gmra.mxu0 %v2035
    %v2637 = vpop.f32.mrf.mxu0
    %v2638 = vadd.f32 %v2609, %v2637
    %2639 = vdwg.mxu0
    %2640 = vmatpush.msra.mxu0 %v2427
    %2641 = vmatpush.msra.mxu0 %v2425
    %2642 = vmatpush.msra.mxu0 %v2423
    %2643 = vmatpush.msra.mxu0 %v2421
    %2644 = vmatpush.msra.mxu0 %v2419
    %2645 = vmatpush.msra.mxu0 %v2417
    %2646 = vmatpush.msra.mxu0 %v2415
    %2647 = vmatpush.msra.mxu0 %v2413
    %2648 = vmatpush.msra.mxu0 %v2411
    %2649 = vmatpush.msra.mxu0 %v2409
    %2650 = vmatpush.msra.mxu0 %v2407
    %2651 = vmatpush.msra.mxu0 %v2405
    %2652 = vmatpush.msra.mxu0 %v2403
    %2653 = vmatpush.msra.mxu0 %v2401
    %2654 = vmatpush.msra.mxu0 %v2399
    %2655 = vmatpush.msra.mxu0 %v2397
    %2656 = vmatmul.f32.gmra.mxu0 %v2020
    %v2657 = vpop.f32.mrf.mxu0
    %v2658 = vadd.f32 0.0, %v2657
    %2659 = vmatmul.f32.gmra.mxu0 %v2024
    %v2660 = vpop.f32.mrf.mxu0
    %v2661 = vadd.f32 0.0, %v2660
    %2662 = vmatmul.f32.gmra.mxu0 %v2028
    %v2663 = vpop.f32.mrf.mxu0
    %v2664 = vadd.f32 0.0, %v2663
    %2665 = vmatmul.f32.gmra.mxu0 %v2032
    %v2666 = vpop.f32.mrf.mxu0
    %v2667 = vadd.f32 0.0, %v2666
    %2668 = vdwg.mxu0
    %2669 = vmatpush.msra.mxu0 %v2459
    %2670 = vmatpush.msra.mxu0 %v2457
    %2671 = vmatpush.msra.mxu0 %v2455
    %2672 = vmatpush.msra.mxu0 %v2453
    %2673 = vmatpush.msra.mxu0 %v2451
    %2674 = vmatpush.msra.mxu0 %v2449
    %2675 = vmatpush.msra.mxu0 %v2447
    %2676 = vmatpush.msra.mxu0 %v2445
    %2677 = vmatpush.msra.mxu0 %v2443
    %2678 = vmatpush.msra.mxu0 %v2441
    %2679 = vmatpush.msra.mxu0 %v2439
    %2680 = vmatpush.msra.mxu0 %v2437
    %2681 = vmatpush.msra.mxu0 %v2435
    %2682 = vmatpush.msra.mxu0 %v2433
    %2683 = vmatpush.msra.mxu0 %v2431
    %2684 = vmatpush.msra.mxu0 %v2429
    %2685 = vmatmul.f32.gmra.mxu0 %v2021
    %v2686 = vpop.f32.mrf.mxu0
    %v2687 = vadd.f32 %v2658, %v2686
    %2688 = vmatmul.f32.gmra.mxu0 %v2025
    %v2689 = vpop.f32.mrf.mxu0
    %v2690 = vadd.f32 %v2661, %v2689
    %2691 = vmatmul.f32.gmra.mxu0 %v2029
    %v2692 = vpop.f32.mrf.mxu0
    %v2693 = vadd.f32 %v2664, %v2692
    %2694 = vmatmul.f32.gmra.mxu0 %v2033
    %v2695 = vpop.f32.mrf.mxu0
    %v2696 = vadd.f32 %v2667, %v2695
    %2697 = vdwg.mxu0
    %2698 = vmatpush.msra.mxu0 %v2491
    %2699 = vmatpush.msra.mxu0 %v2489
    %2700 = vmatpush.msra.mxu0 %v2487
    %2701 = vmatpush.msra.mxu0 %v2485
    %2702 = vmatpush.msra.mxu0 %v2483
    %2703 = vmatpush.msra.mxu0 %v2481
    %2704 = vmatpush.msra.mxu0 %v2479
    %2705 = vmatpush.msra.mxu0 %v2477
    %2706 = vmatpush.msra.mxu0 %v2475
    %2707 = vmatpush.msra.mxu0 %v2473
    %2708 = vmatpush.msra.mxu0 %v2471
    %2709 = vmatpush.msra.mxu0 %v2469
    %2710 = vmatpush.msra.mxu0 %v2467
    %2711 = vmatpush.msra.mxu0 %v2465
    %2712 = vmatpush.msra.mxu0 %v2463
    %2713 = vmatpush.msra.mxu0 %v2461
    %2714 = vmatmul.f32.gmra.mxu0 %v2022
    %v2715 = vpop.f32.mrf.mxu0
    %v2716 = vadd.f32 %v2687, %v2715
    %2717 = vmatmul.f32.gmra.mxu0 %v2026
    %v2718 = vpop.f32.mrf.mxu0
    %v2719 = vadd.f32 %v2690, %v2718
    %2720 = vmatmul.f32.gmra.mxu0 %v2030
    %v2721 = vpop.f32.mrf.mxu0
    %v2722 = vadd.f32 %v2693, %v2721
    %2723 = vmatmul.f32.gmra.mxu0 %v2034
    %v2724 = vpop.f32.mrf.mxu0
    %v2725 = vadd.f32 %v2696, %v2724
    %2726 = vdwg.mxu0
    %2727 = vmatpush.msra.mxu0 %v2523
    %2728 = vmatpush.msra.mxu0 %v2521
    %2729 = vmatpush.msra.mxu0 %v2519
    %2730 = vmatpush.msra.mxu0 %v2517
    %2731 = vmatpush.msra.mxu0 %v2515
    %2732 = vmatpush.msra.mxu0 %v2513
    %2733 = vmatpush.msra.mxu0 %v2511
    %2734 = vmatpush.msra.mxu0 %v2509
    %2735 = vmatpush.msra.mxu0 %v2507
    %2736 = vmatpush.msra.mxu0 %v2505
    %2737 = vmatpush.msra.mxu0 %v2503
    %2738 = vmatpush.msra.mxu0 %v2501
    %2739 = vmatpush.msra.mxu0 %v2499
    %2740 = vmatpush.msra.mxu0 %v2497
    %2741 = vmatpush.msra.mxu0 %v2495
    %2742 = vmatpush.msra.mxu0 %v2493
    %2743 = vmatmul.f32.gmra.mxu0 %v2023
    %v2744 = vpop.f32.mrf.mxu0
    %v2745 = vadd.f32 %v2716, %v2744
    %2746 = vmatmul.f32.gmra.mxu0 %v2027
    %v2747 = vpop.f32.mrf.mxu0
    %v2748 = vadd.f32 %v2719, %v2747
    %2749 = vmatmul.f32.gmra.mxu0 %v2031
    %v2750 = vpop.f32.mrf.mxu0
    %v2751 = vadd.f32 %v2722, %v2750
    %2752 = vmatmul.f32.gmra.mxu0 %v2035
    %v2753 = vpop.f32.mrf.mxu0
    %v2754 = vadd.f32 %v2725, %v2753
    %2755 = vdwg.mxu0
    %v2756 = vmax.f32 %v2269, %v2629
    %v2757 = vmax.f32 %v2385, %v2745
    %v2758 = vmax.f32 %v2272, %v2632
    %v2759 = vmax.f32 %v2388, %v2748
    %v2760 = vmax.f32 %v2275, %v2635
    %v2761 = vmax.f32 %v2391, %v2751
    %v2762 = vmax.f32 %v2278, %v2638
    %v2763 = vmax.f32 %v2394, %v2754
    %v2764 = vld [vmem:[#allocation8] sm:$0xff]
    %v2765 = vld [vmem:[#allocation8 + $0x8] sm:$0xff]
    %v2766 = vld [vmem:[#allocation8 + $0x10] sm:$0xff]
    %v2767 = vld [vmem:[#allocation8 + $0x18] sm:$0xff]
    %v2769 = vsel %vm372, %v2764, 0
    %v2772 = vsel %vm372, %v2765, 0
    %v2775 = vsel %vm372, %v2766, 0
    %v2778 = vsel %vm372, %v2767, 0
    %2780 = vmatpush.msra.mxu0 0.0
    %2781 = vmatpush.msra.mxu0 0.0
    %2782 = vmatpush.msra.mxu0 0.0
    %2783 = vmatpush.msra.mxu0 0.0
    %2784 = vmatpush.msra.mxu0 0.0
    %2785 = vmatpush.msra.mxu0 0.0
    %2786 = vmatpush.msra.mxu0 0.0
    %2787 = vmatpush.msra.mxu0 0.0
    %2788 = vmatpush.msra.mxu0 0.0
    %2789 = vmatpush.msra.mxu0 0.0
    %2790 = vmatpush.msra.mxu0 0.0
    %2791 = vmatpush.msra.mxu0 0.0
    %2792 = vmatpush.msra.mxu0 %v2762
    %2793 = vmatpush.msra.mxu0 %v2760
    %2794 = vmatpush.msra.mxu0 %v2758
    %2795 = vmatpush.msra.mxu0 %v2756
    %2796 = vmatmul.f32.gmra.mxu0 %v2769
    %v2797 = vpop.f32.mrf.mxu0
    %v2798 = vadd.f32 0.0, %v2797
    %2799 = vmatmul.f32.gmra.mxu0 %v2772
    %v2800 = vpop.f32.mrf.mxu0
    %v2801 = vadd.f32 0.0, %v2800
    %2802 = vmatmul.f32.gmra.mxu0 %v2775
    %v2803 = vpop.f32.mrf.mxu0
    %v2804 = vadd.f32 0.0, %v2803
    %2805 = vmatmul.f32.gmra.mxu0 %v2778
    %v2806 = vpop.f32.mrf.mxu0
    %v2807 = vadd.f32 0.0, %v2806
    %2808 = vdwg.mxu0
    %2809 = vmatpush.msra.mxu0 0.0
    %2810 = vmatpush.msra.mxu0 0.0
    %2811 = vmatpush.msra.mxu0 0.0
    %2812 = vmatpush.msra.mxu0 0.0
    %2813 = vmatpush.msra.mxu0 0.0
    %2814 = vmatpush.msra.mxu0 0.0
    %2815 = vmatpush.msra.mxu0 0.0
    %2816 = vmatpush.msra.mxu0 0.0
    %2817 = vmatpush.msra.mxu0 0.0
    %2818 = vmatpush.msra.mxu0 0.0
    %2819 = vmatpush.msra.mxu0 0.0
    %2820 = vmatpush.msra.mxu0 0.0
    %2821 = vmatpush.msra.mxu0 %v2763
    %2822 = vmatpush.msra.mxu0 %v2761
    %2823 = vmatpush.msra.mxu0 %v2759
    %2824 = vmatpush.msra.mxu0 %v2757
    %2825 = vmatmul.f32.gmra.mxu0 %v2769
    %v2826 = vpop.f32.mrf.mxu0
    %v2827 = vadd.f32 0.0, %v2826
    %2828 = vmatmul.f32.gmra.mxu0 %v2772
    %v2829 = vpop.f32.mrf.mxu0
    %v2830 = vadd.f32 0.0, %v2829
    %2831 = vmatmul.f32.gmra.mxu0 %v2775
    %v2832 = vpop.f32.mrf.mxu0
    %v2833 = vadd.f32 0.0, %v2832
    %2834 = vmatmul.f32.gmra.mxu0 %v2778
    %v2835 = vpop.f32.mrf.mxu0
    %v2836 = vadd.f32 0.0, %v2835
    %2837 = vdwg.mxu0
    %v2838 = vld [vmem:[%s8] sm:$0xff]
    %v2839 = vld [vmem:[%s8 + $0x8] sm:$0xff]
    %v2840 = vld [vmem:[%s8 + $0x10] sm:$0xff]
    %v2841 = vld [vmem:[%s8 + $0x18] sm:$0xff]
    %v2842 = vld [vmem:[%s8 + $0x20] sm:$0xff]
    %v2843 = vld [vmem:[%s8 + $0x28] sm:$0xff]
    %v2844 = vld [vmem:[%s8 + $0x30] sm:$0xff]
    %v2845 = vld [vmem:[%s8 + $0x38] sm:$0xff]
    %v2846 = vld [vmem:[%s8 + $0x40] sm:$0xff]
    %v2847 = vld [vmem:[%s8 + $0x48] sm:$0xff]
    %v2848 = vld [vmem:[%s8 + $0x50] sm:$0xff]
    %v2849 = vld [vmem:[%s8 + $0x58] sm:$0xff]
    %v2850 = vld [vmem:[%s8 + $0x60] sm:$0xff]
    %v2851 = vld [vmem:[%s8 + $0x68] sm:$0xff]
    %v2852 = vld [vmem:[%s8 + $0x70] sm:$0xff]
    %v2853 = vld [vmem:[%s8 + $0x78] sm:$0xff]
    %v2854 = vld [vmem:[%s8 + $0x80] sm:$0xff]
    %v2855 = vld [vmem:[%s8 + $0x88] sm:$0xff]
    %v2856 = vld [vmem:[%s8 + $0x90] sm:$0xff]
    %v2857 = vld [vmem:[%s8 + $0x98] sm:$0xff]
    %v2858 = vld [vmem:[%s8 + $0xa0] sm:$0xff]
    %v2859 = vld [vmem:[%s8 + $0xa8] sm:$0xff]
    %v2860 = vld [vmem:[%s8 + $0xb0] sm:$0xff]
    %v2861 = vld [vmem:[%s8 + $0xb8] sm:$0xff]
    %v2862 = vld [vmem:[%s8 + $0xc0] sm:$0xff]
    %v2863 = vld [vmem:[%s8 + $0xc8] sm:$0xff]
    %v2864 = vld [vmem:[%s8 + $0xd0] sm:$0xff]
    %v2865 = vld [vmem:[%s8 + $0xd8] sm:$0xff]
    %v2866 = vld [vmem:[%s8 + $0xe0] sm:$0xff]
    %v2867 = vld [vmem:[%s8 + $0xe8] sm:$0xff]
    %v2868 = vld [vmem:[%s8 + $0xf0] sm:$0xff]
    %v2869 = vld [vmem:[%s8 + $0xf8] sm:$0xff]
    %s2870 = scalar_lea.vmem [#allocation8], 32
    %v2871 = vld [vmem:[%s2870] sm:$0xff]
    %v2872 = vld [vmem:[%s2870 + $0x8] sm:$0xff]
    %v2873 = vld [vmem:[%s2870 + $0x10] sm:$0xff]
    %v2874 = vld [vmem:[%s2870 + $0x18] sm:$0xff]
    %v2876 = vsel %vm372, %v2871, 0
    %v2879 = vsel %vm372, %v2872, 0
    %v2882 = vsel %vm372, %v2873, 0
    %v2885 = vsel %vm372, %v2874, 0
    %2887 = vmatpush.msra.mxu0 0.0
    %2888 = vmatpush.msra.mxu0 0.0
    %2889 = vmatpush.msra.mxu0 0.0
    %2890 = vmatpush.msra.mxu0 0.0
    %2891 = vmatpush.msra.mxu0 0.0
    %2892 = vmatpush.msra.mxu0 0.0
    %2893 = vmatpush.msra.mxu0 0.0
    %2894 = vmatpush.msra.mxu0 0.0
    %2895 = vmatpush.msra.mxu0 0.0
    %2896 = vmatpush.msra.mxu0 0.0
    %2897 = vmatpush.msra.mxu0 0.0
    %2898 = vmatpush.msra.mxu0 0.0
    %2899 = vmatpush.msra.mxu0 %v2762
    %2900 = vmatpush.msra.mxu0 %v2760
    %2901 = vmatpush.msra.mxu0 %v2758
    %2902 = vmatpush.msra.mxu0 %v2756
    %2903 = vmatmul.f32.gmra.mxu0 %v2876
    %v2904 = vpop.f32.mrf.mxu0
    %v2905 = vadd.f32 0.0, %v2904
    %2906 = vmatmul.f32.gmra.mxu0 %v2879
    %v2907 = vpop.f32.mrf.mxu0
    %v2908 = vadd.f32 0.0, %v2907
    %2909 = vmatmul.f32.gmra.mxu0 %v2882
    %v2910 = vpop.f32.mrf.mxu0
    %v2911 = vadd.f32 0.0, %v2910
    %2912 = vmatmul.f32.gmra.mxu0 %v2885
    %v2913 = vpop.f32.mrf.mxu0
    %v2914 = vadd.f32 0.0, %v2913
    %2915 = vdwg.mxu0
    %2916 = vmatpush.msra.mxu0 0.0
    %2917 = vmatpush.msra.mxu0 0.0
    %2918 = vmatpush.msra.mxu0 0.0
    %2919 = vmatpush.msra.mxu0 0.0
    %2920 = vmatpush.msra.mxu0 0.0
    %2921 = vmatpush.msra.mxu0 0.0
    %2922 = vmatpush.msra.mxu0 0.0
    %2923 = vmatpush.msra.mxu0 0.0
    %2924 = vmatpush.msra.mxu0 0.0
    %2925 = vmatpush.msra.mxu0 0.0
    %2926 = vmatpush.msra.mxu0 0.0
    %2927 = vmatpush.msra.mxu0 0.0
    %2928 = vmatpush.msra.mxu0 %v2763
    %2929 = vmatpush.msra.mxu0 %v2761
    %2930 = vmatpush.msra.mxu0 %v2759
    %2931 = vmatpush.msra.mxu0 %v2757
    %2932 = vmatmul.f32.gmra.mxu0 %v2876
    %v2933 = vpop.f32.mrf.mxu0
    %v2934 = vadd.f32 0.0, %v2933
    %2935 = vmatmul.f32.gmra.mxu0 %v2879
    %v2936 = vpop.f32.mrf.mxu0
    %v2937 = vadd.f32 0.0, %v2936
    %2938 = vmatmul.f32.gmra.mxu0 %v2882
    %v2939 = vpop.f32.mrf.mxu0
    %v2940 = vadd.f32 0.0, %v2939
    %2941 = vmatmul.f32.gmra.mxu0 %v2885
    %v2942 = vpop.f32.mrf.mxu0
    %v2943 = vadd.f32 0.0, %v2942
    %2944 = vdwg.mxu0
    %s2945 = scalar_lea.vmem %s8, 256
    %v2946 = vld [vmem:[%s2945] sm:$0xff]
    %v2947 = vld [vmem:[%s2945 + $0x8] sm:$0xff]
    %v2948 = vld [vmem:[%s2945 + $0x10] sm:$0xff]
    %v2949 = vld [vmem:[%s2945 + $0x18] sm:$0xff]
    %v2950 = vld [vmem:[%s2945 + $0x20] sm:$0xff]
    %v2951 = vld [vmem:[%s2945 + $0x28] sm:$0xff]
    %v2952 = vld [vmem:[%s2945 + $0x30] sm:$0xff]
    %v2953 = vld [vmem:[%s2945 + $0x38] sm:$0xff]
    %v2954 = vld [vmem:[%s2945 + $0x40] sm:$0xff]
    %v2955 = vld [vmem:[%s2945 + $0x48] sm:$0xff]
    %v2956 = vld [vmem:[%s2945 + $0x50] sm:$0xff]
    %v2957 = vld [vmem:[%s2945 + $0x58] sm:$0xff]
    %v2958 = vld [vmem:[%s2945 + $0x60] sm:$0xff]
    %v2959 = vld [vmem:[%s2945 + $0x68] sm:$0xff]
    %v2960 = vld [vmem:[%s2945 + $0x70] sm:$0xff]
    %v2961 = vld [vmem:[%s2945 + $0x78] sm:$0xff]
    %v2962 = vld [vmem:[%s2945 + $0x80] sm:$0xff]
    %v2963 = vld [vmem:[%s2945 + $0x88] sm:$0xff]
    %v2964 = vld [vmem:[%s2945 + $0x90] sm:$0xff]
    %v2965 = vld [vmem:[%s2945 + $0x98] sm:$0xff]
    %v2966 = vld [vmem:[%s2945 + $0xa0] sm:$0xff]
    %v2967 = vld [vmem:[%s2945 + $0xa8] sm:$0xff]
    %v2968 = vld [vmem:[%s2945 + $0xb0] sm:$0xff]
    %v2969 = vld [vmem:[%s2945 + $0xb8] sm:$0xff]
    %v2970 = vld [vmem:[%s2945 + $0xc0] sm:$0xff]
    %v2971 = vld [vmem:[%s2945 + $0xc8] sm:$0xff]
    %v2972 = vld [vmem:[%s2945 + $0xd0] sm:$0xff]
    %v2973 = vld [vmem:[%s2945 + $0xd8] sm:$0xff]
    %v2974 = vld [vmem:[%s2945 + $0xe0] sm:$0xff]
    %v2975 = vld [vmem:[%s2945 + $0xe8] sm:$0xff]
    %v2976 = vld [vmem:[%s2945 + $0xf0] sm:$0xff]
    %v2977 = vld [vmem:[%s2945 + $0xf8] sm:$0xff]
    %2978 = vmatpush.msra.mxu0 %v2961
    %2979 = vmatpush.msra.mxu0 %v2960
    %2980 = vmatpush.msra.mxu0 %v2959
    %2981 = vmatpush.msra.mxu0 %v2958
    %2982 = vmatpush.msra.mxu0 %v2957
    %2983 = vmatpush.msra.mxu0 %v2956
    %2984 = vmatpush.msra.mxu0 %v2955
    %2985 = vmatpush.msra.mxu0 %v2954
    %2986 = vmatpush.msra.mxu0 %v2953
    %2987 = vmatpush.msra.mxu0 %v2952
    %2988 = vmatpush.msra.mxu0 %v2951
    %2989 = vmatpush.msra.mxu0 %v2950
    %2990 = vmatpush.msra.mxu0 %v2949
    %2991 = vmatpush.msra.mxu0 %v2948
    %2992 = vmatpush.msra.mxu0 %v2947
    %2993 = vmatpush.msra.mxu0 %v2946
    %2994 = vmatmul.f32.gmra.mxu0 %v2905
    %v2995 = vpop.f32.mrf.mxu0
    %v2996 = vadd.f32 0.0, %v2995
    %2997 = vmatmul.f32.gmra.mxu0 %v2908
    %v2998 = vpop.f32.mrf.mxu0
    %v2999 = vadd.f32 0.0, %v2998
    %3000 = vmatmul.f32.gmra.mxu0 %v2911
    %v3001 = vpop.f32.mrf.mxu0
    %v3002 = vadd.f32 0.0, %v3001
    %3003 = vmatmul.f32.gmra.mxu0 %v2914
    %v3004 = vpop.f32.mrf.mxu0
    %v3005 = vadd.f32 0.0, %v3004
    %3006 = vdwg.mxu0
    %3007 = vmatpush.msra.mxu0 %v2977
    %3008 = vmatpush.msra.mxu0 %v2976
    %3009 = vmatpush.msra.mxu0 %v2975
    %3010 = vmatpush.msra.mxu0 %v2974
    %3011 = vmatpush.msra.mxu0 %v2973
    %3012 = vmatpush.msra.mxu0 %v2972
    %3013 = vmatpush.msra.mxu0 %v2971
    %3014 = vmatpush.msra.mxu0 %v2970
    %3015 = vmatpush.msra.mxu0 %v2969
    %3016 = vmatpush.msra.mxu0 %v2968
    %3017 = vmatpush.msra.mxu0 %v2967
    %3018 = vmatpush.msra.mxu0 %v2966
    %3019 = vmatpush.msra.mxu0 %v2965
    %3020 = vmatpush.msra.mxu0 %v2964
    %3021 = vmatpush.msra.mxu0 %v2963
    %3022 = vmatpush.msra.mxu0 %v2962
    %3023 = vmatmul.f32.gmra.mxu0 %v2934
    %v3024 = vpop.f32.mrf.mxu0
    %v3025 = vadd.f32 %v2996, %v3024
    %3026 = vmatmul.f32.gmra.mxu0 %v2937
    %v3027 = vpop.f32.mrf.mxu0
    %v3028 = vadd.f32 %v2999, %v3027
    %3029 = vmatmul.f32.gmra.mxu0 %v2940
    %v3030 = vpop.f32.mrf.mxu0
    %v3031 = vadd.f32 %v3002, %v3030
    %3032 = vmatmul.f32.gmra.mxu0 %v2943
    %v3033 = vpop.f32.mrf.mxu0
    %v3034 = vadd.f32 %v3005, %v3033
    %3035 = vdwg.mxu0
    %3036 = vmatpush.msra.mxu0 %v2853
    %3037 = vmatpush.msra.mxu0 %v2852
    %3038 = vmatpush.msra.mxu0 %v2851
    %3039 = vmatpush.msra.mxu0 %v2850
    %3040 = vmatpush.msra.mxu0 %v2849
    %3041 = vmatpush.msra.mxu0 %v2848
    %3042 = vmatpush.msra.mxu0 %v2847
    %3043 = vmatpush.msra.mxu0 %v2846
    %3044 = vmatpush.msra.mxu0 %v2845
    %3045 = vmatpush.msra.mxu0 %v2844
    %3046 = vmatpush.msra.mxu0 %v2843
    %3047 = vmatpush.msra.mxu0 %v2842
    %3048 = vmatpush.msra.mxu0 %v2841
    %3049 = vmatpush.msra.mxu0 %v2840
    %3050 = vmatpush.msra.mxu0 %v2839
    %3051 = vmatpush.msra.mxu0 %v2838
    %3052 = vmatmul.f32.gmra.mxu0 %v2798
    %v3053 = vpop.f32.mrf.mxu0
    %v3054 = vadd.f32 %v3025, %v3053
    %3055 = vmatmul.f32.gmra.mxu0 %v2801
    %v3056 = vpop.f32.mrf.mxu0
    %v3057 = vadd.f32 %v3028, %v3056
    %3058 = vmatmul.f32.gmra.mxu0 %v2804
    %v3059 = vpop.f32.mrf.mxu0
    %v3060 = vadd.f32 %v3031, %v3059
    %3061 = vmatmul.f32.gmra.mxu0 %v2807
    %v3062 = vpop.f32.mrf.mxu0
    %v3063 = vadd.f32 %v3034, %v3062
    %3064 = vdwg.mxu0
    %3065 = vmatpush.msra.mxu0 %v2869
    %3066 = vmatpush.msra.mxu0 %v2868
    %3067 = vmatpush.msra.mxu0 %v2867
    %3068 = vmatpush.msra.mxu0 %v2866
    %3069 = vmatpush.msra.mxu0 %v2865
    %3070 = vmatpush.msra.mxu0 %v2864
    %3071 = vmatpush.msra.mxu0 %v2863
    %3072 = vmatpush.msra.mxu0 %v2862
    %3073 = vmatpush.msra.mxu0 %v2861
    %3074 = vmatpush.msra.mxu0 %v2860
    %3075 = vmatpush.msra.mxu0 %v2859
    %3076 = vmatpush.msra.mxu0 %v2858
    %3077 = vmatpush.msra.mxu0 %v2857
    %3078 = vmatpush.msra.mxu0 %v2856
    %3079 = vmatpush.msra.mxu0 %v2855
    %3080 = vmatpush.msra.mxu0 %v2854
    %3081 = vmatmul.f32.gmra.mxu0 %v2827
    %v3082 = vpop.f32.mrf.mxu0
    %v3083 = vadd.f32 %v3054, %v3082
    %3084 = vmatmul.f32.gmra.mxu0 %v2830
    %v3085 = vpop.f32.mrf.mxu0
    %v3086 = vadd.f32 %v3057, %v3085
    %3087 = vmatmul.f32.gmra.mxu0 %v2833
    %v3088 = vpop.f32.mrf.mxu0
    %v3089 = vadd.f32 %v3060, %v3088
    %3090 = vmatmul.f32.gmra.mxu0 %v2836
    %v3091 = vpop.f32.mrf.mxu0
    %v3092 = vadd.f32 %v3063, %v3091
    %3093 = vdwg.mxu0
    %s3094 = scalar_lea.vmem [#allocation8], 64
    %v3095 = vld [vmem:[%s3094] sm:$0xff]
    %v3096 = vld [vmem:[%s3094 + $0x8] sm:$0xff]
    %v3097 = vld [vmem:[%s3094 + $0x10] sm:$0xff]
    %v3098 = vld [vmem:[%s3094 + $0x18] sm:$0xff]
    %v3100 = vsel %vm372, %v3095, 0
    %v3103 = vsel %vm372, %v3096, 0
    %v3106 = vsel %vm372, %v3097, 0
    %v3109 = vsel %vm372, %v3098, 0
    %3111 = vmatpush.msra.mxu0 0.0
    %3112 = vmatpush.msra.mxu0 0.0
    %3113 = vmatpush.msra.mxu0 0.0
    %3114 = vmatpush.msra.mxu0 0.0
    %3115 = vmatpush.msra.mxu0 0.0
    %3116 = vmatpush.msra.mxu0 0.0
    %3117 = vmatpush.msra.mxu0 0.0
    %3118 = vmatpush.msra.mxu0 0.0
    %3119 = vmatpush.msra.mxu0 0.0
    %3120 = vmatpush.msra.mxu0 0.0
    %3121 = vmatpush.msra.mxu0 0.0
    %3122 = vmatpush.msra.mxu0 0.0
    %3123 = vmatpush.msra.mxu0 %v2762
    %3124 = vmatpush.msra.mxu0 %v2760
    %3125 = vmatpush.msra.mxu0 %v2758
    %3126 = vmatpush.msra.mxu0 %v2756
    %3127 = vmatmul.f32.gmra.mxu0 %v3100
    %v3128 = vpop.f32.mrf.mxu0
    %v3129 = vadd.f32 0.0, %v3128
    %3130 = vmatmul.f32.gmra.mxu0 %v3103
    %v3131 = vpop.f32.mrf.mxu0
    %v3132 = vadd.f32 0.0, %v3131
    %3133 = vmatmul.f32.gmra.mxu0 %v3106
    %v3134 = vpop.f32.mrf.mxu0
    %v3135 = vadd.f32 0.0, %v3134
    %3136 = vmatmul.f32.gmra.mxu0 %v3109
    %v3137 = vpop.f32.mrf.mxu0
    %v3138 = vadd.f32 0.0, %v3137
    %3139 = vdwg.mxu0
    %3140 = vmatpush.msra.mxu0 0.0
    %3141 = vmatpush.msra.mxu0 0.0
    %3142 = vmatpush.msra.mxu0 0.0
    %3143 = vmatpush.msra.mxu0 0.0
    %3144 = vmatpush.msra.mxu0 0.0
    %3145 = vmatpush.msra.mxu0 0.0
    %3146 = vmatpush.msra.mxu0 0.0
    %3147 = vmatpush.msra.mxu0 0.0
    %3148 = vmatpush.msra.mxu0 0.0
    %3149 = vmatpush.msra.mxu0 0.0
    %3150 = vmatpush.msra.mxu0 0.0
    %3151 = vmatpush.msra.mxu0 0.0
    %3152 = vmatpush.msra.mxu0 %v2763
    %3153 = vmatpush.msra.mxu0 %v2761
    %3154 = vmatpush.msra.mxu0 %v2759
    %3155 = vmatpush.msra.mxu0 %v2757
    %3156 = vmatmul.f32.gmra.mxu0 %v3100
    %v3157 = vpop.f32.mrf.mxu0
    %v3158 = vadd.f32 0.0, %v3157
    %3159 = vmatmul.f32.gmra.mxu0 %v3103
    %v3160 = vpop.f32.mrf.mxu0
    %v3161 = vadd.f32 0.0, %v3160
    %3162 = vmatmul.f32.gmra.mxu0 %v3106
    %v3163 = vpop.f32.mrf.mxu0
    %v3164 = vadd.f32 0.0, %v3163
    %3165 = vmatmul.f32.gmra.mxu0 %v3109
    %v3166 = vpop.f32.mrf.mxu0
    %v3167 = vadd.f32 0.0, %v3166
    %3168 = vdwg.mxu0
    %s3169 = scalar_lea.vmem %s8, 512
    %v3170 = vld [vmem:[%s3169] sm:$0xff]
    %v3171 = vld [vmem:[%s3169 + $0x8] sm:$0xff]
    %v3172 = vld [vmem:[%s3169 + $0x10] sm:$0xff]
    %v3173 = vld [vmem:[%s3169 + $0x18] sm:$0xff]
    %v3174 = vld [vmem:[%s3169 + $0x20] sm:$0xff]
    %v3175 = vld [vmem:[%s3169 + $0x28] sm:$0xff]
    %v3176 = vld [vmem:[%s3169 + $0x30] sm:$0xff]
    %v3177 = vld [vmem:[%s3169 + $0x38] sm:$0xff]
    %v3178 = vld [vmem:[%s3169 + $0x40] sm:$0xff]
    %v3179 = vld [vmem:[%s3169 + $0x48] sm:$0xff]
    %v3180 = vld [vmem:[%s3169 + $0x50] sm:$0xff]
    %v3181 = vld [vmem:[%s3169 + $0x58] sm:$0xff]
    %v3182 = vld [vmem:[%s3169 + $0x60] sm:$0xff]
    %v3183 = vld [vmem:[%s3169 + $0x68] sm:$0xff]
    %v3184 = vld [vmem:[%s3169 + $0x70] sm:$0xff]
    %v3185 = vld [vmem:[%s3169 + $0x78] sm:$0xff]
    %v3186 = vld [vmem:[%s3169 + $0x80] sm:$0xff]
    %v3187 = vld [vmem:[%s3169 + $0x88] sm:$0xff]
    %v3188 = vld [vmem:[%s3169 + $0x90] sm:$0xff]
    %v3189 = vld [vmem:[%s3169 + $0x98] sm:$0xff]
    %v3190 = vld [vmem:[%s3169 + $0xa0] sm:$0xff]
    %v3191 = vld [vmem:[%s3169 + $0xa8] sm:$0xff]
    %v3192 = vld [vmem:[%s3169 + $0xb0] sm:$0xff]
    %v3193 = vld [vmem:[%s3169 + $0xb8] sm:$0xff]
    %v3194 = vld [vmem:[%s3169 + $0xc0] sm:$0xff]
    %v3195 = vld [vmem:[%s3169 + $0xc8] sm:$0xff]
    %v3196 = vld [vmem:[%s3169 + $0xd0] sm:$0xff]
    %v3197 = vld [vmem:[%s3169 + $0xd8] sm:$0xff]
    %v3198 = vld [vmem:[%s3169 + $0xe0] sm:$0xff]
    %v3199 = vld [vmem:[%s3169 + $0xe8] sm:$0xff]
    %v3200 = vld [vmem:[%s3169 + $0xf0] sm:$0xff]
    %v3201 = vld [vmem:[%s3169 + $0xf8] sm:$0xff]
    %3202 = vmatpush.msra.mxu0 %v3185
    %3203 = vmatpush.msra.mxu0 %v3184
    %3204 = vmatpush.msra.mxu0 %v3183
    %3205 = vmatpush.msra.mxu0 %v3182
    %3206 = vmatpush.msra.mxu0 %v3181
    %3207 = vmatpush.msra.mxu0 %v3180
    %3208 = vmatpush.msra.mxu0 %v3179
    %3209 = vmatpush.msra.mxu0 %v3178
    %3210 = vmatpush.msra.mxu0 %v3177
    %3211 = vmatpush.msra.mxu0 %v3176
    %3212 = vmatpush.msra.mxu0 %v3175
    %3213 = vmatpush.msra.mxu0 %v3174
    %3214 = vmatpush.msra.mxu0 %v3173
    %3215 = vmatpush.msra.mxu0 %v3172
    %3216 = vmatpush.msra.mxu0 %v3171
    %3217 = vmatpush.msra.mxu0 %v3170
    %3218 = vmatmul.f32.gmra.mxu0 %v3129
    %v3219 = vpop.f32.mrf.mxu0
    %v3220 = vadd.f32 0.0, %v3219
    %3221 = vmatmul.f32.gmra.mxu0 %v3132
    %v3222 = vpop.f32.mrf.mxu0
    %v3223 = vadd.f32 0.0, %v3222
    %3224 = vmatmul.f32.gmra.mxu0 %v3135
    %v3225 = vpop.f32.mrf.mxu0
    %v3226 = vadd.f32 0.0, %v3225
    %3227 = vmatmul.f32.gmra.mxu0 %v3138
    %v3228 = vpop.f32.mrf.mxu0
    %v3229 = vadd.f32 0.0, %v3228
    %3230 = vdwg.mxu0
    %3231 = vmatpush.msra.mxu0 %v3201
    %3232 = vmatpush.msra.mxu0 %v3200
    %3233 = vmatpush.msra.mxu0 %v3199
    %3234 = vmatpush.msra.mxu0 %v3198
    %3235 = vmatpush.msra.mxu0 %v3197
    %3236 = vmatpush.msra.mxu0 %v3196
    %3237 = vmatpush.msra.mxu0 %v3195
    %3238 = vmatpush.msra.mxu0 %v3194
    %3239 = vmatpush.msra.mxu0 %v3193
    %3240 = vmatpush.msra.mxu0 %v3192
    %3241 = vmatpush.msra.mxu0 %v3191
    %3242 = vmatpush.msra.mxu0 %v3190
    %3243 = vmatpush.msra.mxu0 %v3189
    %3244 = vmatpush.msra.mxu0 %v3188
    %3245 = vmatpush.msra.mxu0 %v3187
    %3246 = vmatpush.msra.mxu0 %v3186
    %3247 = vmatmul.f32.gmra.mxu0 %v3158
    %v3248 = vpop.f32.mrf.mxu0
    %v3249 = vadd.f32 %v3220, %v3248
    %3250 = vmatmul.f32.gmra.mxu0 %v3161
    %v3251 = vpop.f32.mrf.mxu0
    %v3252 = vadd.f32 %v3223, %v3251
    %3253 = vmatmul.f32.gmra.mxu0 %v3164
    %v3254 = vpop.f32.mrf.mxu0
    %v3255 = vadd.f32 %v3226, %v3254
    %3256 = vmatmul.f32.gmra.mxu0 %v3167
    %v3257 = vpop.f32.mrf.mxu0
    %v3258 = vadd.f32 %v3229, %v3257
    %3259 = vdwg.mxu0
    %v3260 = vadd.f32 %v3083, %v3249
    %v3261 = vadd.f32 %v3086, %v3252
    %v3262 = vadd.f32 %v3089, %v3255
    %v3263 = vadd.f32 %v3092, %v3258
    %v3264 = vld [vmem:[%s10] sm:$0x1]
    %v3266 = vperm.slane %v3264, 0
    %v3268 = vadd.f32 %v3260, %v3266
    %v3269 = vadd.f32 %v3261, %v3266
    %v3270 = vadd.f32 %v3262, %v3266
    %v3271 = vadd.f32 %v3263, %v3266
    %v3272 = vmax.f32 %v3268, 0.0
    %v3273 = vmax.f32 %v3269, 0.0
    %v3274 = vmax.f32 %v3270, 0.0
    %v3275 = vmax.f32 %v3271, 0.0
    %v3276 = vld [vmem:[#allocation10] sm:$0xff]
    %v3277 = vld [vmem:[#allocation10 + $0x8] sm:$0x3f]
    %v3279 = vsel %vm372, %v3276, 0
    %v3282 = vsel %vm372, %v3277, 0
    %3284 = vmatpush.msra.mxu0 0.0
    %3285 = vmatpush.msra.mxu0 0.0
    %3286 = vmatpush.msra.mxu0 0.0
    %3287 = vmatpush.msra.mxu0 0.0
    %3288 = vmatpush.msra.mxu0 0.0
    %3289 = vmatpush.msra.mxu0 0.0
    %3290 = vmatpush.msra.mxu0 0.0
    %3291 = vmatpush.msra.mxu0 0.0
    %3292 = vmatpush.msra.mxu0 0.0
    %3293 = vmatpush.msra.mxu0 0.0
    %3294 = vmatpush.msra.mxu0 0.0
    %3295 = vmatpush.msra.mxu0 0.0
    %3296 = vmatpush.msra.mxu0 %v3275
    %3297 = vmatpush.msra.mxu0 %v3274
    %3298 = vmatpush.msra.mxu0 %v3273
    %3299 = vmatpush.msra.mxu0 %v3272
    %3300 = vmatmul.f32.gmra.mxu0 %v3279
    %v3301 = vpop.f32.mrf.mxu0
    %v3302 = vadd.f32 0.0, %v3301
    %3303 = vmatmul.f32.gmra.mxu0 %v3282
    %v3304 = vpop.f32.mrf.mxu0
    %v3305 = vadd.f32 0.0, %v3304
    %3306 = vdwg.mxu0
    %v3307 = vld [vmem:[#allocation11] sm:$0xff]
    %v3308 = vld [vmem:[#allocation11 + $0x8] sm:$0x3f]
    %v3310 = vsel %vm372, %v3307, 0
    %v3313 = vsel %vm372, %v3308, 0
    %3315 = vmatpush.msra.mxu0 0.0
    %3316 = vmatpush.msra.mxu0 0.0
    %3317 = vmatpush.msra.mxu0 0.0
    %3318 = vmatpush.msra.mxu0 0.0
    %3319 = vmatpush.msra.mxu0 0.0
    %3320 = vmatpush.msra.mxu0 0.0
    %3321 = vmatpush.msra.mxu0 0.0
    %3322 = vmatpush.msra.mxu0 0.0
    %3323 = vmatpush.msra.mxu0 0.0
    %3324 = vmatpush.msra.mxu0 0.0
    %3325 = vmatpush.msra.mxu0 0.0
    %3326 = vmatpush.msra.mxu0 0.0
    %3327 = vmatpush.msra.mxu0 %v3275
    %3328 = vmatpush.msra.mxu0 %v3274
    %3329 = vmatpush.msra.mxu0 %v3273
    %3330 = vmatpush.msra.mxu0 %v3272
    %3331 = vmatmul.f32.gmra.mxu0 %v3310
    %v3332 = vpop.f32.mrf.mxu0
    %v3333 = vadd.f32 0.0, %v3332
    %3334 = vmatmul.f32.gmra.mxu0 %v3313
    %v3335 = vpop.f32.mrf.mxu0
    %v3336 = vadd.f32 0.0, %v3335
    %3337 = vdwg.mxu0
    %v3338 = vmax.f32 %v3302, %v3333
    %v3339 = vmax.f32 %v3305, %v3336
    %v3340 = vld [vmem:[%s13] sm:$0xff]
    %v3341 = vld [vmem:[%s13 + $0x8] sm:$0xff]
    %v3342 = vld [vmem:[%s13 + $0x10] sm:$0xff]
    %v3343 = vld [vmem:[%s13 + $0x18] sm:$0xff]
    %v3344 = vld [vmem:[%s13 + $0x20] sm:$0xff]
    %v3345 = vld [vmem:[%s13 + $0x28] sm:$0xff]
    %v3346 = vld [vmem:[%s13 + $0x30] sm:$0xff]
    %v3347 = vld [vmem:[%s13 + $0x38] sm:$0xff]
    %v3348 = vld [vmem:[%s13 + $0x40] sm:$0xff]
    %v3349 = vld [vmem:[%s13 + $0x48] sm:$0xff]
    %v3350 = vld [vmem:[%s13 + $0x50] sm:$0xff]
    %v3351 = vld [vmem:[%s13 + $0x58] sm:$0xff]
    %v3352 = vld [vmem:[%s13 + $0x60] sm:$0xff]
    %v3353 = vld [vmem:[%s13 + $0x68] sm:$0xff]
    %vm3354 = vcmask 916480
    %v3356 = vsel %vm3354, %v3338, 0
    %v3359 = vsel %vm3354, %v3339, 0
    %3361 = vmatpush.msra.mxu0 0.0
    %3362 = vmatpush.msra.mxu0 0.0
    %3363 = vmatpush.msra.mxu0 %v3353
    %3364 = vmatpush.msra.mxu0 %v3352
    %3365 = vmatpush.msra.mxu0 %v3351
    %3366 = vmatpush.msra.mxu0 %v3350
    %3367 = vmatpush.msra.mxu0 %v3349
    %3368 = vmatpush.msra.mxu0 %v3348
    %3369 = vmatpush.msra.mxu0 %v3347
    %3370 = vmatpush.msra.mxu0 %v3346
    %3371 = vmatpush.msra.mxu0 %v3345
    %3372 = vmatpush.msra.mxu0 %v3344
    %3373 = vmatpush.msra.mxu0 %v3343
    %3374 = vmatpush.msra.mxu0 %v3342
    %3375 = vmatpush.msra.mxu0 %v3341
    %3376 = vmatpush.msra.mxu0 %v3340
    %3377 = vmatmul.f32.gmra.mxu0 %v3356
    %v3378 = vpop.f32.mrf.mxu0
    %v3379 = vadd.f32 0.0, %v3378
    %3380 = vmatmul.f32.gmra.mxu0 %v3359
    %v3381 = vpop.f32.mrf.mxu0
    %v3382 = vadd.f32 0.0, %v3381
    %3383 = vdwg.mxu0
    %v3384 = vld [vmem:[%s14] sm:$0xff]
    %v3385 = vld [vmem:[%s14 + $0x8] sm:$0xff]
    %v3386 = vld [vmem:[%s14 + $0x10] sm:$0xff]
    %v3387 = vld [vmem:[%s14 + $0x18] sm:$0xff]
    %v3388 = vld [vmem:[%s14 + $0x20] sm:$0xff]
    %v3389 = vld [vmem:[%s14 + $0x28] sm:$0xff]
    %v3390 = vld [vmem:[%s14 + $0x30] sm:$0xff]
    %v3391 = vld [vmem:[%s14 + $0x38] sm:$0xff]
    %v3392 = vld [vmem:[%s14 + $0x40] sm:$0xff]
    %v3393 = vld [vmem:[%s14 + $0x48] sm:$0xff]
    %v3394 = vld [vmem:[%s14 + $0x50] sm:$0xff]
    %v3395 = vld [vmem:[%s14 + $0x58] sm:$0xff]
    %v3396 = vld [vmem:[%s14 + $0x60] sm:$0xff]
    %v3397 = vld [vmem:[%s14 + $0x68] sm:$0xff]
    %3398 = vmatpush.msra.mxu0 0.0
    %3399 = vmatpush.msra.mxu0 0.0
    %3400 = vmatpush.msra.mxu0 %v3397
    %3401 = vmatpush.msra.mxu0 %v3396
    %3402 = vmatpush.msra.mxu0 %v3395
    %3403 = vmatpush.msra.mxu0 %v3394
    %3404 = vmatpush.msra.mxu0 %v3393
    %3405 = vmatpush.msra.mxu0 %v3392
    %3406 = vmatpush.msra.mxu0 %v3391
    %3407 = vmatpush.msra.mxu0 %v3390
    %3408 = vmatpush.msra.mxu0 %v3389
    %3409 = vmatpush.msra.mxu0 %v3388
    %3410 = vmatpush.msra.mxu0 %v3387
    %3411 = vmatpush.msra.mxu0 %v3386
    %3412 = vmatpush.msra.mxu0 %v3385
    %3413 = vmatpush.msra.mxu0 %v3384
    %3414 = vmatmul.f32.gmra.mxu0 %v3356
    %v3415 = vpop.f32.mrf.mxu0
    %v3416 = vadd.f32 0.0, %v3415
    %3417 = vmatmul.f32.gmra.mxu0 %v3359
    %v3418 = vpop.f32.mrf.mxu0
    %v3419 = vadd.f32 0.0, %v3418
    %3420 = vdwg.mxu0
    %v3421 = vmax.f32 %v3379, %v3416
    %v3422 = vmax.f32 %v3382, %v3419
    %v3423 = vld [vmem:[#allocation13] sm:$0x3]
    %vm3424 = vcmask 113664
    %v3426 = vsel %vm3424, %v3423, 0
    %vm3428 = vcmask 1045504
    %v3430 = vsel %vm3428, %v3422, 0
    %3432 = vmatpush.msra.mxu0 0.0
    %3433 = vmatpush.msra.mxu0 0.0
    %3434 = vmatpush.msra.mxu0 0.0
    %3435 = vmatpush.msra.mxu0 0.0
    %3436 = vmatpush.msra.mxu0 0.0
    %3437 = vmatpush.msra.mxu0 0.0
    %3438 = vmatpush.msra.mxu0 0.0
    %3439 = vmatpush.msra.mxu0 0.0
    %3440 = vmatpush.msra.mxu0 0.0
    %3441 = vmatpush.msra.mxu0 0.0
    %3442 = vmatpush.msra.mxu0 0.0
    %3443 = vmatpush.msra.mxu0 0.0
    %3444 = vmatpush.msra.mxu0 0.0
    %3445 = vmatpush.msra.mxu0 0.0
    %3446 = vmatpush.msra.mxu0 %v3430
    %3447 = vmatpush.msra.mxu0 %v3421
    %3448 = vmatmul.f32.gmra.mxu0 %v3426
    %v3449 = vpop.f32.mrf.mxu0
    %v3450 = vadd.f32 0.0, %v3449
    %3451 = vdwg.mxu0
    %v3452 = vld [vmem:[%s16] sm:$0xff]
    %v3453 = vld [vmem:[%s16 + $0x8] sm:$0xff]
    %v3454 = vld [vmem:[%s16 + $0x10] sm:$0xff]
    %v3455 = vld [vmem:[%s16 + $0x18] sm:$0xff]
    %v3456 = vld [vmem:[%s16 + $0x20] sm:$0xff]
    %v3457 = vld [vmem:[%s16 + $0x28] sm:$0xff]
    %v3458 = vld [vmem:[%s16 + $0x30] sm:$0xff]
    %s3459 = scalar_lea.vmem [#allocation13], 2
    %v3460 = vld [vmem:[%s3459] sm:$0x3]
    %v3462 = vsel %vm3424, %v3460, 0
    %3464 = vmatpush.msra.mxu0 0.0
    %3465 = vmatpush.msra.mxu0 0.0
    %3466 = vmatpush.msra.mxu0 0.0
    %3467 = vmatpush.msra.mxu0 0.0
    %3468 = vmatpush.msra.mxu0 0.0
    %3469 = vmatpush.msra.mxu0 0.0
    %3470 = vmatpush.msra.mxu0 0.0
    %3471 = vmatpush.msra.mxu0 0.0
    %3472 = vmatpush.msra.mxu0 0.0
    %3473 = vmatpush.msra.mxu0 0.0
    %3474 = vmatpush.msra.mxu0 0.0
    %3475 = vmatpush.msra.mxu0 0.0
    %3476 = vmatpush.msra.mxu0 0.0
    %3477 = vmatpush.msra.mxu0 0.0
    %3478 = vmatpush.msra.mxu0 %v3430
    %3479 = vmatpush.msra.mxu0 %v3421
    %3480 = vmatmul.f32.gmra.mxu0 %v3462
    %v3481 = vpop.f32.mrf.mxu0
    %v3482 = vadd.f32 0.0, %v3481
    %3483 = vdwg.mxu0
    %s3484 = scalar_lea.vmem %s16, 56
    %v3485 = vld [vmem:[%s3484] sm:$0xff]
    %v3486 = vld [vmem:[%s3484 + $0x8] sm:$0xff]
    %v3487 = vld [vmem:[%s3484 + $0x10] sm:$0xff]
    %v3488 = vld [vmem:[%s3484 + $0x18] sm:$0xff]
    %v3489 = vld [vmem:[%s3484 + $0x20] sm:$0xff]
    %v3490 = vld [vmem:[%s3484 + $0x28] sm:$0xff]
    %v3491 = vld [vmem:[%s3484 + $0x30] sm:$0xff]
    %vm3492 = vcmask 457728
    %v3494 = vsel %vm3492, %v3482, 0
    %3496 = vmatpush.msra.mxu0 0.0
    %3497 = vmatpush.msra.mxu0 0.0
    %3498 = vmatpush.msra.mxu0 0.0
    %3499 = vmatpush.msra.mxu0 0.0
    %3500 = vmatpush.msra.mxu0 0.0
    %3501 = vmatpush.msra.mxu0 0.0
    %3502 = vmatpush.msra.mxu0 0.0
    %3503 = vmatpush.msra.mxu0 0.0
    %3504 = vmatpush.msra.mxu0 0.0
    %3505 = vmatpush.msra.mxu0 %v3491
    %3506 = vmatpush.msra.mxu0 %v3490
    %3507 = vmatpush.msra.mxu0 %v3489
    %3508 = vmatpush.msra.mxu0 %v3488
    %3509 = vmatpush.msra.mxu0 %v3487
    %3510 = vmatpush.msra.mxu0 %v3486
    %3511 = vmatpush.msra.mxu0 %v3485
    %3512 = vmatmul.f32.gmra.mxu0 %v3494
    %v3513 = vpop.f32.mrf.mxu0
    %v3514 = vadd.f32 0.0, %v3513
    %3515 = vdwg.mxu0
    %v3517 = vsel %vm3492, %v3450, 0
    %3519 = vmatpush.msra.mxu0 0.0
    %3520 = vmatpush.msra.mxu0 0.0
    %3521 = vmatpush.msra.mxu0 0.0
    %3522 = vmatpush.msra.mxu0 0.0
    %3523 = vmatpush.msra.mxu0 0.0
    %3524 = vmatpush.msra.mxu0 0.0
    %3525 = vmatpush.msra.mxu0 0.0
    %3526 = vmatpush.msra.mxu0 0.0
    %3527 = vmatpush.msra.mxu0 0.0
    %3528 = vmatpush.msra.mxu0 %v3458
    %3529 = vmatpush.msra.mxu0 %v3457
    %3530 = vmatpush.msra.mxu0 %v3456
    %3531 = vmatpush.msra.mxu0 %v3455
    %3532 = vmatpush.msra.mxu0 %v3454
    %3533 = vmatpush.msra.mxu0 %v3453
    %3534 = vmatpush.msra.mxu0 %v3452
    %3535 = vmatmul.f32.gmra.mxu0 %v3517
    %v3536 = vpop.f32.mrf.mxu0
    %v3537 = vadd.f32 %v3514, %v3536
    %3538 = vdwg.mxu0
    %s3539 = scalar_lea.vmem [#allocation13], 4
    %v3540 = vld [vmem:[%s3539] sm:$0x3]
    %v3542 = vsel %vm3424, %v3540, 0
    %3544 = vmatpush.msra.mxu0 0.0
    %3545 = vmatpush.msra.mxu0 0.0
    %3546 = vmatpush.msra.mxu0 0.0
    %3547 = vmatpush.msra.mxu0 0.0
    %3548 = vmatpush.msra.mxu0 0.0
    %3549 = vmatpush.msra.mxu0 0.0
    %3550 = vmatpush.msra.mxu0 0.0
    %3551 = vmatpush.msra.mxu0 0.0
    %3552 = vmatpush.msra.mxu0 0.0
    %3553 = vmatpush.msra.mxu0 0.0
    %3554 = vmatpush.msra.mxu0 0.0
    %3555 = vmatpush.msra.mxu0 0.0
    %3556 = vmatpush.msra.mxu0 0.0
    %3557 = vmatpush.msra.mxu0 0.0
    %3558 = vmatpush.msra.mxu0 %v3430
    %3559 = vmatpush.msra.mxu0 %v3421
    %3560 = vmatmul.f32.gmra.mxu0 %v3542
    %v3561 = vpop.f32.mrf.mxu0
    %v3562 = vadd.f32 0.0, %v3561
    %3563 = vdwg.mxu0
    %s3564 = scalar_lea.vmem %s16, 112
    %v3565 = vld [vmem:[%s3564] sm:$0xff]
    %v3566 = vld [vmem:[%s3564 + $0x8] sm:$0xff]
    %v3567 = vld [vmem:[%s3564 + $0x10] sm:$0xff]
    %v3568 = vld [vmem:[%s3564 + $0x18] sm:$0xff]
    %v3569 = vld [vmem:[%s3564 + $0x20] sm:$0xff]
    %v3570 = vld [vmem:[%s3564 + $0x28] sm:$0xff]
    %v3571 = vld [vmem:[%s3564 + $0x30] sm:$0xff]
    %v3573 = vsel %vm3492, %v3562, 0
    %3575 = vmatpush.msra.mxu0 0.0
    %3576 = vmatpush.msra.mxu0 0.0
    %3577 = vmatpush.msra.mxu0 0.0
    %3578 = vmatpush.msra.mxu0 0.0
    %3579 = vmatpush.msra.mxu0 0.0
    %3580 = vmatpush.msra.mxu0 0.0
    %3581 = vmatpush.msra.mxu0 0.0
    %3582 = vmatpush.msra.mxu0 0.0
    %3583 = vmatpush.msra.mxu0 0.0
    %3584 = vmatpush.msra.mxu0 %v3571
    %3585 = vmatpush.msra.mxu0 %v3570
    %3586 = vmatpush.msra.mxu0 %v3569
    %3587 = vmatpush.msra.mxu0 %v3568
    %3588 = vmatpush.msra.mxu0 %v3567
    %3589 = vmatpush.msra.mxu0 %v3566
    %3590 = vmatpush.msra.mxu0 %v3565
    %3591 = vmatmul.f32.gmra.mxu0 %v3573
    %v3592 = vpop.f32.mrf.mxu0
    %v3593 = vadd.f32 0.0, %v3592
    %3594 = vdwg.mxu0
    %v3595 = vadd.f32 %v3537, %v3593
    %s3596 = scalar_lea.vmem [#allocation13], 6
    %v3597 = vld [vmem:[%s3596] sm:$0x3]
    %v3599 = vsel %vm3424, %v3597, 0
    %3601 = vmatpush.msra.mxu0 0.0
    %3602 = vmatpush.msra.mxu0 0.0
    %3603 = vmatpush.msra.mxu0 0.0
    %3604 = vmatpush.msra.mxu0 0.0
    %3605 = vmatpush.msra.mxu0 0.0
    %3606 = vmatpush.msra.mxu0 0.0
    %3607 = vmatpush.msra.mxu0 0.0
    %3608 = vmatpush.msra.mxu0 0.0
    %3609 = vmatpush.msra.mxu0 0.0
    %3610 = vmatpush.msra.mxu0 0.0
    %3611 = vmatpush.msra.mxu0 0.0
    %3612 = vmatpush.msra.mxu0 0.0
    %3613 = vmatpush.msra.mxu0 0.0
    %3614 = vmatpush.msra.mxu0 0.0
    %3615 = vmatpush.msra.mxu0 %v3430
    %3616 = vmatpush.msra.mxu0 %v3421
    %3617 = vmatmul.f32.gmra.mxu0 %v3599
    %v3618 = vpop.f32.mrf.mxu0
    %v3619 = vadd.f32 0.0, %v3618
    %3620 = vdwg.mxu0
    %s3621 = scalar_lea.vmem %s16, 168
    %v3622 = vld [vmem:[%s3621] sm:$0xff]
    %v3623 = vld [vmem:[%s3621 + $0x8] sm:$0xff]
    %v3624 = vld [vmem:[%s3621 + $0x10] sm:$0xff]
    %v3625 = vld [vmem:[%s3621 + $0x18] sm:$0xff]
    %v3626 = vld [vmem:[%s3621 + $0x20] sm:$0xff]
    %v3627 = vld [vmem:[%s3621 + $0x28] sm:$0xff]
    %v3628 = vld [vmem:[%s3621 + $0x30] sm:$0xff]
    %v3630 = vsel %vm3492, %v3619, 0
    %3632 = vmatpush.msra.mxu0 0.0
    %3633 = vmatpush.msra.mxu0 0.0
    %3634 = vmatpush.msra.mxu0 0.0
    %3635 = vmatpush.msra.mxu0 0.0
    %3636 = vmatpush.msra.mxu0 0.0
    %3637 = vmatpush.msra.mxu0 0.0
    %3638 = vmatpush.msra.mxu0 0.0
    %3639 = vmatpush.msra.mxu0 0.0
    %3640 = vmatpush.msra.mxu0 0.0
    %3641 = vmatpush.msra.mxu0 %v3628
    %3642 = vmatpush.msra.mxu0 %v3627
    %3643 = vmatpush.msra.mxu0 %v3626
    %3644 = vmatpush.msra.mxu0 %v3625
    %3645 = vmatpush.msra.mxu0 %v3624
    %3646 = vmatpush.msra.mxu0 %v3623
    %3647 = vmatpush.msra.mxu0 %v3622
    %3648 = vmatmul.f32.gmra.mxu0 %v3630
    %v3649 = vpop.f32.mrf.mxu0
    %v3650 = vadd.f32 0.0, %v3649
    %3651 = vdwg.mxu0
    %v3652 = vadd.f32 %v3595, %v3650
    %s3653 = scalar_lea.vmem [#allocation13], 8
    %v3654 = vld [vmem:[%s3653] sm:$0x3]
    %v3656 = vsel %vm3424, %v3654, 0
    %3658 = vmatpush.msra.mxu0 0.0
    %3659 = vmatpush.msra.mxu0 0.0
    %3660 = vmatpush.msra.mxu0 0.0
    %3661 = vmatpush.msra.mxu0 0.0
    %3662 = vmatpush.msra.mxu0 0.0
    %3663 = vmatpush.msra.mxu0 0.0
    %3664 = vmatpush.msra.mxu0 0.0
    %3665 = vmatpush.msra.mxu0 0.0
    %3666 = vmatpush.msra.mxu0 0.0
    %3667 = vmatpush.msra.mxu0 0.0
    %3668 = vmatpush.msra.mxu0 0.0
    %3669 = vmatpush.msra.mxu0 0.0
    %3670 = vmatpush.msra.mxu0 0.0
    %3671 = vmatpush.msra.mxu0 0.0
    %3672 = vmatpush.msra.mxu0 %v3430
    %3673 = vmatpush.msra.mxu0 %v3421
    %3674 = vmatmul.f32.gmra.mxu0 %v3656
    %v3675 = vpop.f32.mrf.mxu0
    %v3676 = vadd.f32 0.0, %v3675
    %3677 = vdwg.mxu0
    %s3678 = scalar_lea.vmem %s16, 224
    %v3679 = vld [vmem:[%s3678] sm:$0xff]
    %v3680 = vld [vmem:[%s3678 + $0x8] sm:$0xff]
    %v3681 = vld [vmem:[%s3678 + $0x10] sm:$0xff]
    %v3682 = vld [vmem:[%s3678 + $0x18] sm:$0xff]
    %v3683 = vld [vmem:[%s3678 + $0x20] sm:$0xff]
    %v3684 = vld [vmem:[%s3678 + $0x28] sm:$0xff]
    %v3685 = vld [vmem:[%s3678 + $0x30] sm:$0xff]
    %v3687 = vsel %vm3492, %v3676, 0
    %3689 = vmatpush.msra.mxu0 0.0
    %3690 = vmatpush.msra.mxu0 0.0
    %3691 = vmatpush.msra.mxu0 0.0
    %3692 = vmatpush.msra.mxu0 0.0
    %3693 = vmatpush.msra.mxu0 0.0
    %3694 = vmatpush.msra.mxu0 0.0
    %3695 = vmatpush.msra.mxu0 0.0
    %3696 = vmatpush.msra.mxu0 0.0
    %3697 = vmatpush.msra.mxu0 0.0
    %3698 = vmatpush.msra.mxu0 %v3685
    %3699 = vmatpush.msra.mxu0 %v3684
    %3700 = vmatpush.msra.mxu0 %v3683
    %3701 = vmatpush.msra.mxu0 %v3682
    %3702 = vmatpush.msra.mxu0 %v3681
    %3703 = vmatpush.msra.mxu0 %v3680
    %3704 = vmatpush.msra.mxu0 %v3679
    %3705 = vmatmul.f32.gmra.mxu0 %v3687
    %v3706 = vpop.f32.mrf.mxu0
    %v3707 = vadd.f32 0.0, %v3706
    %3708 = vdwg.mxu0
    %v3709 = vadd.f32 %v3652, %v3707
    %s3710 = scalar_lea.vmem [#allocation13], 10
    %v3711 = vld [vmem:[%s3710] sm:$0x3]
    %v3713 = vsel %vm3424, %v3711, 0
    %3715 = vmatpush.msra.mxu0 0.0
    %3716 = vmatpush.msra.mxu0 0.0
    %3717 = vmatpush.msra.mxu0 0.0
    %3718 = vmatpush.msra.mxu0 0.0
    %3719 = vmatpush.msra.mxu0 0.0
    %3720 = vmatpush.msra.mxu0 0.0
    %3721 = vmatpush.msra.mxu0 0.0
    %3722 = vmatpush.msra.mxu0 0.0
    %3723 = vmatpush.msra.mxu0 0.0
    %3724 = vmatpush.msra.mxu0 0.0
    %3725 = vmatpush.msra.mxu0 0.0
    %3726 = vmatpush.msra.mxu0 0.0
    %3727 = vmatpush.msra.mxu0 0.0
    %3728 = vmatpush.msra.mxu0 0.0
    %3729 = vmatpush.msra.mxu0 %v3430
    %3730 = vmatpush.msra.mxu0 %v3421
    %3731 = vmatmul.f32.gmra.mxu0 %v3713
    %v3732 = vpop.f32.mrf.mxu0
    %v3733 = vadd.f32 0.0, %v3732
    %3734 = vdwg.mxu0
    %s3735 = scalar_lea.vmem %s16, 280
    %v3736 = vld [vmem:[%s3735] sm:$0xff]
    %v3737 = vld [vmem:[%s3735 + $0x8] sm:$0xff]
    %v3738 = vld [vmem:[%s3735 + $0x10] sm:$0xff]
    %v3739 = vld [vmem:[%s3735 + $0x18] sm:$0xff]
    %v3740 = vld [vmem:[%s3735 + $0x20] sm:$0xff]
    %v3741 = vld [vmem:[%s3735 + $0x28] sm:$0xff]
    %v3742 = vld [vmem:[%s3735 + $0x30] sm:$0xff]
    %v3744 = vsel %vm3492, %v3733, 0
    %3746 = vmatpush.msra.mxu0 0.0
    %3747 = vmatpush.msra.mxu0 0.0
    %3748 = vmatpush.msra.mxu0 0.0
    %3749 = vmatpush.msra.mxu0 0.0
    %3750 = vmatpush.msra.mxu0 0.0
    %3751 = vmatpush.msra.mxu0 0.0
    %3752 = vmatpush.msra.mxu0 0.0
    %3753 = vmatpush.msra.mxu0 0.0
    %3754 = vmatpush.msra.mxu0 0.0
    %3755 = vmatpush.msra.mxu0 %v3742
    %3756 = vmatpush.msra.mxu0 %v3741
    %3757 = vmatpush.msra.mxu0 %v3740
    %3758 = vmatpush.msra.mxu0 %v3739
    %3759 = vmatpush.msra.mxu0 %v3738
    %3760 = vmatpush.msra.mxu0 %v3737
    %3761 = vmatpush.msra.mxu0 %v3736
    %3762 = vmatmul.f32.gmra.mxu0 %v3744
    %v3763 = vpop.f32.mrf.mxu0
    %v3764 = vadd.f32 0.0, %v3763
    %3765 = vdwg.mxu0
    %v3766 = vadd.f32 %v3709, %v3764
    %s3767 = scalar_lea.vmem [#allocation13], 12
    %v3768 = vld [vmem:[%s3767] sm:$0x3]
    %v3770 = vsel %vm3424, %v3768, 0
    %3772 = vmatpush.msra.mxu0 0.0
    %3773 = vmatpush.msra.mxu0 0.0
    %3774 = vmatpush.msra.mxu0 0.0
    %3775 = vmatpush.msra.mxu0 0.0
    %3776 = vmatpush.msra.mxu0 0.0
    %3777 = vmatpush.msra.mxu0 0.0
    %3778 = vmatpush.msra.mxu0 0.0
    %3779 = vmatpush.msra.mxu0 0.0
    %3780 = vmatpush.msra.mxu0 0.0
    %3781 = vmatpush.msra.mxu0 0.0
    %3782 = vmatpush.msra.mxu0 0.0
    %3783 = vmatpush.msra.mxu0 0.0
    %3784 = vmatpush.msra.mxu0 0.0
    %3785 = vmatpush.msra.mxu0 0.0
    %3786 = vmatpush.msra.mxu0 %v3430
    %3787 = vmatpush.msra.mxu0 %v3421
    %3788 = vmatmul.f32.gmra.mxu0 %v3770
    %v3789 = vpop.f32.mrf.mxu0
    %v3790 = vadd.f32 0.0, %v3789
    %3791 = vdwg.mxu0
    %s3792 = scalar_lea.vmem %s16, 336
    %v3793 = vld [vmem:[%s3792] sm:$0xff]
    %v3794 = vld [vmem:[%s3792 + $0x8] sm:$0xff]
    %v3795 = vld [vmem:[%s3792 + $0x10] sm:$0xff]
    %v3796 = vld [vmem:[%s3792 + $0x18] sm:$0xff]
    %v3797 = vld [vmem:[%s3792 + $0x20] sm:$0xff]
    %v3798 = vld [vmem:[%s3792 + $0x28] sm:$0xff]
    %v3799 = vld [vmem:[%s3792 + $0x30] sm:$0xff]
    %v3801 = vsel %vm3492, %v3790, 0
    %3803 = vmatpush.msra.mxu0 0.0
    %3804 = vmatpush.msra.mxu0 0.0
    %3805 = vmatpush.msra.mxu0 0.0
    %3806 = vmatpush.msra.mxu0 0.0
    %3807 = vmatpush.msra.mxu0 0.0
    %3808 = vmatpush.msra.mxu0 0.0
    %3809 = vmatpush.msra.mxu0 0.0
    %3810 = vmatpush.msra.mxu0 0.0
    %3811 = vmatpush.msra.mxu0 0.0
    %3812 = vmatpush.msra.mxu0 %v3799
    %3813 = vmatpush.msra.mxu0 %v3798
    %3814 = vmatpush.msra.mxu0 %v3797
    %3815 = vmatpush.msra.mxu0 %v3796
    %3816 = vmatpush.msra.mxu0 %v3795
    %3817 = vmatpush.msra.mxu0 %v3794
    %3818 = vmatpush.msra.mxu0 %v3793
    %3819 = vmatmul.f32.gmra.mxu0 %v3801
    %v3820 = vpop.f32.mrf.mxu0
    %v3821 = vadd.f32 0.0, %v3820
    %3822 = vdwg.mxu0
    %v3823 = vadd.f32 %v3766, %v3821
    %v3824 = vld [vmem:[#allocation14] sm:$0x1]
    %v3826 = vperm.slane %v3824, 0
    %v3828 = vadd.f32 %v3823, %v3826
    %vm3829 = vcmask 74752
    %3830 = vst.msk [vmem:[#allocation16] sm:$0x3] %vm3829, %v3828
    // Predicated region
    $region106: #{cnn_forward.1} parent=1 // pred_check
      _
    $region107: #{cnn_forward.1} parent=1 // pred_check_branch
      %3832 = sbr.rel (0) target = $region109
    $region108: #{cnn_forward.1} parent=1 // pred_region
      %3834 = vsyncadd [#allocation4], 0
      %s3836 = sshll.u32 [#allocation16], 4
      %s3837 = int_to_ptr.vmem [resolvable:$true] %s3836
      %s3838 = sshll.u32 %s18, 4
      %s3839 = int_to_ptr.hbm [resolvable:$true] %s3838
      %3841 = dma.vmem_to_hbm [thread:$0]  %s3837, 32, %s3839, [#allocation4]
    $region109: #{cnn_forward.1} parent=1 // pred_fallthru
      _
    // Predicated region
    $region110: #{cnn_forward.1} parent=1 // pred_check
      _
    $region111: #{cnn_forward.1} parent=1 // pred_check_branch
      %3843 = sbr.rel (0) target = $region113
    $region112: #{cnn_forward.1} parent=1 // pred_region
      %3845 = dma.done [#allocation4], 32
    $region113: #{cnn_forward.1} parent=1 // pred_fallthru
      _
    %3846 = vsyncpa [#allocation3], 1
    %3847 = vsyncpa [#allocation6], 1
    %3848 = vsyncpa [#allocation9], 1
    %3849 = vsyncpa [#allocation12], 1
    %3850 = vsyncpa [#allocation15], 1
    %3851 = vsyncpa [#allocation4], 1

</llo_original>
